<compile_context>
chip_gen: v7x
topology: tpu7x:2x2x1
jax: 0.10.0
libtpu: 0.0.40
codegen_flags: <defaults>
</compile_context>

<pallas_src>
import functools

import jax
import jax.numpy as jnp
from jax.experimental import pallas as pl
from jax.experimental.pallas import tpu as pltpu


def cbam_kernel(x_ref, w1_ref, b1_ref, w2_ref, b2_ref, cw_ref, cb_ref,
                o_ref, ext_ref, *, w, pad_left):
    nb, C, HW = x_ref.shape                                   # lane-dense block

    x = x_ref[...].astype(jnp.float32)                        # (NB, C, HW)

    # ---------------- Channel attention ----------------
    # Global average pool = reduction over the lane axis of the lane-dense slab.
    pooled = jnp.mean(x, axis=2)                               # (NB, C)
    # FC1: w1 stored (HID, C) so the reduce runs over C in the lane axis.
    h1 = jnp.sum(pooled[:, None, :] * w1_ref[...][None, :, :], axis=2) + b1_ref[...]
    h1 = jnp.maximum(h1, 0.0)                                  # (NB, HID)
    # FC2: C stays in lanes; tiny sublane reduce over HID.
    fc = jnp.sum(h1[:, :, None] * w2_ref[...][None, :, :], axis=1) + b2_ref[...]
    fc = jnp.maximum(fc, 0.0)                                  # (NB, C)
    # avg_out + max_out, where the "max" branch is also avg-pool (source quirk).
    ca = jax.nn.sigmoid(fc + fc)                               # (NB, C)
    x1 = x * ca[:, :, None]                                    # x *= ChannelAttention(x)

    # ---------------- Spatial attention (sublane-packed 7x7 conv) ----------------
    avg_c = jnp.mean(x1, axis=1)                               # (NB, HW)
    max_c = jnp.max(x1, axis=1)                                # (NB, HW)

    ext = ext_ref.shape[1]
    # Zero-halo conv-input scratch: channel 0 (avg) in rows [0, nb), channel 1
    # (max) in rows [nb, 2nb).  Only the halo margins are cleared each step (the
    # interior is fully overwritten below); gating this on pl.program_id(0) == 0
    # would be unsafe under megacore grid splitting, and the clears are 2 aligned
    # 128-lane stores, i.e. free.
    ext_ref[:, 0:pad_left] = jnp.zeros((2 * nb, pad_left), jnp.float32)
    ext_ref[:, pad_left + HW:ext] = jnp.zeros((2 * nb, ext - pad_left - HW), jnp.float32)
    ext_ref[0:nb, pad_left:pad_left + HW] = avg_c              # lane-aligned store
    ext_ref[nb:2 * nb, pad_left:pad_left + HW] = max_c

    # Per-sublane channel selectors (channel-0 rows vs channel-1 rows), hoisted.
    row = jax.lax.broadcasted_iota(jnp.int32, (2 * nb, 1), 0)
    sel0 = (row < nb).astype(jnp.float32)
    sel1 = 1.0 - sel0

    # Per-dj column-wrap masks precomputed once (applied as a multiply).
    col = jax.lax.broadcasted_iota(jnp.int32, (1, HW), 1) % w
    masks = [((col >= 3 - dj) & (col < w + 3 - dj)).astype(jnp.float32)
             for dj in range(7)]

    # 7x7 conv, 2 in-channels -> 1 out-channel, evaluated in the flat domain.
    # Tap (di, dj): out[q] += w_ci * ext[ci-rows, pad_left + q + (di-3)*w + (dj-3)].
    # Pure row overruns read the zero halo; column wraparound (and its corner
    # cases) is removed by the per-dj lane mask.  49 slices total (both channels
    # per slice via sublane packing).
    acc = jnp.zeros((2 * nb, HW), jnp.float32)
    for dj in range(7):
        inner = jnp.zeros((2 * nb, HW), jnp.float32)
        for di in range(7):
            c0 = cw_ref[di * 7 + dj]                           # channel-0 scalar (SMEM)
            c1 = cw_ref[49 + di * 7 + dj]                      # channel-1 scalar (SMEM)
            wcol = sel0 * c0 + sel1 * c1                       # (2*NB, 1)
            start = pad_left + (di - 3) * w + (dj - 3)
            inner = inner + wcol * ext_ref[:, start:start + HW]
        acc = acc + masks[dj] * inner
    # Collapse the two channel halves with one sublane add, add bias, sigmoid.
    sa = jax.nn.sigmoid(acc[0:nb, :] + acc[nb:2 * nb, :] + cb_ref[0])   # (NB, HW)

    o_ref[...] = (x1 * sa[:, None, :]).astype(o_ref.dtype)    # x *= SpatialAttention(x)


def _num_tensorcores():
    """Heuristic TensorCore-per-chip count (v7x / v4 megacore -> 2, else 1)."""
    try:
        kind = jax.devices()[0].device_kind.lower()
    except Exception:
        return 1
    return 2 if ("7" in kind or "v4" in kind) else 1


def _pick_nb(n, per_batch_bytes, num_tc, vmem_budget=8 * 1024 * 1024):
    """Batch elements per grid step: one step on single-TC chips when VMEM allows,
    >= num_tc steps on megacore chips, and keep double-buffered in/out blocks plus
    in-kernel intermediates (~8x the input block) under the scoped-VMEM budget."""
    best = 1
    for cand in range(1, n + 1):
        if n % cand:
            continue
        if n // cand < min(num_tc, n):
            continue
        if 8 * cand * per_batch_bytes > vmem_budget:
            continue
        best = cand
    return best


@functools.partial(jax.jit, static_argnames=("nb",))
def cbam_pallas(x, w1, b1, w2t, b2, conv_w, conv_b, nb=None):
    N, C, H, W = x.shape
    HW = H * W
    HID = w1.shape[0]
    if nb is None:
        nb = _pick_nb(N, C * HW * x.dtype.itemsize, _num_tensorcores())
    assert N % nb == 0
    # Halo so every (di, dj) flat shift stays in-bounds; left halo rounded up to a
    # multiple of 128 so the interior scratch writes are lane-aligned.
    pad_left = -(-(3 * W + 3) // 128) * 128
    pad_right = pad_left
    ext = pad_left + HW + pad_right

    x3 = x.reshape(N, C, HW)         # lane-dense layout for all elementwise work
    kernel = functools.partial(cbam_kernel, w=W, pad_left=pad_left)
    out3 = pl.pallas_call(
        kernel,
        out_shape=jax.ShapeDtypeStruct((N, C, HW), x.dtype),
        grid=(N // nb,),
        in_specs=[
            pl.BlockSpec((nb, C, HW), lambda b: (b, 0, 0)),
            pl.BlockSpec((HID, C), lambda b: (0, 0)),
            pl.BlockSpec((1, HID), lambda b: (0, 0)),
            pl.BlockSpec((HID, C), lambda b: (0, 0)),
            pl.BlockSpec((1, C), lambda b: (0, 0)),
            pl.BlockSpec(memory_space=pltpu.MemorySpace.SMEM),   # conv weights (98,)
            pl.BlockSpec(memory_space=pltpu.MemorySpace.SMEM),   # conv bias (1,)
        ],
        out_specs=pl.BlockSpec((nb, C, HW), lambda b: (b, 0, 0)),
        scratch_shapes=[pltpu.VMEM((2 * nb, ext), jnp.float32)],
        compiler_params=pltpu.CompilerParams(
            dimension_semantics=("parallel",),
            vmem_limit_bytes=32 * 1024 * 1024),
    )(x3, w1, b1, w2t, b2, conv_w, conv_b)
    return out3.reshape(N, C, H, W)


def cbam_reference(x, w1, b1, w2t, b2, conv_w, conv_b):
    pooled = jnp.mean(x, axis=(2, 3))
    h = jnp.maximum(pooled @ w1.T + b1, 0.0)
    fc = jnp.maximum(h @ w2t + b2, 0.0)
    ca = jax.nn.sigmoid(fc + fc)
    x1 = x * ca[:, :, None, None]
    avg_c = jnp.mean(x1, axis=1, keepdims=True)
    max_c = jnp.max(x1, axis=1, keepdims=True)
    s_in = jnp.concatenate([avg_c, max_c], axis=1)
    w = conv_w.reshape(1, 2, 7, 7)
    sa = jax.lax.conv_general_dilated(
        s_in, w, window_strides=(1, 1), padding=[(3, 3), (3, 3)],
        dimension_numbers=("NCHW", "OIHW", "NCHW")) + conv_b[0]
    sa = jax.nn.sigmoid(sa)
    return x1 * sa


if __name__ == "__main__":
    N, C, H, W = 4, 32, 16, 16       # input_dim = output_dim = C = 32, r = 16
    HID = C // 16                    # hidden width of the channel MLP

    key = jax.random.PRNGKey(0)
    ks = jax.random.split(key, 7)
    x = jax.random.normal(ks[0], (N, C, H, W), jnp.float32)
    # Linear(C, HID): PyTorch (out, in) = (HID, C) layout (lane-reduce over C).
    w1 = jax.random.normal(ks[1], (HID, C), jnp.float32) * 0.2
    b1 = jax.random.normal(ks[2], (1, HID), jnp.float32) * 0.1
    # Linear(HID, C): transposed weight (HID, C).
    w2t = jax.random.normal(ks[3], (HID, C), jnp.float32) * 0.2
    b2 = jax.random.normal(ks[4], (1, C), jnp.float32) * 0.1
    # Conv2d(2, 1, 7x7) weight flattened as [in_ch, kh, kw] -> (98,), plus bias (1,).
    conv_w = jax.random.normal(ks[5], (98,), jnp.float32) * 0.1
    conv_b = jax.random.normal(ks[6], (1,), jnp.float32) * 0.1

    out = cbam_pallas(x, w1, b1, w2t, b2, conv_w, conv_b)
    out = jax.block_until_ready(out)

    ref = cbam_reference(x, w1, b1, w2t, b2, conv_w, conv_b)
    assert out.shape == (N, C, H, W)
    assert jnp.allclose(out, ref, atol=1e-2, rtol=1e-2), "mismatch vs reference"
    print("KERNEL_OK")
</pallas_src>

<mosaic_0001>
module attributes {stable_mosaic.version = 11 : i64} {
  func.func @cbam_kernel(%arg0: i32, %arg1: memref<4x32x256xf32, #tpu.memory_space<vmem>>, %arg2: memref<2x32xf32, #tpu.memory_space<vmem>>, %arg3: memref<1x2xf32, #tpu.memory_space<vmem>>, %arg4: memref<2x32xf32, #tpu.memory_space<vmem>>, %arg5: memref<1x32xf32, #tpu.memory_space<vmem>>, %arg6: memref<98xf32, #tpu.memory_space<smem>>, %arg7: memref<1xf32, #tpu.memory_space<smem>>, %arg8: memref<4x32x256xf32, #tpu.memory_space<vmem>>, %arg9: memref<8x512xf32, #tpu.memory_space<vmem>>) attributes {dimension_semantics = [#tpu.dimension_semantics<parallel>], iteration_bounds = array<i64: 1>, scalar_prefetch = 0 : i64, scratch_operands = 1 : i64, tpu.core_type = #tpu.core_type<tc>, window_params = [{transform_indices = @transform_0, window_bounds = array<i64: 4, 32, 256>}, {pipeline_mode = #tpu.pipeline_mode<synchronous>, transform_indices = @transform_1, window_bounds = array<i64: 2, 32>}, {pipeline_mode = #tpu.pipeline_mode<synchronous>, transform_indices = @transform_2, window_bounds = array<i64: 1, 2>}, {pipeline_mode = #tpu.pipeline_mode<synchronous>, transform_indices = @transform_3, window_bounds = array<i64: 2, 32>}, {pipeline_mode = #tpu.pipeline_mode<synchronous>, transform_indices = @transform_4, window_bounds = array<i64: 1, 32>}, {transform_indices = @transform_5, window_bounds = array<i64: 98>}, {transform_indices = @transform_6, window_bounds = array<i64: 1>}, {transform_indices = @transform_7, window_bounds = array<i64: 4, 32, 256>}]} {
    %c0 = arith.constant 0 : index
    %c0_0 = arith.constant 0 : index
    %c0_1 = arith.constant 0 : index
    %0 = vector.load %arg1[%c0, %c0_0, %c0_1] : memref<4x32x256xf32, #tpu.memory_space<vmem>>, vector<4x32x256xf32>
    %cst = arith.constant dense<0.000000e+00> : vector<4x32xf32>
    %1 = vector.multi_reduction <add>, %0, %cst [2] : vector<4x32x256xf32> to vector<4x32xf32>
    %cst_2 = arith.constant 2.560000e+02 : f32
    %2 = vector.broadcast %cst_2 : f32 to vector<4x32xf32>
    %3 = arith.divf %1, %2 : vector<4x32xf32>
    %4 = vector.shape_cast %3 : vector<4x32xf32> to vector<4x1x32xf32>
    %c0_3 = arith.constant 0 : index
    %c0_4 = arith.constant 0 : index
    %5 = vector.load %arg2[%c0_3, %c0_4] : memref<2x32xf32, #tpu.memory_space<vmem>>, vector<2x32xf32>
    %6 = vector.shape_cast %5 : vector<2x32xf32> to vector<1x2x32xf32>
    %7 = vector.broadcast %4 : vector<4x1x32xf32> to vector<4x2x32xf32>
    %8 = vector.broadcast %6 : vector<1x2x32xf32> to vector<4x2x32xf32>
    %9 = arith.mulf %7, %8 : vector<4x2x32xf32>
    %cst_5 = arith.constant dense<0.000000e+00> : vector<4x2xf32>
    %10 = vector.multi_reduction <add>, %9, %cst_5 [2] : vector<4x2x32xf32> to vector<4x2xf32>
    %c0_6 = arith.constant 0 : index
    %c0_7 = arith.constant 0 : index
    %11 = vector.load %arg3[%c0_6, %c0_7] : memref<1x2xf32, #tpu.memory_space<vmem>>, vector<1x2xf32>
    %12 = vector.broadcast %11 : vector<1x2xf32> to vector<4x2xf32>
    %13 = arith.addf %10, %12 : vector<4x2xf32>
    %cst_8 = arith.constant 0.000000e+00 : f32
    %14 = vector.broadcast %cst_8 : f32 to vector<4x2xf32>
    %15 = arith.maximumf %13, %14 : vector<4x2xf32>
    %16 = vector.shape_cast %15 : vector<4x2xf32> to vector<4x2x1xf32>
    %c0_9 = arith.constant 0 : index
    %c0_10 = arith.constant 0 : index
    %17 = vector.load %arg4[%c0_9, %c0_10] : memref<2x32xf32, #tpu.memory_space<vmem>>, vector<2x32xf32>
    %18 = vector.shape_cast %17 : vector<2x32xf32> to vector<1x2x32xf32>
    %19 = vector.broadcast %16 : vector<4x2x1xf32> to vector<4x2x32xf32>
    %20 = vector.broadcast %18 : vector<1x2x32xf32> to vector<4x2x32xf32>
    %21 = arith.mulf %19, %20 : vector<4x2x32xf32>
    %cst_11 = arith.constant dense<0.000000e+00> : vector<4x32xf32>
    %22 = vector.multi_reduction <add>, %21, %cst_11 [1] : vector<4x2x32xf32> to vector<4x32xf32>
    %c0_12 = arith.constant 0 : index
    %c0_13 = arith.constant 0 : index
    %23 = vector.load %arg5[%c0_12, %c0_13] : memref<1x32xf32, #tpu.memory_space<vmem>>, vector<1x32xf32>
    %24 = vector.broadcast %23 : vector<1x32xf32> to vector<4x32xf32>
    %25 = arith.addf %22, %24 : vector<4x32xf32>
    %cst_14 = arith.constant 0.000000e+00 : f32
    %26 = vector.broadcast %cst_14 : f32 to vector<4x32xf32>
    %27 = arith.maximumf %25, %26 : vector<4x32xf32>
    %28 = arith.addf %27, %27 : vector<4x32xf32>
    %29 = arith.negf %28 : vector<4x32xf32>
    %30 = math.exp %29 : vector<4x32xf32>
    %cst_15 = arith.constant 1.000000e+00 : f32
    %31 = vector.broadcast %cst_15 : f32 to vector<4x32xf32>
    %32 = arith.addf %31, %30 : vector<4x32xf32>
    %33 = arith.divf %31, %32 : vector<4x32xf32>
    %34 = vector.shape_cast %33 : vector<4x32xf32> to vector<4x32x1xf32>
    %35 = vector.broadcast %34 : vector<4x32x1xf32> to vector<4x32x256xf32>
    %36 = arith.mulf %0, %35 : vector<4x32x256xf32>
    %cst_16 = arith.constant dense<0.000000e+00> : vector<4x256xf32>
    %37 = vector.multi_reduction <add>, %36, %cst_16 [1] : vector<4x32x256xf32> to vector<4x256xf32>
    %cst_17 = arith.constant 3.200000e+01 : f32
    %38 = vector.broadcast %cst_17 : f32 to vector<4x256xf32>
    %39 = arith.divf %37, %38 : vector<4x256xf32>
    %cst_18 = arith.constant dense<0xFF800000> : vector<4x256xf32>
    %40 = vector.multi_reduction <maximumf>, %36, %cst_18 [1] : vector<4x32x256xf32> to vector<4x256xf32>
    %cst_19 = arith.constant 0.000000e+00 : f32
    %41 = vector.broadcast %cst_19 : f32 to vector<8x128xf32>
    %c0_20 = arith.constant 0 : index
    %c0_21 = arith.constant 0 : index
    %42 = vector.load %arg9[%c0_20, %c0_21] : memref<8x512xf32, #tpu.memory_space<vmem>>, vector<8x128xf32>
    tpu.vector_store %arg9[%c0_20, %c0_21], %41 {strides = array<i32>} : memref<8x512xf32, #tpu.memory_space<vmem>>, vector<8x128xf32>,
    %cst_22 = arith.constant 0.000000e+00 : f32
    %43 = vector.broadcast %cst_22 : f32 to vector<8x128xf32>
    %c0_23 = arith.constant 0 : index
    %c384 = arith.constant 384 : index
    %44 = vector.load %arg9[%c0_23, %c384] : memref<8x512xf32, #tpu.memory_space<vmem>>, vector<8x128xf32>
    tpu.vector_store %arg9[%c0_23, %c384], %43 {strides = array<i32>} : memref<8x512xf32, #tpu.memory_space<vmem>>, vector<8x128xf32>,
    %c0_24 = arith.constant 0 : index
    %c128 = arith.constant 128 : index
    %45 = vector.load %arg9[%c0_24, %c128] : memref<8x512xf32, #tpu.memory_space<vmem>>, vector<4x256xf32>
    tpu.vector_store %arg9[%c0_24, %c128], %39 {strides = array<i32>} : memref<8x512xf32, #tpu.memory_space<vmem>>, vector<4x256xf32>,
    %c4 = arith.constant 4 : index
    %c128_25 = arith.constant 128 : index
    %46 = vector.load %arg9[%c4, %c128_25] : memref<8x512xf32, #tpu.memory_space<vmem>>, vector<4x256xf32>
    tpu.vector_store %arg9[%c4, %c128_25], %40 {strides = array<i32>} : memref<8x512xf32, #tpu.memory_space<vmem>>, vector<4x256xf32>,
    %47 = tpu.iota {dimensions = array<i32: 0>} : vector<8x1xi32>
    %c4_i32 = arith.constant 4 : i32
    %48 = vector.broadcast %c4_i32 : i32 to vector<8x1xi32>
    %49 = arith.cmpi slt, %47, %48 : vector<8x1xi32>
    %50 = arith.extui %49 : vector<8x1xi1> to vector<8x1xi32>
    %51 = arith.sitofp %50 : vector<8x1xi32> to vector<8x1xf32>
    %cst_26 = arith.constant 1.000000e+00 : f32
    %52 = vector.broadcast %cst_26 : f32 to vector<8x1xf32>
    %53 = arith.subf %52, %51 : vector<8x1xf32>
    %54 = tpu.iota {dimensions = array<i32: 1>} : vector<1x256xi32>
    %c16_i32 = arith.constant 16 : i32
    %c0_i32 = arith.constant 0 : i32
    %55 = arith.cmpi eq, %c16_i32, %c0_i32 : i32
    %c1_i32 = arith.constant 1 : i32
    %56 = arith.select %55, %c1_i32, %c16_i32 : i32
    %57 = vector.broadcast %56 : i32 to vector<1x256xi32>
    %58 = arith.remsi %54, %57 : vector<1x256xi32>
    %c0_i32_27 = arith.constant 0 : i32
    %59 = vector.broadcast %c0_i32_27 : i32 to vector<1x256xi32>
    %60 = arith.cmpi ne, %58, %59 : vector<1x256xi32>
    %c0_i32_28 = arith.constant 0 : i32
    %61 = vector.broadcast %c0_i32_28 : i32 to vector<1x256xi32>
    %62 = arith.cmpi slt, %58, %61 : vector<1x256xi32>
    %c0_i32_29 = arith.constant 0 : i32
    %63 = arith.cmpi slt, %56, %c0_i32_29 : i32
    %64 = vector.broadcast %63 : i1 to vector<1x256xi1>
    %65 = vector.broadcast %64 : vector<1x256xi1> to vector<1x256xi1>
    %66 = arith.xori %62, %65 : vector<1x256xi1>
    %67 = arith.andi %66, %60 : vector<1x256xi1>
    %68 = vector.broadcast %56 : i32 to vector<1x256xi32>
    %69 = arith.addi %58, %68 : vector<1x256xi32>
    %70 = arith.select %67, %69, %58 : vector<1x256xi1>, vector<1x256xi32>
    %c3_i32 = arith.constant 3 : i32
    %71 = vector.broadcast %c3_i32 : i32 to vector<1x256xi32>
    %72 = arith.cmpi sge, %70, %71 : vector<1x256xi32>
    %c19_i32 = arith.constant 19 : i32
    %73 = vector.broadcast %c19_i32 : i32 to vector<1x256xi32>
    %74 = arith.cmpi slt, %70, %73 : vector<1x256xi32>
    %75 = arith.andi %72, %74 : vector<1x256xi1>
    %76 = arith.extui %75 : vector<1x256xi1> to vector<1x256xi32>
    %77 = arith.sitofp %76 : vector<1x256xi32> to vector<1x256xf32>
    %c2_i32 = arith.constant 2 : i32
    %78 = vector.broadcast %c2_i32 : i32 to vector<1x256xi32>
    %79 = arith.cmpi sge, %70, %78 : vector<1x256xi32>
    %c18_i32 = arith.constant 18 : i32
    %80 = vector.broadcast %c18_i32 : i32 to vector<1x256xi32>
    %81 = arith.cmpi slt, %70, %80 : vector<1x256xi32>
    %82 = arith.andi %79, %81 : vector<1x256xi1>
    %83 = arith.extui %82 : vector<1x256xi1> to vector<1x256xi32>
    %84 = arith.sitofp %83 : vector<1x256xi32> to vector<1x256xf32>
    %c1_i32_30 = arith.constant 1 : i32
    %85 = vector.broadcast %c1_i32_30 : i32 to vector<1x256xi32>
    %86 = arith.cmpi sge, %70, %85 : vector<1x256xi32>
    %c17_i32 = arith.constant 17 : i32
    %87 = vector.broadcast %c17_i32 : i32 to vector<1x256xi32>
    %88 = arith.cmpi slt, %70, %87 : vector<1x256xi32>
    %89 = arith.andi %86, %88 : vector<1x256xi1>
    %90 = arith.extui %89 : vector<1x256xi1> to vector<1x256xi32>
    %91 = arith.sitofp %90 : vector<1x256xi32> to vector<1x256xf32>
    %c0_i32_31 = arith.constant 0 : i32
    %92 = vector.broadcast %c0_i32_31 : i32 to vector<1x256xi32>
    %93 = arith.cmpi sge, %70, %92 : vector<1x256xi32>
    %c16_i32_32 = arith.constant 16 : i32
    %94 = vector.broadcast %c16_i32_32 : i32 to vector<1x256xi32>
    %95 = arith.cmpi slt, %70, %94 : vector<1x256xi32>
    %96 = arith.andi %93, %95 : vector<1x256xi1>
    %97 = arith.extui %96 : vector<1x256xi1> to vector<1x256xi32>
    %98 = arith.sitofp %97 : vector<1x256xi32> to vector<1x256xf32>
    %c-1_i32 = arith.constant -1 : i32
    %99 = vector.broadcast %c-1_i32 : i32 to vector<1x256xi32>
    %100 = arith.cmpi sge, %70, %99 : vector<1x256xi32>
    %c15_i32 = arith.constant 15 : i32
    %101 = vector.broadcast %c15_i32 : i32 to vector<1x256xi32>
    %102 = arith.cmpi slt, %70, %101 : vector<1x256xi32>
    %103 = arith.andi %100, %102 : vector<1x256xi1>
    %104 = arith.extui %103 : vector<1x256xi1> to vector<1x256xi32>
    %105 = arith.sitofp %104 : vector<1x256xi32> to vector<1x256xf32>
    %c-2_i32 = arith.constant -2 : i32
    %106 = vector.broadcast %c-2_i32 : i32 to vector<1x256xi32>
    %107 = arith.cmpi sge, %70, %106 : vector<1x256xi32>
    %c14_i32 = arith.constant 14 : i32
    %108 = vector.broadcast %c14_i32 : i32 to vector<1x256xi32>
    %109 = arith.cmpi slt, %70, %108 : vector<1x256xi32>
    %110 = arith.andi %107, %109 : vector<1x256xi1>
    %111 = arith.extui %110 : vector<1x256xi1> to vector<1x256xi32>
    %112 = arith.sitofp %111 : vector<1x256xi32> to vector<1x256xf32>
    %c-3_i32 = arith.constant -3 : i32
    %113 = vector.broadcast %c-3_i32 : i32 to vector<1x256xi32>
    %114 = arith.cmpi sge, %70, %113 : vector<1x256xi32>
    %c13_i32 = arith.constant 13 : i32
    %115 = vector.broadcast %c13_i32 : i32 to vector<1x256xi32>
    %116 = arith.cmpi slt, %70, %115 : vector<1x256xi32>
    %117 = arith.andi %114, %116 : vector<1x256xi1>
    %118 = arith.extui %117 : vector<1x256xi1> to vector<1x256xi32>
    %119 = arith.sitofp %118 : vector<1x256xi32> to vector<1x256xf32>
    %cst_33 = arith.constant 0.000000e+00 : f32
    %120 = vector.broadcast %cst_33 : f32 to vector<8x256xf32>
    %cst_34 = arith.constant 0.000000e+00 : f32
    %121 = vector.broadcast %cst_34 : f32 to vector<8x256xf32>
    %c0_35 = arith.constant 0 : index
    %122 = memref.load %arg6[%c0_35] : memref<98xf32, #tpu.memory_space<smem>>
    %c49 = arith.constant 49 : index
    %123 = memref.load %arg6[%c49] : memref<98xf32, #tpu.memory_space<smem>>
    %124 = vector.broadcast %122 : f32 to vector<8x1xf32>
    %125 = arith.mulf %51, %124 : vector<8x1xf32>
    %126 = vector.broadcast %123 : f32 to vector<8x1xf32>
    %127 = arith.mulf %53, %126 : vector<8x1xf32>
    %128 = arith.addf %125, %127 : vector<8x1xf32>
    %c0_36 = arith.constant 0 : index
    %c77 = arith.constant 77 : index
    %129 = vector.load %arg9[%c0_36, %c77] : memref<8x512xf32, #tpu.memory_space<vmem>>, vector<8x256xf32>
    %130 = vector.broadcast %128 : vector<8x1xf32> to vector<8x256xf32>
    %131 = arith.mulf %130, %129 : vector<8x256xf32>
    %132 = arith.addf %121, %131 : vector<8x256xf32>
    %c7 = arith.constant 7 : index
    %133 = memref.load %arg6[%c7] : memref<98xf32, #tpu.memory_space<smem>>
    %c56 = arith.constant 56 : index
    %134 = memref.load %arg6[%c56] : memref<98xf32, #tpu.memory_space<smem>>
    %135 = vector.broadcast %133 : f32 to vector<8x1xf32>
    %136 = arith.mulf %51, %135 : vector<8x1xf32>
    %137 = vector.broadcast %134 : f32 to vector<8x1xf32>
    %138 = arith.mulf %53, %137 : vector<8x1xf32>
    %139 = arith.addf %136, %138 : vector<8x1xf32>
    %c0_37 = arith.constant 0 : index
    %c93 = arith.constant 93 : index
    %140 = vector.load %arg9[%c0_37, %c93] : memref<8x512xf32, #tpu.memory_space<vmem>>, vector<8x256xf32>
    %141 = vector.broadcast %139 : vector<8x1xf32> to vector<8x256xf32>
    %142 = arith.mulf %141, %140 : vector<8x256xf32>
    %143 = arith.addf %132, %142 : vector<8x256xf32>
    %c14 = arith.constant 14 : index
    %144 = memref.load %arg6[%c14] : memref<98xf32, #tpu.memory_space<smem>>
    %c63 = arith.constant 63 : index
    %145 = memref.load %arg6[%c63] : memref<98xf32, #tpu.memory_space<smem>>
    %146 = vector.broadcast %144 : f32 to vector<8x1xf32>
    %147 = arith.mulf %51, %146 : vector<8x1xf32>
    %148 = vector.broadcast %145 : f32 to vector<8x1xf32>
    %149 = arith.mulf %53, %148 : vector<8x1xf32>
    %150 = arith.addf %147, %149 : vector<8x1xf32>
    %c0_38 = arith.constant 0 : index
    %c109 = arith.constant 109 : index
    %151 = vector.load %arg9[%c0_38, %c109] : memref<8x512xf32, #tpu.memory_space<vmem>>, vector<8x256xf32>
    %152 = vector.broadcast %150 : vector<8x1xf32> to vector<8x256xf32>
    %153 = arith.mulf %152, %151 : vector<8x256xf32>
    %154 = arith.addf %143, %153 : vector<8x256xf32>
    %c21 = arith.constant 21 : index
    %155 = memref.load %arg6[%c21] : memref<98xf32, #tpu.memory_space<smem>>
    %c70 = arith.constant 70 : index
    %156 = memref.load %arg6[%c70] : memref<98xf32, #tpu.memory_space<smem>>
    %157 = vector.broadcast %155 : f32 to vector<8x1xf32>
    %158 = arith.mulf %51, %157 : vector<8x1xf32>
    %159 = vector.broadcast %156 : f32 to vector<8x1xf32>
    %160 = arith.mulf %53, %159 : vector<8x1xf32>
    %161 = arith.addf %158, %160 : vector<8x1xf32>
    %c0_39 = arith.constant 0 : index
    %c125 = arith.constant 125 : index
    %162 = vector.load %arg9[%c0_39, %c125] : memref<8x512xf32, #tpu.memory_space<vmem>>, vector<8x256xf32>
    %163 = vector.broadcast %161 : vector<8x1xf32> to vector<8x256xf32>
    %164 = arith.mulf %163, %162 : vector<8x256xf32>
    %165 = arith.addf %154, %164 : vector<8x256xf32>
    %c28 = arith.constant 28 : index
    %166 = memref.load %arg6[%c28] : memref<98xf32, #tpu.memory_space<smem>>
    %c77_40 = arith.constant 77 : index
    %167 = memref.load %arg6[%c77_40] : memref<98xf32, #tpu.memory_space<smem>>
    %168 = vector.broadcast %166 : f32 to vector<8x1xf32>
    %169 = arith.mulf %51, %168 : vector<8x1xf32>
    %170 = vector.broadcast %167 : f32 to vector<8x1xf32>
    %171 = arith.mulf %53, %170 : vector<8x1xf32>
    %172 = arith.addf %169, %171 : vector<8x1xf32>
    %c0_41 = arith.constant 0 : index
    %c141 = arith.constant 141 : index
    %173 = vector.load %arg9[%c0_41, %c141] : memref<8x512xf32, #tpu.memory_space<vmem>>, vector<8x256xf32>
    %174 = vector.broadcast %172 : vector<8x1xf32> to vector<8x256xf32>
    %175 = arith.mulf %174, %173 : vector<8x256xf32>
    %176 = arith.addf %165, %175 : vector<8x256xf32>
    %c35 = arith.constant 35 : index
    %177 = memref.load %arg6[%c35] : memref<98xf32, #tpu.memory_space<smem>>
    %c84 = arith.constant 84 : index
    %178 = memref.load %arg6[%c84] : memref<98xf32, #tpu.memory_space<smem>>
    %179 = vector.broadcast %177 : f32 to vector<8x1xf32>
    %180 = arith.mulf %51, %179 : vector<8x1xf32>
    %181 = vector.broadcast %178 : f32 to vector<8x1xf32>
    %182 = arith.mulf %53, %181 : vector<8x1xf32>
    %183 = arith.addf %180, %182 : vector<8x1xf32>
    %c0_42 = arith.constant 0 : index
    %c157 = arith.constant 157 : index
    %184 = vector.load %arg9[%c0_42, %c157] : memref<8x512xf32, #tpu.memory_space<vmem>>, vector<8x256xf32>
    %185 = vector.broadcast %183 : vector<8x1xf32> to vector<8x256xf32>
    %186 = arith.mulf %185, %184 : vector<8x256xf32>
    %187 = arith.addf %176, %186 : vector<8x256xf32>
    %c42 = arith.constant 42 : index
    %188 = memref.load %arg6[%c42] : memref<98xf32, #tpu.memory_space<smem>>
    %c91 = arith.constant 91 : index
    %189 = memref.load %arg6[%c91] : memref<98xf32, #tpu.memory_space<smem>>
    %190 = vector.broadcast %188 : f32 to vector<8x1xf32>
    %191 = arith.mulf %51, %190 : vector<8x1xf32>
    %192 = vector.broadcast %189 : f32 to vector<8x1xf32>
    %193 = arith.mulf %53, %192 : vector<8x1xf32>
    %194 = arith.addf %191, %193 : vector<8x1xf32>
    %c0_43 = arith.constant 0 : index
    %c173 = arith.constant 173 : index
    %195 = vector.load %arg9[%c0_43, %c173] : memref<8x512xf32, #tpu.memory_space<vmem>>, vector<8x256xf32>
    %196 = vector.broadcast %194 : vector<8x1xf32> to vector<8x256xf32>
    %197 = arith.mulf %196, %195 : vector<8x256xf32>
    %198 = arith.addf %187, %197 : vector<8x256xf32>
    %199 = vector.broadcast %77 : vector<1x256xf32> to vector<8x256xf32>
    %200 = arith.mulf %199, %198 : vector<8x256xf32>
    %201 = arith.addf %120, %200 : vector<8x256xf32>
    %cst_44 = arith.constant 0.000000e+00 : f32
    %202 = vector.broadcast %cst_44 : f32 to vector<8x256xf32>
    %c1 = arith.constant 1 : index
    %203 = memref.load %arg6[%c1] : memref<98xf32, #tpu.memory_space<smem>>
    %c50 = arith.constant 50 : index
    %204 = memref.load %arg6[%c50] : memref<98xf32, #tpu.memory_space<smem>>
    %205 = vector.broadcast %203 : f32 to vector<8x1xf32>
    %206 = arith.mulf %51, %205 : vector<8x1xf32>
    %207 = vector.broadcast %204 : f32 to vector<8x1xf32>
    %208 = arith.mulf %53, %207 : vector<8x1xf32>
    %209 = arith.addf %206, %208 : vector<8x1xf32>
    %c0_45 = arith.constant 0 : index
    %c78 = arith.constant 78 : index
    %210 = vector.load %arg9[%c0_45, %c78] : memref<8x512xf32, #tpu.memory_space<vmem>>, vector<8x256xf32>
    %211 = vector.broadcast %209 : vector<8x1xf32> to vector<8x256xf32>
    %212 = arith.mulf %211, %210 : vector<8x256xf32>
    %213 = arith.addf %202, %212 : vector<8x256xf32>
    %c8 = arith.constant 8 : index
    %214 = memref.load %arg6[%c8] : memref<98xf32, #tpu.memory_space<smem>>
    %c57 = arith.constant 57 : index
    %215 = memref.load %arg6[%c57] : memref<98xf32, #tpu.memory_space<smem>>
    %216 = vector.broadcast %214 : f32 to vector<8x1xf32>
    %217 = arith.mulf %51, %216 : vector<8x1xf32>
    %218 = vector.broadcast %215 : f32 to vector<8x1xf32>
    %219 = arith.mulf %53, %218 : vector<8x1xf32>
    %220 = arith.addf %217, %219 : vector<8x1xf32>
    %c0_46 = arith.constant 0 : index
    %c94 = arith.constant 94 : index
    %221 = vector.load %arg9[%c0_46, %c94] : memref<8x512xf32, #tpu.memory_space<vmem>>, vector<8x256xf32>
    %222 = vector.broadcast %220 : vector<8x1xf32> to vector<8x256xf32>
    %223 = arith.mulf %222, %221 : vector<8x256xf32>
    %224 = arith.addf %213, %223 : vector<8x256xf32>
    %c15 = arith.constant 15 : index
    %225 = memref.load %arg6[%c15] : memref<98xf32, #tpu.memory_space<smem>>
    %c64 = arith.constant 64 : index
    %226 = memref.load %arg6[%c64] : memref<98xf32, #tpu.memory_space<smem>>
    %227 = vector.broadcast %225 : f32 to vector<8x1xf32>
    %228 = arith.mulf %51, %227 : vector<8x1xf32>
    %229 = vector.broadcast %226 : f32 to vector<8x1xf32>
    %230 = arith.mulf %53, %229 : vector<8x1xf32>
    %231 = arith.addf %228, %230 : vector<8x1xf32>
    %c0_47 = arith.constant 0 : index
    %c110 = arith.constant 110 : index
    %232 = vector.load %arg9[%c0_47, %c110] : memref<8x512xf32, #tpu.memory_space<vmem>>, vector<8x256xf32>
    %233 = vector.broadcast %231 : vector<8x1xf32> to vector<8x256xf32>
    %234 = arith.mulf %233, %232 : vector<8x256xf32>
    %235 = arith.addf %224, %234 : vector<8x256xf32>
    %c22 = arith.constant 22 : index
    %236 = memref.load %arg6[%c22] : memref<98xf32, #tpu.memory_space<smem>>
    %c71 = arith.constant 71 : index
    %237 = memref.load %arg6[%c71] : memref<98xf32, #tpu.memory_space<smem>>
    %238 = vector.broadcast %236 : f32 to vector<8x1xf32>
    %239 = arith.mulf %51, %238 : vector<8x1xf32>
    %240 = vector.broadcast %237 : f32 to vector<8x1xf32>
    %241 = arith.mulf %53, %240 : vector<8x1xf32>
    %242 = arith.addf %239, %241 : vector<8x1xf32>
    %c0_48 = arith.constant 0 : index
    %c126 = arith.constant 126 : index
    %243 = vector.load %arg9[%c0_48, %c126] : memref<8x512xf32, #tpu.memory_space<vmem>>, vector<8x256xf32>
    %244 = vector.broadcast %242 : vector<8x1xf32> to vector<8x256xf32>
    %245 = arith.mulf %244, %243 : vector<8x256xf32>
    %246 = arith.addf %235, %245 : vector<8x256xf32>
    %c29 = arith.constant 29 : index
    %247 = memref.load %arg6[%c29] : memref<98xf32, #tpu.memory_space<smem>>
    %c78_49 = arith.constant 78 : index
    %248 = memref.load %arg6[%c78_49] : memref<98xf32, #tpu.memory_space<smem>>
    %249 = vector.broadcast %247 : f32 to vector<8x1xf32>
    %250 = arith.mulf %51, %249 : vector<8x1xf32>
    %251 = vector.broadcast %248 : f32 to vector<8x1xf32>
    %252 = arith.mulf %53, %251 : vector<8x1xf32>
    %253 = arith.addf %250, %252 : vector<8x1xf32>
    %c0_50 = arith.constant 0 : index
    %c142 = arith.constant 142 : index
    %254 = vector.load %arg9[%c0_50, %c142] : memref<8x512xf32, #tpu.memory_space<vmem>>, vector<8x256xf32>
    %255 = vector.broadcast %253 : vector<8x1xf32> to vector<8x256xf32>
    %256 = arith.mulf %255, %254 : vector<8x256xf32>
    %257 = arith.addf %246, %256 : vector<8x256xf32>
    %c36 = arith.constant 36 : index
    %258 = memref.load %arg6[%c36] : memref<98xf32, #tpu.memory_space<smem>>
    %c85 = arith.constant 85 : index
    %259 = memref.load %arg6[%c85] : memref<98xf32, #tpu.memory_space<smem>>
    %260 = vector.broadcast %258 : f32 to vector<8x1xf32>
    %261 = arith.mulf %51, %260 : vector<8x1xf32>
    %262 = vector.broadcast %259 : f32 to vector<8x1xf32>
    %263 = arith.mulf %53, %262 : vector<8x1xf32>
    %264 = arith.addf %261, %263 : vector<8x1xf32>
    %c0_51 = arith.constant 0 : index
    %c158 = arith.constant 158 : index
    %265 = vector.load %arg9[%c0_51, %c158] : memref<8x512xf32, #tpu.memory_space<vmem>>, vector<8x256xf32>
    %266 = vector.broadcast %264 : vector<8x1xf32> to vector<8x256xf32>
    %267 = arith.mulf %266, %265 : vector<8x256xf32>
    %268 = arith.addf %257, %267 : vector<8x256xf32>
    %c43 = arith.constant 43 : index
    %269 = memref.load %arg6[%c43] : memref<98xf32, #tpu.memory_space<smem>>
    %c92 = arith.constant 92 : index
    %270 = memref.load %arg6[%c92] : memref<98xf32, #tpu.memory_space<smem>>
    %271 = vector.broadcast %269 : f32 to vector<8x1xf32>
    %272 = arith.mulf %51, %271 : vector<8x1xf32>
    %273 = vector.broadcast %270 : f32 to vector<8x1xf32>
    %274 = arith.mulf %53, %273 : vector<8x1xf32>
    %275 = arith.addf %272, %274 : vector<8x1xf32>
    %c0_52 = arith.constant 0 : index
    %c174 = arith.constant 174 : index
    %276 = vector.load %arg9[%c0_52, %c174] : memref<8x512xf32, #tpu.memory_space<vmem>>, vector<8x256xf32>
    %277 = vector.broadcast %275 : vector<8x1xf32> to vector<8x256xf32>
    %278 = arith.mulf %277, %276 : vector<8x256xf32>
    %279 = arith.addf %268, %278 : vector<8x256xf32>
    %280 = vector.broadcast %84 : vector<1x256xf32> to vector<8x256xf32>
    %281 = arith.mulf %280, %279 : vector<8x256xf32>
    %282 = arith.addf %201, %281 : vector<8x256xf32>
    %cst_53 = arith.constant 0.000000e+00 : f32
    %283 = vector.broadcast %cst_53 : f32 to vector<8x256xf32>
    %c2 = arith.constant 2 : index
    %284 = memref.load %arg6[%c2] : memref<98xf32, #tpu.memory_space<smem>>
    %c51 = arith.constant 51 : index
    %285 = memref.load %arg6[%c51] : memref<98xf32, #tpu.memory_space<smem>>
    %286 = vector.broadcast %284 : f32 to vector<8x1xf32>
    %287 = arith.mulf %51, %286 : vector<8x1xf32>
    %288 = vector.broadcast %285 : f32 to vector<8x1xf32>
    %289 = arith.mulf %53, %288 : vector<8x1xf32>
    %290 = arith.addf %287, %289 : vector<8x1xf32>
    %c0_54 = arith.constant 0 : index
    %c79 = arith.constant 79 : index
    %291 = vector.load %arg9[%c0_54, %c79] : memref<8x512xf32, #tpu.memory_space<vmem>>, vector<8x256xf32>
    %292 = vector.broadcast %290 : vector<8x1xf32> to vector<8x256xf32>
    %293 = arith.mulf %292, %291 : vector<8x256xf32>
    %294 = arith.addf %283, %293 : vector<8x256xf32>
    %c9 = arith.constant 9 : index
    %295 = memref.load %arg6[%c9] : memref<98xf32, #tpu.memory_space<smem>>
    %c58 = arith.constant 58 : index
    %296 = memref.load %arg6[%c58] : memref<98xf32, #tpu.memory_space<smem>>
    %297 = vector.broadcast %295 : f32 to vector<8x1xf32>
    %298 = arith.mulf %51, %297 : vector<8x1xf32>
    %299 = vector.broadcast %296 : f32 to vector<8x1xf32>
    %300 = arith.mulf %53, %299 : vector<8x1xf32>
    %301 = arith.addf %298, %300 : vector<8x1xf32>
    %c0_55 = arith.constant 0 : index
    %c95 = arith.constant 95 : index
    %302 = vector.load %arg9[%c0_55, %c95] : memref<8x512xf32, #tpu.memory_space<vmem>>, vector<8x256xf32>
    %303 = vector.broadcast %301 : vector<8x1xf32> to vector<8x256xf32>
    %304 = arith.mulf %303, %302 : vector<8x256xf32>
    %305 = arith.addf %294, %304 : vector<8x256xf32>
    %c16 = arith.constant 16 : index
    %306 = memref.load %arg6[%c16] : memref<98xf32, #tpu.memory_space<smem>>
    %c65 = arith.constant 65 : index
    %307 = memref.load %arg6[%c65] : memref<98xf32, #tpu.memory_space<smem>>
    %308 = vector.broadcast %306 : f32 to vector<8x1xf32>
    %309 = arith.mulf %51, %308 : vector<8x1xf32>
    %310 = vector.broadcast %307 : f32 to vector<8x1xf32>
    %311 = arith.mulf %53, %310 : vector<8x1xf32>
    %312 = arith.addf %309, %311 : vector<8x1xf32>
    %c0_56 = arith.constant 0 : index
    %c111 = arith.constant 111 : index
    %313 = vector.load %arg9[%c0_56, %c111] : memref<8x512xf32, #tpu.memory_space<vmem>>, vector<8x256xf32>
    %314 = vector.broadcast %312 : vector<8x1xf32> to vector<8x256xf32>
    %315 = arith.mulf %314, %313 : vector<8x256xf32>
    %316 = arith.addf %305, %315 : vector<8x256xf32>
    %c23 = arith.constant 23 : index
    %317 = memref.load %arg6[%c23] : memref<98xf32, #tpu.memory_space<smem>>
    %c72 = arith.constant 72 : index
    %318 = memref.load %arg6[%c72] : memref<98xf32, #tpu.memory_space<smem>>
    %319 = vector.broadcast %317 : f32 to vector<8x1xf32>
    %320 = arith.mulf %51, %319 : vector<8x1xf32>
    %321 = vector.broadcast %318 : f32 to vector<8x1xf32>
    %322 = arith.mulf %53, %321 : vector<8x1xf32>
    %323 = arith.addf %320, %322 : vector<8x1xf32>
    %c0_57 = arith.constant 0 : index
    %c127 = arith.constant 127 : index
    %324 = vector.load %arg9[%c0_57, %c127] : memref<8x512xf32, #tpu.memory_space<vmem>>, vector<8x256xf32>
    %325 = vector.broadcast %323 : vector<8x1xf32> to vector<8x256xf32>
    %326 = arith.mulf %325, %324 : vector<8x256xf32>
    %327 = arith.addf %316, %326 : vector<8x256xf32>
    %c30 = arith.constant 30 : index
    %328 = memref.load %arg6[%c30] : memref<98xf32, #tpu.memory_space<smem>>
    %c79_58 = arith.constant 79 : index
    %329 = memref.load %arg6[%c79_58] : memref<98xf32, #tpu.memory_space<smem>>
    %330 = vector.broadcast %328 : f32 to vector<8x1xf32>
    %331 = arith.mulf %51, %330 : vector<8x1xf32>
    %332 = vector.broadcast %329 : f32 to vector<8x1xf32>
    %333 = arith.mulf %53, %332 : vector<8x1xf32>
    %334 = arith.addf %331, %333 : vector<8x1xf32>
    %c0_59 = arith.constant 0 : index
    %c143 = arith.constant 143 : index
    %335 = vector.load %arg9[%c0_59, %c143] : memref<8x512xf32, #tpu.memory_space<vmem>>, vector<8x256xf32>
    %336 = vector.broadcast %334 : vector<8x1xf32> to vector<8x256xf32>
    %337 = arith.mulf %336, %335 : vector<8x256xf32>
    %338 = arith.addf %327, %337 : vector<8x256xf32>
    %c37 = arith.constant 37 : index
    %339 = memref.load %arg6[%c37] : memref<98xf32, #tpu.memory_space<smem>>
    %c86 = arith.constant 86 : index
    %340 = memref.load %arg6[%c86] : memref<98xf32, #tpu.memory_space<smem>>
    %341 = vector.broadcast %339 : f32 to vector<8x1xf32>
    %342 = arith.mulf %51, %341 : vector<8x1xf32>
    %343 = vector.broadcast %340 : f32 to vector<8x1xf32>
    %344 = arith.mulf %53, %343 : vector<8x1xf32>
    %345 = arith.addf %342, %344 : vector<8x1xf32>
    %c0_60 = arith.constant 0 : index
    %c159 = arith.constant 159 : index
    %346 = vector.load %arg9[%c0_60, %c159] : memref<8x512xf32, #tpu.memory_space<vmem>>, vector<8x256xf32>
    %347 = vector.broadcast %345 : vector<8x1xf32> to vector<8x256xf32>
    %348 = arith.mulf %347, %346 : vector<8x256xf32>
    %349 = arith.addf %338, %348 : vector<8x256xf32>
    %c44 = arith.constant 44 : index
    %350 = memref.load %arg6[%c44] : memref<98xf32, #tpu.memory_space<smem>>
    %c93_61 = arith.constant 93 : index
    %351 = memref.load %arg6[%c93_61] : memref<98xf32, #tpu.memory_space<smem>>
    %352 = vector.broadcast %350 : f32 to vector<8x1xf32>
    %353 = arith.mulf %51, %352 : vector<8x1xf32>
    %354 = vector.broadcast %351 : f32 to vector<8x1xf32>
    %355 = arith.mulf %53, %354 : vector<8x1xf32>
    %356 = arith.addf %353, %355 : vector<8x1xf32>
    %c0_62 = arith.constant 0 : index
    %c175 = arith.constant 175 : index
    %357 = vector.load %arg9[%c0_62, %c175] : memref<8x512xf32, #tpu.memory_space<vmem>>, vector<8x256xf32>
    %358 = vector.broadcast %356 : vector<8x1xf32> to vector<8x256xf32>
    %359 = arith.mulf %358, %357 : vector<8x256xf32>
    %360 = arith.addf %349, %359 : vector<8x256xf32>
    %361 = vector.broadcast %91 : vector<1x256xf32> to vector<8x256xf32>
    %362 = arith.mulf %361, %360 : vector<8x256xf32>
    %363 = arith.addf %282, %362 : vector<8x256xf32>
    %cst_63 = arith.constant 0.000000e+00 : f32
    %364 = vector.broadcast %cst_63 : f32 to vector<8x256xf32>
    %c3 = arith.constant 3 : index
    %365 = memref.load %arg6[%c3] : memref<98xf32, #tpu.memory_space<smem>>
    %c52 = arith.constant 52 : index
    %366 = memref.load %arg6[%c52] : memref<98xf32, #tpu.memory_space<smem>>
    %367 = vector.broadcast %365 : f32 to vector<8x1xf32>
    %368 = arith.mulf %51, %367 : vector<8x1xf32>
    %369 = vector.broadcast %366 : f32 to vector<8x1xf32>
    %370 = arith.mulf %53, %369 : vector<8x1xf32>
    %371 = arith.addf %368, %370 : vector<8x1xf32>
    %c0_64 = arith.constant 0 : index
    %c80 = arith.constant 80 : index
    %372 = vector.load %arg9[%c0_64, %c80] : memref<8x512xf32, #tpu.memory_space<vmem>>, vector<8x256xf32>
    %373 = vector.broadcast %371 : vector<8x1xf32> to vector<8x256xf32>
    %374 = arith.mulf %373, %372 : vector<8x256xf32>
    %375 = arith.addf %364, %374 : vector<8x256xf32>
    %c10 = arith.constant 10 : index
    %376 = memref.load %arg6[%c10] : memref<98xf32, #tpu.memory_space<smem>>
    %c59 = arith.constant 59 : index
    %377 = memref.load %arg6[%c59] : memref<98xf32, #tpu.memory_space<smem>>
    %378 = vector.broadcast %376 : f32 to vector<8x1xf32>
    %379 = arith.mulf %51, %378 : vector<8x1xf32>
    %380 = vector.broadcast %377 : f32 to vector<8x1xf32>
    %381 = arith.mulf %53, %380 : vector<8x1xf32>
    %382 = arith.addf %379, %381 : vector<8x1xf32>
    %c0_65 = arith.constant 0 : index
    %c96 = arith.constant 96 : index
    %383 = vector.load %arg9[%c0_65, %c96] : memref<8x512xf32, #tpu.memory_space<vmem>>, vector<8x256xf32>
    %384 = vector.broadcast %382 : vector<8x1xf32> to vector<8x256xf32>
    %385 = arith.mulf %384, %383 : vector<8x256xf32>
    %386 = arith.addf %375, %385 : vector<8x256xf32>
    %c17 = arith.constant 17 : index
    %387 = memref.load %arg6[%c17] : memref<98xf32, #tpu.memory_space<smem>>
    %c66 = arith.constant 66 : index
    %388 = memref.load %arg6[%c66] : memref<98xf32, #tpu.memory_space<smem>>
    %389 = vector.broadcast %387 : f32 to vector<8x1xf32>
    %390 = arith.mulf %51, %389 : vector<8x1xf32>
    %391 = vector.broadcast %388 : f32 to vector<8x1xf32>
    %392 = arith.mulf %53, %391 : vector<8x1xf32>
    %393 = arith.addf %390, %392 : vector<8x1xf32>
    %c0_66 = arith.constant 0 : index
    %c112 = arith.constant 112 : index
    %394 = vector.load %arg9[%c0_66, %c112] : memref<8x512xf32, #tpu.memory_space<vmem>>, vector<8x256xf32>
    %395 = vector.broadcast %393 : vector<8x1xf32> to vector<8x256xf32>
    %396 = arith.mulf %395, %394 : vector<8x256xf32>
    %397 = arith.addf %386, %396 : vector<8x256xf32>
    %c24 = arith.constant 24 : index
    %398 = memref.load %arg6[%c24] : memref<98xf32, #tpu.memory_space<smem>>
    %c73 = arith.constant 73 : index
    %399 = memref.load %arg6[%c73] : memref<98xf32, #tpu.memory_space<smem>>
    %400 = vector.broadcast %398 : f32 to vector<8x1xf32>
    %401 = arith.mulf %51, %400 : vector<8x1xf32>
    %402 = vector.broadcast %399 : f32 to vector<8x1xf32>
    %403 = arith.mulf %53, %402 : vector<8x1xf32>
    %404 = arith.addf %401, %403 : vector<8x1xf32>
    %c0_67 = arith.constant 0 : index
    %c128_68 = arith.constant 128 : index
    %405 = vector.load %arg9[%c0_67, %c128_68] : memref<8x512xf32, #tpu.memory_space<vmem>>, vector<8x256xf32>
    %406 = vector.broadcast %404 : vector<8x1xf32> to vector<8x256xf32>
    %407 = arith.mulf %406, %405 : vector<8x256xf32>
    %408 = arith.addf %397, %407 : vector<8x256xf32>
    %c31 = arith.constant 31 : index
    %409 = memref.load %arg6[%c31] : memref<98xf32, #tpu.memory_space<smem>>
    %c80_69 = arith.constant 80 : index
    %410 = memref.load %arg6[%c80_69] : memref<98xf32, #tpu.memory_space<smem>>
    %411 = vector.broadcast %409 : f32 to vector<8x1xf32>
    %412 = arith.mulf %51, %411 : vector<8x1xf32>
    %413 = vector.broadcast %410 : f32 to vector<8x1xf32>
    %414 = arith.mulf %53, %413 : vector<8x1xf32>
    %415 = arith.addf %412, %414 : vector<8x1xf32>
    %c0_70 = arith.constant 0 : index
    %c144 = arith.constant 144 : index
    %416 = vector.load %arg9[%c0_70, %c144] : memref<8x512xf32, #tpu.memory_space<vmem>>, vector<8x256xf32>
    %417 = vector.broadcast %415 : vector<8x1xf32> to vector<8x256xf32>
    %418 = arith.mulf %417, %416 : vector<8x256xf32>
    %419 = arith.addf %408, %418 : vector<8x256xf32>
    %c38 = arith.constant 38 : index
    %420 = memref.load %arg6[%c38] : memref<98xf32, #tpu.memory_space<smem>>
    %c87 = arith.constant 87 : index
    %421 = memref.load %arg6[%c87] : memref<98xf32, #tpu.memory_space<smem>>
    %422 = vector.broadcast %420 : f32 to vector<8x1xf32>
    %423 = arith.mulf %51, %422 : vector<8x1xf32>
    %424 = vector.broadcast %421 : f32 to vector<8x1xf32>
    %425 = arith.mulf %53, %424 : vector<8x1xf32>
    %426 = arith.addf %423, %425 : vector<8x1xf32>
    %c0_71 = arith.constant 0 : index
    %c160 = arith.constant 160 : index
    %427 = vector.load %arg9[%c0_71, %c160] : memref<8x512xf32, #tpu.memory_space<vmem>>, vector<8x256xf32>
    %428 = vector.broadcast %426 : vector<8x1xf32> to vector<8x256xf32>
    %429 = arith.mulf %428, %427 : vector<8x256xf32>
    %430 = arith.addf %419, %429 : vector<8x256xf32>
    %c45 = arith.constant 45 : index
    %431 = memref.load %arg6[%c45] : memref<98xf32, #tpu.memory_space<smem>>
    %c94_72 = arith.constant 94 : index
    %432 = memref.load %arg6[%c94_72] : memref<98xf32, #tpu.memory_space<smem>>
    %433 = vector.broadcast %431 : f32 to vector<8x1xf32>
    %434 = arith.mulf %51, %433 : vector<8x1xf32>
    %435 = vector.broadcast %432 : f32 to vector<8x1xf32>
    %436 = arith.mulf %53, %435 : vector<8x1xf32>
    %437 = arith.addf %434, %436 : vector<8x1xf32>
    %c0_73 = arith.constant 0 : index
    %c176 = arith.constant 176 : index
    %438 = vector.load %arg9[%c0_73, %c176] : memref<8x512xf32, #tpu.memory_space<vmem>>, vector<8x256xf32>
    %439 = vector.broadcast %437 : vector<8x1xf32> to vector<8x256xf32>
    %440 = arith.mulf %439, %438 : vector<8x256xf32>
    %441 = arith.addf %430, %440 : vector<8x256xf32>
    %442 = vector.broadcast %98 : vector<1x256xf32> to vector<8x256xf32>
    %443 = arith.mulf %442, %441 : vector<8x256xf32>
    %444 = arith.addf %363, %443 : vector<8x256xf32>
    %cst_74 = arith.constant 0.000000e+00 : f32
    %445 = vector.broadcast %cst_74 : f32 to vector<8x256xf32>
    %c4_75 = arith.constant 4 : index
    %446 = memref.load %arg6[%c4_75] : memref<98xf32, #tpu.memory_space<smem>>
    %c53 = arith.constant 53 : index
    %447 = memref.load %arg6[%c53] : memref<98xf32, #tpu.memory_space<smem>>
    %448 = vector.broadcast %446 : f32 to vector<8x1xf32>
    %449 = arith.mulf %51, %448 : vector<8x1xf32>
    %450 = vector.broadcast %447 : f32 to vector<8x1xf32>
    %451 = arith.mulf %53, %450 : vector<8x1xf32>
    %452 = arith.addf %449, %451 : vector<8x1xf32>
    %c0_76 = arith.constant 0 : index
    %c81 = arith.constant 81 : index
    %453 = vector.load %arg9[%c0_76, %c81] : memref<8x512xf32, #tpu.memory_space<vmem>>, vector<8x256xf32>
    %454 = vector.broadcast %452 : vector<8x1xf32> to vector<8x256xf32>
    %455 = arith.mulf %454, %453 : vector<8x256xf32>
    %456 = arith.addf %445, %455 : vector<8x256xf32>
    %c11 = arith.constant 11 : index
    %457 = memref.load %arg6[%c11] : memref<98xf32, #tpu.memory_space<smem>>
    %c60 = arith.constant 60 : index
    %458 = memref.load %arg6[%c60] : memref<98xf32, #tpu.memory_space<smem>>
    %459 = vector.broadcast %457 : f32 to vector<8x1xf32>
    %460 = arith.mulf %51, %459 : vector<8x1xf32>
    %461 = vector.broadcast %458 : f32 to vector<8x1xf32>
    %462 = arith.mulf %53, %461 : vector<8x1xf32>
    %463 = arith.addf %460, %462 : vector<8x1xf32>
    %c0_77 = arith.constant 0 : index
    %c97 = arith.constant 97 : index
    %464 = vector.load %arg9[%c0_77, %c97] : memref<8x512xf32, #tpu.memory_space<vmem>>, vector<8x256xf32>
    %465 = vector.broadcast %463 : vector<8x1xf32> to vector<8x256xf32>
    %466 = arith.mulf %465, %464 : vector<8x256xf32>
    %467 = arith.addf %456, %466 : vector<8x256xf32>
    %c18 = arith.constant 18 : index
    %468 = memref.load %arg6[%c18] : memref<98xf32, #tpu.memory_space<smem>>
    %c67 = arith.constant 67 : index
    %469 = memref.load %arg6[%c67] : memref<98xf32, #tpu.memory_space<smem>>
    %470 = vector.broadcast %468 : f32 to vector<8x1xf32>
    %471 = arith.mulf %51, %470 : vector<8x1xf32>
    %472 = vector.broadcast %469 : f32 to vector<8x1xf32>
    %473 = arith.mulf %53, %472 : vector<8x1xf32>
    %474 = arith.addf %471, %473 : vector<8x1xf32>
    %c0_78 = arith.constant 0 : index
    %c113 = arith.constant 113 : index
    %475 = vector.load %arg9[%c0_78, %c113] : memref<8x512xf32, #tpu.memory_space<vmem>>, vector<8x256xf32>
    %476 = vector.broadcast %474 : vector<8x1xf32> to vector<8x256xf32>
    %477 = arith.mulf %476, %475 : vector<8x256xf32>
    %478 = arith.addf %467, %477 : vector<8x256xf32>
    %c25 = arith.constant 25 : index
    %479 = memref.load %arg6[%c25] : memref<98xf32, #tpu.memory_space<smem>>
    %c74 = arith.constant 74 : index
    %480 = memref.load %arg6[%c74] : memref<98xf32, #tpu.memory_space<smem>>
    %481 = vector.broadcast %479 : f32 to vector<8x1xf32>
    %482 = arith.mulf %51, %481 : vector<8x1xf32>
    %483 = vector.broadcast %480 : f32 to vector<8x1xf32>
    %484 = arith.mulf %53, %483 : vector<8x1xf32>
    %485 = arith.addf %482, %484 : vector<8x1xf32>
    %c0_79 = arith.constant 0 : index
    %c129 = arith.constant 129 : index
    %486 = vector.load %arg9[%c0_79, %c129] : memref<8x512xf32, #tpu.memory_space<vmem>>, vector<8x256xf32>
    %487 = vector.broadcast %485 : vector<8x1xf32> to vector<8x256xf32>
    %488 = arith.mulf %487, %486 : vector<8x256xf32>
    %489 = arith.addf %478, %488 : vector<8x256xf32>
    %c32 = arith.constant 32 : index
    %490 = memref.load %arg6[%c32] : memref<98xf32, #tpu.memory_space<smem>>
    %c81_80 = arith.constant 81 : index
    %491 = memref.load %arg6[%c81_80] : memref<98xf32, #tpu.memory_space<smem>>
    %492 = vector.broadcast %490 : f32 to vector<8x1xf32>
    %493 = arith.mulf %51, %492 : vector<8x1xf32>
    %494 = vector.broadcast %491 : f32 to vector<8x1xf32>
    %495 = arith.mulf %53, %494 : vector<8x1xf32>
    %496 = arith.addf %493, %495 : vector<8x1xf32>
    %c0_81 = arith.constant 0 : index
    %c145 = arith.constant 145 : index
    %497 = vector.load %arg9[%c0_81, %c145] : memref<8x512xf32, #tpu.memory_space<vmem>>, vector<8x256xf32>
    %498 = vector.broadcast %496 : vector<8x1xf32> to vector<8x256xf32>
    %499 = arith.mulf %498, %497 : vector<8x256xf32>
    %500 = arith.addf %489, %499 : vector<8x256xf32>
    %c39 = arith.constant 39 : index
    %501 = memref.load %arg6[%c39] : memref<98xf32, #tpu.memory_space<smem>>
    %c88 = arith.constant 88 : index
    %502 = memref.load %arg6[%c88] : memref<98xf32, #tpu.memory_space<smem>>
    %503 = vector.broadcast %501 : f32 to vector<8x1xf32>
    %504 = arith.mulf %51, %503 : vector<8x1xf32>
    %505 = vector.broadcast %502 : f32 to vector<8x1xf32>
    %506 = arith.mulf %53, %505 : vector<8x1xf32>
    %507 = arith.addf %504, %506 : vector<8x1xf32>
    %c0_82 = arith.constant 0 : index
    %c161 = arith.constant 161 : index
    %508 = vector.load %arg9[%c0_82, %c161] : memref<8x512xf32, #tpu.memory_space<vmem>>, vector<8x256xf32>
    %509 = vector.broadcast %507 : vector<8x1xf32> to vector<8x256xf32>
    %510 = arith.mulf %509, %508 : vector<8x256xf32>
    %511 = arith.addf %500, %510 : vector<8x256xf32>
    %c46 = arith.constant 46 : index
    %512 = memref.load %arg6[%c46] : memref<98xf32, #tpu.memory_space<smem>>
    %c95_83 = arith.constant 95 : index
    %513 = memref.load %arg6[%c95_83] : memref<98xf32, #tpu.memory_space<smem>>
    %514 = vector.broadcast %512 : f32 to vector<8x1xf32>
    %515 = arith.mulf %51, %514 : vector<8x1xf32>
    %516 = vector.broadcast %513 : f32 to vector<8x1xf32>
    %517 = arith.mulf %53, %516 : vector<8x1xf32>
    %518 = arith.addf %515, %517 : vector<8x1xf32>
    %c0_84 = arith.constant 0 : index
    %c177 = arith.constant 177 : index
    %519 = vector.load %arg9[%c0_84, %c177] : memref<8x512xf32, #tpu.memory_space<vmem>>, vector<8x256xf32>
    %520 = vector.broadcast %518 : vector<8x1xf32> to vector<8x256xf32>
    %521 = arith.mulf %520, %519 : vector<8x256xf32>
    %522 = arith.addf %511, %521 : vector<8x256xf32>
    %523 = vector.broadcast %105 : vector<1x256xf32> to vector<8x256xf32>
    %524 = arith.mulf %523, %522 : vector<8x256xf32>
    %525 = arith.addf %444, %524 : vector<8x256xf32>
    %cst_85 = arith.constant 0.000000e+00 : f32
    %526 = vector.broadcast %cst_85 : f32 to vector<8x256xf32>
    %c5 = arith.constant 5 : index
    %527 = memref.load %arg6[%c5] : memref<98xf32, #tpu.memory_space<smem>>
    %c54 = arith.constant 54 : index
    %528 = memref.load %arg6[%c54] : memref<98xf32, #tpu.memory_space<smem>>
    %529 = vector.broadcast %527 : f32 to vector<8x1xf32>
    %530 = arith.mulf %51, %529 : vector<8x1xf32>
    %531 = vector.broadcast %528 : f32 to vector<8x1xf32>
    %532 = arith.mulf %53, %531 : vector<8x1xf32>
    %533 = arith.addf %530, %532 : vector<8x1xf32>
    %c0_86 = arith.constant 0 : index
    %c82 = arith.constant 82 : index
    %534 = vector.load %arg9[%c0_86, %c82] : memref<8x512xf32, #tpu.memory_space<vmem>>, vector<8x256xf32>
    %535 = vector.broadcast %533 : vector<8x1xf32> to vector<8x256xf32>
    %536 = arith.mulf %535, %534 : vector<8x256xf32>
    %537 = arith.addf %526, %536 : vector<8x256xf32>
    %c12 = arith.constant 12 : index
    %538 = memref.load %arg6[%c12] : memref<98xf32, #tpu.memory_space<smem>>
    %c61 = arith.constant 61 : index
    %539 = memref.load %arg6[%c61] : memref<98xf32, #tpu.memory_space<smem>>
    %540 = vector.broadcast %538 : f32 to vector<8x1xf32>
    %541 = arith.mulf %51, %540 : vector<8x1xf32>
    %542 = vector.broadcast %539 : f32 to vector<8x1xf32>
    %543 = arith.mulf %53, %542 : vector<8x1xf32>
    %544 = arith.addf %541, %543 : vector<8x1xf32>
    %c0_87 = arith.constant 0 : index
    %c98 = arith.constant 98 : index
    %545 = vector.load %arg9[%c0_87, %c98] : memref<8x512xf32, #tpu.memory_space<vmem>>, vector<8x256xf32>
    %546 = vector.broadcast %544 : vector<8x1xf32> to vector<8x256xf32>
    %547 = arith.mulf %546, %545 : vector<8x256xf32>
    %548 = arith.addf %537, %547 : vector<8x256xf32>
    %c19 = arith.constant 19 : index
    %549 = memref.load %arg6[%c19] : memref<98xf32, #tpu.memory_space<smem>>
    %c68 = arith.constant 68 : index
    %550 = memref.load %arg6[%c68] : memref<98xf32, #tpu.memory_space<smem>>
    %551 = vector.broadcast %549 : f32 to vector<8x1xf32>
    %552 = arith.mulf %51, %551 : vector<8x1xf32>
    %553 = vector.broadcast %550 : f32 to vector<8x1xf32>
    %554 = arith.mulf %53, %553 : vector<8x1xf32>
    %555 = arith.addf %552, %554 : vector<8x1xf32>
    %c0_88 = arith.constant 0 : index
    %c114 = arith.constant 114 : index
    %556 = vector.load %arg9[%c0_88, %c114] : memref<8x512xf32, #tpu.memory_space<vmem>>, vector<8x256xf32>
    %557 = vector.broadcast %555 : vector<8x1xf32> to vector<8x256xf32>
    %558 = arith.mulf %557, %556 : vector<8x256xf32>
    %559 = arith.addf %548, %558 : vector<8x256xf32>
    %c26 = arith.constant 26 : index
    %560 = memref.load %arg6[%c26] : memref<98xf32, #tpu.memory_space<smem>>
    %c75 = arith.constant 75 : index
    %561 = memref.load %arg6[%c75] : memref<98xf32, #tpu.memory_space<smem>>
    %562 = vector.broadcast %560 : f32 to vector<8x1xf32>
    %563 = arith.mulf %51, %562 : vector<8x1xf32>
    %564 = vector.broadcast %561 : f32 to vector<8x1xf32>
    %565 = arith.mulf %53, %564 : vector<8x1xf32>
    %566 = arith.addf %563, %565 : vector<8x1xf32>
    %c0_89 = arith.constant 0 : index
    %c130 = arith.constant 130 : index
    %567 = vector.load %arg9[%c0_89, %c130] : memref<8x512xf32, #tpu.memory_space<vmem>>, vector<8x256xf32>
    %568 = vector.broadcast %566 : vector<8x1xf32> to vector<8x256xf32>
    %569 = arith.mulf %568, %567 : vector<8x256xf32>
    %570 = arith.addf %559, %569 : vector<8x256xf32>
    %c33 = arith.constant 33 : index
    %571 = memref.load %arg6[%c33] : memref<98xf32, #tpu.memory_space<smem>>
    %c82_90 = arith.constant 82 : index
    %572 = memref.load %arg6[%c82_90] : memref<98xf32, #tpu.memory_space<smem>>
    %573 = vector.broadcast %571 : f32 to vector<8x1xf32>
    %574 = arith.mulf %51, %573 : vector<8x1xf32>
    %575 = vector.broadcast %572 : f32 to vector<8x1xf32>
    %576 = arith.mulf %53, %575 : vector<8x1xf32>
    %577 = arith.addf %574, %576 : vector<8x1xf32>
    %c0_91 = arith.constant 0 : index
    %c146 = arith.constant 146 : index
    %578 = vector.load %arg9[%c0_91, %c146] : memref<8x512xf32, #tpu.memory_space<vmem>>, vector<8x256xf32>
    %579 = vector.broadcast %577 : vector<8x1xf32> to vector<8x256xf32>
    %580 = arith.mulf %579, %578 : vector<8x256xf32>
    %581 = arith.addf %570, %580 : vector<8x256xf32>
    %c40 = arith.constant 40 : index
    %582 = memref.load %arg6[%c40] : memref<98xf32, #tpu.memory_space<smem>>
    %c89 = arith.constant 89 : index
    %583 = memref.load %arg6[%c89] : memref<98xf32, #tpu.memory_space<smem>>
    %584 = vector.broadcast %582 : f32 to vector<8x1xf32>
    %585 = arith.mulf %51, %584 : vector<8x1xf32>
    %586 = vector.broadcast %583 : f32 to vector<8x1xf32>
    %587 = arith.mulf %53, %586 : vector<8x1xf32>
    %588 = arith.addf %585, %587 : vector<8x1xf32>
    %c0_92 = arith.constant 0 : index
    %c162 = arith.constant 162 : index
    %589 = vector.load %arg9[%c0_92, %c162] : memref<8x512xf32, #tpu.memory_space<vmem>>, vector<8x256xf32>
    %590 = vector.broadcast %588 : vector<8x1xf32> to vector<8x256xf32>
    %591 = arith.mulf %590, %589 : vector<8x256xf32>
    %592 = arith.addf %581, %591 : vector<8x256xf32>
    %c47 = arith.constant 47 : index
    %593 = memref.load %arg6[%c47] : memref<98xf32, #tpu.memory_space<smem>>
    %c96_93 = arith.constant 96 : index
    %594 = memref.load %arg6[%c96_93] : memref<98xf32, #tpu.memory_space<smem>>
    %595 = vector.broadcast %593 : f32 to vector<8x1xf32>
    %596 = arith.mulf %51, %595 : vector<8x1xf32>
    %597 = vector.broadcast %594 : f32 to vector<8x1xf32>
    %598 = arith.mulf %53, %597 : vector<8x1xf32>
    %599 = arith.addf %596, %598 : vector<8x1xf32>
    %c0_94 = arith.constant 0 : index
    %c178 = arith.constant 178 : index
    %600 = vector.load %arg9[%c0_94, %c178] : memref<8x512xf32, #tpu.memory_space<vmem>>, vector<8x256xf32>
    %601 = vector.broadcast %599 : vector<8x1xf32> to vector<8x256xf32>
    %602 = arith.mulf %601, %600 : vector<8x256xf32>
    %603 = arith.addf %592, %602 : vector<8x256xf32>
    %604 = vector.broadcast %112 : vector<1x256xf32> to vector<8x256xf32>
    %605 = arith.mulf %604, %603 : vector<8x256xf32>
    %606 = arith.addf %525, %605 : vector<8x256xf32>
    %cst_95 = arith.constant 0.000000e+00 : f32
    %607 = vector.broadcast %cst_95 : f32 to vector<8x256xf32>
    %c6 = arith.constant 6 : index
    %608 = memref.load %arg6[%c6] : memref<98xf32, #tpu.memory_space<smem>>
    %c55 = arith.constant 55 : index
    %609 = memref.load %arg6[%c55] : memref<98xf32, #tpu.memory_space<smem>>
    %610 = vector.broadcast %608 : f32 to vector<8x1xf32>
    %611 = arith.mulf %51, %610 : vector<8x1xf32>
    %612 = vector.broadcast %609 : f32 to vector<8x1xf32>
    %613 = arith.mulf %53, %612 : vector<8x1xf32>
    %614 = arith.addf %611, %613 : vector<8x1xf32>
    %c0_96 = arith.constant 0 : index
    %c83 = arith.constant 83 : index
    %615 = vector.load %arg9[%c0_96, %c83] : memref<8x512xf32, #tpu.memory_space<vmem>>, vector<8x256xf32>
    %616 = vector.broadcast %614 : vector<8x1xf32> to vector<8x256xf32>
    %617 = arith.mulf %616, %615 : vector<8x256xf32>
    %618 = arith.addf %607, %617 : vector<8x256xf32>
    %c13 = arith.constant 13 : index
    %619 = memref.load %arg6[%c13] : memref<98xf32, #tpu.memory_space<smem>>
    %c62 = arith.constant 62 : index
    %620 = memref.load %arg6[%c62] : memref<98xf32, #tpu.memory_space<smem>>
    %621 = vector.broadcast %619 : f32 to vector<8x1xf32>
    %622 = arith.mulf %51, %621 : vector<8x1xf32>
    %623 = vector.broadcast %620 : f32 to vector<8x1xf32>
    %624 = arith.mulf %53, %623 : vector<8x1xf32>
    %625 = arith.addf %622, %624 : vector<8x1xf32>
    %c0_97 = arith.constant 0 : index
    %c99 = arith.constant 99 : index
    %626 = vector.load %arg9[%c0_97, %c99] : memref<8x512xf32, #tpu.memory_space<vmem>>, vector<8x256xf32>
    %627 = vector.broadcast %625 : vector<8x1xf32> to vector<8x256xf32>
    %628 = arith.mulf %627, %626 : vector<8x256xf32>
    %629 = arith.addf %618, %628 : vector<8x256xf32>
    %c20 = arith.constant 20 : index
    %630 = memref.load %arg6[%c20] : memref<98xf32, #tpu.memory_space<smem>>
    %c69 = arith.constant 69 : index
    %631 = memref.load %arg6[%c69] : memref<98xf32, #tpu.memory_space<smem>>
    %632 = vector.broadcast %630 : f32 to vector<8x1xf32>
    %633 = arith.mulf %51, %632 : vector<8x1xf32>
    %634 = vector.broadcast %631 : f32 to vector<8x1xf32>
    %635 = arith.mulf %53, %634 : vector<8x1xf32>
    %636 = arith.addf %633, %635 : vector<8x1xf32>
    %c0_98 = arith.constant 0 : index
    %c115 = arith.constant 115 : index
    %637 = vector.load %arg9[%c0_98, %c115] : memref<8x512xf32, #tpu.memory_space<vmem>>, vector<8x256xf32>
    %638 = vector.broadcast %636 : vector<8x1xf32> to vector<8x256xf32>
    %639 = arith.mulf %638, %637 : vector<8x256xf32>
    %640 = arith.addf %629, %639 : vector<8x256xf32>
    %c27 = arith.constant 27 : index
    %641 = memref.load %arg6[%c27] : memref<98xf32, #tpu.memory_space<smem>>
    %c76 = arith.constant 76 : index
    %642 = memref.load %arg6[%c76] : memref<98xf32, #tpu.memory_space<smem>>
    %643 = vector.broadcast %641 : f32 to vector<8x1xf32>
    %644 = arith.mulf %51, %643 : vector<8x1xf32>
    %645 = vector.broadcast %642 : f32 to vector<8x1xf32>
    %646 = arith.mulf %53, %645 : vector<8x1xf32>
    %647 = arith.addf %644, %646 : vector<8x1xf32>
    %c0_99 = arith.constant 0 : index
    %c131 = arith.constant 131 : index
    %648 = vector.load %arg9[%c0_99, %c131] : memref<8x512xf32, #tpu.memory_space<vmem>>, vector<8x256xf32>
    %649 = vector.broadcast %647 : vector<8x1xf32> to vector<8x256xf32>
    %650 = arith.mulf %649, %648 : vector<8x256xf32>
    %651 = arith.addf %640, %650 : vector<8x256xf32>
    %c34 = arith.constant 34 : index
    %652 = memref.load %arg6[%c34] : memref<98xf32, #tpu.memory_space<smem>>
    %c83_100 = arith.constant 83 : index
    %653 = memref.load %arg6[%c83_100] : memref<98xf32, #tpu.memory_space<smem>>
    %654 = vector.broadcast %652 : f32 to vector<8x1xf32>
    %655 = arith.mulf %51, %654 : vector<8x1xf32>
    %656 = vector.broadcast %653 : f32 to vector<8x1xf32>
    %657 = arith.mulf %53, %656 : vector<8x1xf32>
    %658 = arith.addf %655, %657 : vector<8x1xf32>
    %c0_101 = arith.constant 0 : index
    %c147 = arith.constant 147 : index
    %659 = vector.load %arg9[%c0_101, %c147] : memref<8x512xf32, #tpu.memory_space<vmem>>, vector<8x256xf32>
    %660 = vector.broadcast %658 : vector<8x1xf32> to vector<8x256xf32>
    %661 = arith.mulf %660, %659 : vector<8x256xf32>
    %662 = arith.addf %651, %661 : vector<8x256xf32>
    %c41 = arith.constant 41 : index
    %663 = memref.load %arg6[%c41] : memref<98xf32, #tpu.memory_space<smem>>
    %c90 = arith.constant 90 : index
    %664 = memref.load %arg6[%c90] : memref<98xf32, #tpu.memory_space<smem>>
    %665 = vector.broadcast %663 : f32 to vector<8x1xf32>
    %666 = arith.mulf %51, %665 : vector<8x1xf32>
    %667 = vector.broadcast %664 : f32 to vector<8x1xf32>
    %668 = arith.mulf %53, %667 : vector<8x1xf32>
    %669 = arith.addf %666, %668 : vector<8x1xf32>
    %c0_102 = arith.constant 0 : index
    %c163 = arith.constant 163 : index
    %670 = vector.load %arg9[%c0_102, %c163] : memref<8x512xf32, #tpu.memory_space<vmem>>, vector<8x256xf32>
    %671 = vector.broadcast %669 : vector<8x1xf32> to vector<8x256xf32>
    %672 = arith.mulf %671, %670 : vector<8x256xf32>
    %673 = arith.addf %662, %672 : vector<8x256xf32>
    %c48 = arith.constant 48 : index
    %674 = memref.load %arg6[%c48] : memref<98xf32, #tpu.memory_space<smem>>
    %c97_103 = arith.constant 97 : index
    %675 = memref.load %arg6[%c97_103] : memref<98xf32, #tpu.memory_space<smem>>
    %676 = vector.broadcast %674 : f32 to vector<8x1xf32>
    %677 = arith.mulf %51, %676 : vector<8x1xf32>
    %678 = vector.broadcast %675 : f32 to vector<8x1xf32>
    %679 = arith.mulf %53, %678 : vector<8x1xf32>
    %680 = arith.addf %677, %679 : vector<8x1xf32>
    %c0_104 = arith.constant 0 : index
    %c179 = arith.constant 179 : index
    %681 = vector.load %arg9[%c0_104, %c179] : memref<8x512xf32, #tpu.memory_space<vmem>>, vector<8x256xf32>
    %682 = vector.broadcast %680 : vector<8x1xf32> to vector<8x256xf32>
    %683 = arith.mulf %682, %681 : vector<8x256xf32>
    %684 = arith.addf %673, %683 : vector<8x256xf32>
    %685 = vector.broadcast %119 : vector<1x256xf32> to vector<8x256xf32>
    %686 = arith.mulf %685, %684 : vector<8x256xf32>
    %687 = arith.addf %606, %686 : vector<8x256xf32>
    %688 = vector.extract_strided_slice %687 {offsets = [0, 0], sizes = [4, 256], strides = [1, 1]} : vector<8x256xf32> to vector<4x256xf32>
    %689 = vector.extract_strided_slice %687 {offsets = [4, 0], sizes = [4, 256], strides = [1, 1]} : vector<8x256xf32> to vector<4x256xf32>
    %690 = arith.addf %688, %689 : vector<4x256xf32>
    %c0_105 = arith.constant 0 : index
    %691 = memref.load %arg7[%c0_105] : memref<1xf32, #tpu.memory_space<smem>>
    %692 = vector.broadcast %691 : f32 to vector<4x256xf32>
    %693 = arith.addf %690, %692 : vector<4x256xf32>
    %694 = arith.negf %693 : vector<4x256xf32>
    %695 = math.exp %694 : vector<4x256xf32>
    %cst_106 = arith.constant 1.000000e+00 : f32
    %696 = vector.broadcast %cst_106 : f32 to vector<4x256xf32>
    %697 = arith.addf %696, %695 : vector<4x256xf32>
    %698 = arith.divf %696, %697 : vector<4x256xf32>
    %699 = vector.shape_cast %698 : vector<4x256xf32> to vector<4x1x256xf32>
    %700 = vector.broadcast %699 : vector<4x1x256xf32> to vector<4x32x256xf32>
    %701 = arith.mulf %36, %700 : vector<4x32x256xf32>
    %c0_107 = arith.constant 0 : index
    %c0_108 = arith.constant 0 : index
    %c0_109 = arith.constant 0 : index
    %702 = vector.load %arg8[%c0_107, %c0_108, %c0_109] : memref<4x32x256xf32, #tpu.memory_space<vmem>>, vector<4x32x256xf32>
    tpu.vector_store %arg8[%c0_107, %c0_108, %c0_109], %701 {strides = array<i32>} : memref<4x32x256xf32, #tpu.memory_space<vmem>>, vector<4x32x256xf32>,
    return
  }
  func.func @transform_0(%arg0: i32) -> (i32, i32, i32) {
    %c0_i32 = arith.constant 0 : i32
    %c0_i32_0 = arith.constant 0 : i32
    %c0_i32_1 = arith.constant 0 : i32
    return %arg0, %c0_i32, %c0_i32_0 : i32, i32, i32
  }
  func.func @transform_1(%arg0: i32) -> (i32, i32) {
    %c0_i32 = arith.constant 0 : i32
    %c0_i32_0 = arith.constant 0 : i32
    %c0_i32_1 = arith.constant 0 : i32
    return %c0_i32, %c0_i32_0 : i32, i32
  }
  func.func @transform_2(%arg0: i32) -> (i32, i32) {
    %c0_i32 = arith.constant 0 : i32
    %c0_i32_0 = arith.constant 0 : i32
    %c0_i32_1 = arith.constant 0 : i32
    return %c0_i32, %c0_i32_0 : i32, i32
  }
  func.func @transform_3(%arg0: i32) -> (i32, i32) {
    %c0_i32 = arith.constant 0 : i32
    %c0_i32_0 = arith.constant 0 : i32
    %c0_i32_1 = arith.constant 0 : i32
    return %c0_i32, %c0_i32_0 : i32, i32
  }
  func.func @transform_4(%arg0: i32) -> (i32, i32) {
    %c0_i32 = arith.constant 0 : i32
    %c0_i32_0 = arith.constant 0 : i32
    %c0_i32_1 = arith.constant 0 : i32
    return %c0_i32, %c0_i32_0 : i32, i32
  }
  func.func @transform_5(%arg0: i32) -> i32 {
    %c0_i32 = arith.constant 0 : i32
    %c0_i32_0 = arith.constant 0 : i32
    return %c0_i32 : i32
  }
  func.func @transform_6(%arg0: i32) -> i32 {
    %c0_i32 = arith.constant 0 : i32
    %c0_i32_0 = arith.constant 0 : i32
    return %c0_i32 : i32
  }
  func.func @transform_7(%arg0: i32) -> (i32, i32, i32) {
    %c0_i32 = arith.constant 0 : i32
    %c0_i32_0 = arith.constant 0 : i32
    %c0_i32_1 = arith.constant 0 : i32
    return %arg0, %c0_i32, %c0_i32_0 : i32, i32, i32
  }
}

</mosaic_0001>

<llo_original>
// kernel: cbam_pallas.1
$region0: #{cbam_pallas.1}
  #allocation0 [shape = 'u32[]', space=smem, size = 0x4, offset = 0x4, fixed_abs, tag = 'smem constant byte address 0x4 - core index']
  #allocation1 [shape = 'u32[144,128]{1,0:T(1,128)}', space=vmem, size = 0x12000, scoped, tag = 'internal scratch']
  #allocation2 [shape = 'f32[8,512]{1,0:T(8,128)}', space=vmem, size = 0x4000, scoped, tag = 'scratch operand']
  #allocation3 [shape = 'f32[1]{0:T(128)S(6)}', space=smem, size = 0x200, scoped, tag = 'scoped memory for cbam_pallas.1']
  %s0 = inlined_call_operand.vmem [shape: f32[4,32,256], index: 0, kind: input, shape index: {}]
  %s1 = inlined_call_operand.vmem [shape: f32[2,32], index: 1, kind: input, shape index: {}]
  %s2 = inlined_call_operand.vmem [shape: f32[1,2], index: 2, kind: input, shape index: {}]
  %s3 = inlined_call_operand.vmem [shape: f32[2,32], index: 3, kind: input, shape index: {}]
  %s4 = inlined_call_operand.vmem [shape: f32[1,32], index: 4, kind: input, shape index: {}]
  %s5 = inlined_call_operand.vmem [shape: f32[98], index: 5, kind: input, shape index: {}]
  %s6 = inlined_call_operand.<no memory space> [shape: f32[1], index: 6, kind: input, shape index: {}]
  %s7 = inlined_call_operand.vmem [shape: f32[4,32,256], index: 7, kind: output, shape index: {}]
  %s8 = sld [smem:[#allocation0]]
  $region42: #{cbam_pallas.1} parent=0
    _
  %s10 = ssub.s32 1, %s8
  %s11 = scalar_select 0, %s10, %s8
  %12 = sst [smem:[#allocation3]] %s6
  $region1: #{cbam_pallas.1} parent=0
    #allocation4 [shape = 'u8[512]{0}', space=smem, size = 0x200, scoped, tag = 'input window, operand 5, single buffered']
    #allocation5 [shape = 's32[1]{0}', space=sflag, size = 0x4, scoped, tag = 'scoped memory for cbam_pallas.1']
    %13 = vsyncpa [#allocation5], 0
    // Predicated region
    $region2: #{cbam_pallas.1} parent=1 // pred_check
      _
    $region3: #{cbam_pallas.1} parent=1 // pred_check_branch
      %15 = sbr.rel (0) target = $region5
    $region4: #{cbam_pallas.1} parent=1 // pred_region
      _
    $region5: #{cbam_pallas.1} parent=1 // pred_fallthru
      _
    // Predicated region
    $region6: #{cbam_pallas.1} parent=1 // pred_check
      _
    $region7: #{cbam_pallas.1} parent=1 // pred_check_branch
      %17 = sbr.rel (0) target = $region9
    $region8: #{cbam_pallas.1} parent=1 // pred_region
      _
    $region9: #{cbam_pallas.1} parent=1 // pred_fallthru
      _
    // Predicated region
    $region10: #{cbam_pallas.1} parent=1 // pred_check
      _
    $region11: #{cbam_pallas.1} parent=1 // pred_check_branch
      %19 = sbr.rel (0) target = $region13
    $region12: #{cbam_pallas.1} parent=1 // pred_region
      _
    $region13: #{cbam_pallas.1} parent=1 // pred_fallthru
      _
    // Predicated region
    $region14: #{cbam_pallas.1} parent=1 // pred_check
      _
    $region15: #{cbam_pallas.1} parent=1 // pred_check_branch
      %21 = sbr.rel (0) target = $region17
    $region16: #{cbam_pallas.1} parent=1 // pred_region
      _
    $region17: #{cbam_pallas.1} parent=1 // pred_fallthru
      _
    // Predicated region
    $region18: #{cbam_pallas.1} parent=1 // pred_check
      _
    $region19: #{cbam_pallas.1} parent=1 // pred_check_branch
      %23 = sbr.rel (0) target = $region21
    $region20: #{cbam_pallas.1} parent=1 // pred_region
      _
    $region21: #{cbam_pallas.1} parent=1 // pred_fallthru
      _
    // Predicated region
    $region22: #{cbam_pallas.1} parent=1 // pred_check
      _
    $region23: #{cbam_pallas.1} parent=1 // pred_check_branch
      %25 = sbr.rel (0) target = $region25
    $region24: #{cbam_pallas.1} parent=1 // pred_region
      %s27 = ssub.s32 16, 16
      %28 = vsyncadd [#allocation5], %s27
      %s30 = sshll.u32 %s5, 4
      %s31 = int_to_ptr.vmem [resolvable:$true] %s30
      %33 = dma.vmem_to_smem %s31, 16, [#allocation4], [#allocation5]
    $region25: #{cbam_pallas.1} parent=1 // pred_fallthru
      _
    // Predicated region
    $region26: #{cbam_pallas.1} parent=1 // pred_check
      _
    $region27: #{cbam_pallas.1} parent=1 // pred_check_branch
      %35 = sbr.rel (0) target = $region29
    $region28: #{cbam_pallas.1} parent=1 // pred_region
      _
    $region29: #{cbam_pallas.1} parent=1 // pred_fallthru
      _
    // Predicated region
    $region30: #{cbam_pallas.1} parent=1 // pred_check
      _
    $region31: #{cbam_pallas.1} parent=1 // pred_check_branch
      %37 = sbr.rel (0) target = $region33
    $region32: #{cbam_pallas.1} parent=1 // pred_region
      %38 = dma.done [#allocation5], 16
    $region33: #{cbam_pallas.1} parent=1 // pred_fallthru
      _
    %39 = sfence
    %v40 = vld [vmem:[%s0] sm:$0xff]
    %v41 = vld [vmem:[%s0 + $0x8] sm:$0xff]
    %v42 = vld [vmem:[%s0 + $0x10] sm:$0xff]
    %v43 = vld [vmem:[%s0 + $0x18] sm:$0xff]
    %v44 = vld [vmem:[%s0 + $0x20] sm:$0xff]
    %v45 = vld [vmem:[%s0 + $0x28] sm:$0xff]
    %v46 = vld [vmem:[%s0 + $0x30] sm:$0xff]
    %v47 = vld [vmem:[%s0 + $0x38] sm:$0xff]
    %v48 = vld [vmem:[%s0 + $0x40] sm:$0xff]
    %v49 = vld [vmem:[%s0 + $0x48] sm:$0xff]
    %v50 = vld [vmem:[%s0 + $0x50] sm:$0xff]
    %v51 = vld [vmem:[%s0 + $0x58] sm:$0xff]
    %v52 = vld [vmem:[%s0 + $0x60] sm:$0xff]
    %v53 = vld [vmem:[%s0 + $0x68] sm:$0xff]
    %v54 = vld [vmem:[%s0 + $0x70] sm:$0xff]
    %v55 = vld [vmem:[%s0 + $0x78] sm:$0xff]
    %v56 = vld [vmem:[%s0 + $0x80] sm:$0xff]
    %v57 = vld [vmem:[%s0 + $0x88] sm:$0xff]
    %v58 = vld [vmem:[%s0 + $0x90] sm:$0xff]
    %v59 = vld [vmem:[%s0 + $0x98] sm:$0xff]
    %v60 = vld [vmem:[%s0 + $0xa0] sm:$0xff]
    %v61 = vld [vmem:[%s0 + $0xa8] sm:$0xff]
    %v62 = vld [vmem:[%s0 + $0xb0] sm:$0xff]
    %v63 = vld [vmem:[%s0 + $0xb8] sm:$0xff]
    %v64 = vld [vmem:[%s0 + $0xc0] sm:$0xff]
    %v65 = vld [vmem:[%s0 + $0xc8] sm:$0xff]
    %v66 = vld [vmem:[%s0 + $0xd0] sm:$0xff]
    %v67 = vld [vmem:[%s0 + $0xd8] sm:$0xff]
    %v68 = vld [vmem:[%s0 + $0xe0] sm:$0xff]
    %v69 = vld [vmem:[%s0 + $0xe8] sm:$0xff]
    %v70 = vld [vmem:[%s0 + $0xf0] sm:$0xff]
    %v71 = vld [vmem:[%s0 + $0xf8] sm:$0xff]
    %v72 = vadd.f32 %v40, %v41
    %73 = vadd.xlane.f32.xlu0 %v72
    %v74 = vpop.xlane.xlu0 %73
    %v75 = vadd.f32 %v42, %v43
    %76 = vadd.xlane.f32.xlu0 %v75
    %v77 = vpop.xlane.xlu0 %76
    %v78 = vadd.f32 %v44, %v45
    %79 = vadd.xlane.f32.xlu0 %v78
    %v80 = vpop.xlane.xlu0 %79
    %v81 = vadd.f32 %v46, %v47
    %82 = vadd.xlane.f32.xlu0 %v81
    %v83 = vpop.xlane.xlu0 %82
    %v84 = vadd.f32 %v48, %v49
    %85 = vadd.xlane.f32.xlu0 %v84
    %v86 = vpop.xlane.xlu0 %85
    %v87 = vadd.f32 %v50, %v51
    %88 = vadd.xlane.f32.xlu0 %v87
    %v89 = vpop.xlane.xlu0 %88
    %v90 = vadd.f32 %v52, %v53
    %91 = vadd.xlane.f32.xlu0 %v90
    %v92 = vpop.xlane.xlu0 %91
    %v93 = vadd.f32 %v54, %v55
    %94 = vadd.xlane.f32.xlu0 %v93
    %v95 = vpop.xlane.xlu0 %94
    %v96 = vadd.f32 %v56, %v57
    %97 = vadd.xlane.f32.xlu0 %v96
    %v98 = vpop.xlane.xlu0 %97
    %v99 = vadd.f32 %v58, %v59
    %100 = vadd.xlane.f32.xlu0 %v99
    %v101 = vpop.xlane.xlu0 %100
    %v102 = vadd.f32 %v60, %v61
    %103 = vadd.xlane.f32.xlu0 %v102
    %v104 = vpop.xlane.xlu0 %103
    %v105 = vadd.f32 %v62, %v63
    %106 = vadd.xlane.f32.xlu0 %v105
    %v107 = vpop.xlane.xlu0 %106
    %v108 = vadd.f32 %v64, %v65
    %109 = vadd.xlane.f32.xlu0 %v108
    %v110 = vpop.xlane.xlu0 %109
    %v111 = vadd.f32 %v66, %v67
    %112 = vadd.xlane.f32.xlu0 %v111
    %v113 = vpop.xlane.xlu0 %112
    %v114 = vadd.f32 %v68, %v69
    %115 = vadd.xlane.f32.xlu0 %v114
    %v116 = vpop.xlane.xlu0 %115
    %v117 = vadd.f32 %v70, %v71
    %118 = vadd.xlane.f32.xlu0 %v117
    %v119 = vpop.xlane.xlu0 %118
    %v120 = vrcp.pop 256.0
    %v121 = vmul.f32 %v74, %v120
    %v122 = vmul.f32 %v77, %v120
    %v123 = vmul.f32 %v80, %v120
    %v124 = vmul.f32 %v83, %v120
    %v125 = vmul.f32 %v86, %v120
    %v126 = vmul.f32 %v89, %v120
    %v127 = vmul.f32 %v92, %v120
    %v128 = vmul.f32 %v95, %v120
    %v129 = vmul.f32 %v98, %v120
    %v130 = vmul.f32 %v101, %v120
    %v131 = vmul.f32 %v104, %v120
    %v132 = vmul.f32 %v107, %v120
    %v133 = vmul.f32 %v110, %v120
    %v134 = vmul.f32 %v113, %v120
    %v135 = vmul.f32 %v116, %v120
    %v136 = vmul.f32 %v119, %v120
    %v137 = vld [vmem:[%s1] sm:$0x3]
    %v139 = vlaneseq
    %v140 = vshrl.u32 %v139, 7
    %v141 = vsub.s32 0, %v140
    %v142 = vrot.slane %v137, %v141
    %144 = vbcast.lane.b32.xlu0 %v142, 256
    %v145 = vpop.permute.xlu0 %144
    %s147 = sor.u32 256, 8
    %148 = vbcast.lane.b32.xlu0 %v142, %s147
    %v149 = vpop.permute.xlu0 %148
    %s151 = sor.u32 256, 16
    %152 = vbcast.lane.b32.xlu0 %v142, %s151
    %v153 = vpop.permute.xlu0 %152
    %s155 = sor.u32 256, 24
    %156 = vbcast.lane.b32.xlu0 %v142, %s155
    %v157 = vpop.permute.xlu0 %156
    %v158 = vlaneseq
    %v159 = vshrl.u32 %v158, 7
    %v160 = vsub.s32 1, %v159
    %v161 = vrot.slane %v137, %v160
    %163 = vbcast.lane.b32.xlu0 %v161, 256
    %v164 = vpop.permute.xlu0 %163
    %s166 = sor.u32 256, 8
    %167 = vbcast.lane.b32.xlu0 %v161, %s166
    %v168 = vpop.permute.xlu0 %167
    %s170 = sor.u32 256, 16
    %171 = vbcast.lane.b32.xlu0 %v161, %s170
    %v172 = vpop.permute.xlu0 %171
    %s174 = sor.u32 256, 24
    %175 = vbcast.lane.b32.xlu0 %v161, %s174
    %v176 = vpop.permute.xlu0 %175
    %v185 = vmul.f32 %v121, %v145
    %v186 = vmul.f32 %v122, %v149
    %v187 = vmul.f32 %v123, %v153
    %v188 = vmul.f32 %v124, %v157
    %v189 = vmul.f32 %v121, %v164
    %v190 = vmul.f32 %v122, %v168
    %v191 = vmul.f32 %v123, %v172
    %v192 = vmul.f32 %v124, %v176
    %v193 = vmul.f32 %v125, %v145
    %v194 = vmul.f32 %v126, %v149
    %v195 = vmul.f32 %v127, %v153
    %v196 = vmul.f32 %v128, %v157
    %v197 = vmul.f32 %v125, %v164
    %v198 = vmul.f32 %v126, %v168
    %v199 = vmul.f32 %v127, %v172
    %v200 = vmul.f32 %v128, %v176
    %v201 = vmul.f32 %v129, %v145
    %v202 = vmul.f32 %v130, %v149
    %v203 = vmul.f32 %v131, %v153
    %v204 = vmul.f32 %v132, %v157
    %v205 = vmul.f32 %v129, %v164
    %v206 = vmul.f32 %v130, %v168
    %v207 = vmul.f32 %v131, %v172
    %v208 = vmul.f32 %v132, %v176
    %v209 = vmul.f32 %v133, %v145
    %v210 = vmul.f32 %v134, %v149
    %v211 = vmul.f32 %v135, %v153
    %v212 = vmul.f32 %v136, %v157
    %v213 = vmul.f32 %v133, %v164
    %v214 = vmul.f32 %v134, %v168
    %v215 = vmul.f32 %v135, %v172
    %v216 = vmul.f32 %v136, %v176
    %249 = vset.pattern.permute.xlu0 0
    %250 = vperm.xlu0 %249, %v185
    %v251 = vpop.permute.xlu0 %250
    %252 = vset.pattern.permute.xlu0 0
    %253 = vperm.xlu0 %252, %v186
    %v254 = vpop.permute.xlu0 %253
    %255 = vset.pattern.permute.xlu0 0
    %256 = vperm.xlu0 %255, %v187
    %v257 = vpop.permute.xlu0 %256
    %258 = vset.pattern.permute.xlu0 0
    %259 = vperm.xlu0 %258, %v188
    %v260 = vpop.permute.xlu0 %259
    %261 = vset.pattern.permute.xlu0 0
    %262 = vperm.xlu0 %261, %v189
    %v263 = vpop.permute.xlu0 %262
    %264 = vset.pattern.permute.xlu0 0
    %265 = vperm.xlu0 %264, %v190
    %v266 = vpop.permute.xlu0 %265
    %267 = vset.pattern.permute.xlu0 0
    %268 = vperm.xlu0 %267, %v191
    %v269 = vpop.permute.xlu0 %268
    %270 = vset.pattern.permute.xlu0 0
    %271 = vperm.xlu0 %270, %v192
    %v272 = vpop.permute.xlu0 %271
    %273 = vset.pattern.permute.xlu0 0
    %274 = vperm.xlu0 %273, %v193
    %v275 = vpop.permute.xlu0 %274
    %276 = vset.pattern.permute.xlu0 0
    %277 = vperm.xlu0 %276, %v194
    %v278 = vpop.permute.xlu0 %277
    %279 = vset.pattern.permute.xlu0 0
    %280 = vperm.xlu0 %279, %v195
    %v281 = vpop.permute.xlu0 %280
    %282 = vset.pattern.permute.xlu0 0
    %283 = vperm.xlu0 %282, %v196
    %v284 = vpop.permute.xlu0 %283
    %285 = vset.pattern.permute.xlu0 0
    %286 = vperm.xlu0 %285, %v197
    %v287 = vpop.permute.xlu0 %286
    %288 = vset.pattern.permute.xlu0 0
    %289 = vperm.xlu0 %288, %v198
    %v290 = vpop.permute.xlu0 %289
    %291 = vset.pattern.permute.xlu0 0
    %292 = vperm.xlu0 %291, %v199
    %v293 = vpop.permute.xlu0 %292
    %294 = vset.pattern.permute.xlu0 0
    %295 = vperm.xlu0 %294, %v200
    %v296 = vpop.permute.xlu0 %295
    %297 = vset.pattern.permute.xlu0 0
    %298 = vperm.xlu0 %297, %v201
    %v299 = vpop.permute.xlu0 %298
    %300 = vset.pattern.permute.xlu0 0
    %301 = vperm.xlu0 %300, %v202
    %v302 = vpop.permute.xlu0 %301
    %303 = vset.pattern.permute.xlu0 0
    %304 = vperm.xlu0 %303, %v203
    %v305 = vpop.permute.xlu0 %304
    %306 = vset.pattern.permute.xlu0 0
    %307 = vperm.xlu0 %306, %v204
    %v308 = vpop.permute.xlu0 %307
    %309 = vset.pattern.permute.xlu0 0
    %310 = vperm.xlu0 %309, %v205
    %v311 = vpop.permute.xlu0 %310
    %312 = vset.pattern.permute.xlu0 0
    %313 = vperm.xlu0 %312, %v206
    %v314 = vpop.permute.xlu0 %313
    %315 = vset.pattern.permute.xlu0 0
    %316 = vperm.xlu0 %315, %v207
    %v317 = vpop.permute.xlu0 %316
    %318 = vset.pattern.permute.xlu0 0
    %319 = vperm.xlu0 %318, %v208
    %v320 = vpop.permute.xlu0 %319
    %321 = vset.pattern.permute.xlu0 0
    %322 = vperm.xlu0 %321, %v209
    %v323 = vpop.permute.xlu0 %322
    %324 = vset.pattern.permute.xlu0 0
    %325 = vperm.xlu0 %324, %v210
    %v326 = vpop.permute.xlu0 %325
    %327 = vset.pattern.permute.xlu0 0
    %328 = vperm.xlu0 %327, %v211
    %v329 = vpop.permute.xlu0 %328
    %330 = vset.pattern.permute.xlu0 0
    %331 = vperm.xlu0 %330, %v212
    %v332 = vpop.permute.xlu0 %331
    %333 = vset.pattern.permute.xlu0 0
    %334 = vperm.xlu0 %333, %v213
    %v335 = vpop.permute.xlu0 %334
    %336 = vset.pattern.permute.xlu0 0
    %337 = vperm.xlu0 %336, %v214
    %v338 = vpop.permute.xlu0 %337
    %339 = vset.pattern.permute.xlu0 0
    %340 = vperm.xlu0 %339, %v215
    %v341 = vpop.permute.xlu0 %340
    %342 = vset.pattern.permute.xlu0 0
    %343 = vperm.xlu0 %342, %v216
    %v344 = vpop.permute.xlu0 %343
    %v345 = vlaneseq
    %v346 = vand.u32 %v345, 127
    %v347 = vlaneseq
    %v348 = vshrl.u32 %v347, 7
    %v349 = vsub.s32 %v346, %v348
    %v350 = vrot.slane %v251, %v349
    %v351 = vadd.s32 %v346, 4294967288
    %v352 = vlaneseq
    %v353 = vshrl.u32 %v352, 7
    %v354 = vsub.s32 %v351, %v353
    %v355 = vrot.slane %v254, %v354
    %vm356 = vcmask 130112
    %v357 = vsel %vm356, %v355, %v350
    %v358 = vadd.s32 %v346, 4294967280
    %v359 = vlaneseq
    %v360 = vshrl.u32 %v359, 7
    %v361 = vsub.s32 %v358, %v360
    %v362 = vrot.slane %v257, %v361
    %vm363 = vcmask 195712
    %v364 = vsel %vm363, %v362, %v357
    %v365 = vadd.s32 %v346, 4294967272
    %v366 = vlaneseq
    %v367 = vshrl.u32 %v366, 7
    %v368 = vsub.s32 %v365, %v367
    %v369 = vrot.slane %v260, %v368
    %vm370 = vcmask 261312
    %v371 = vsel %vm370, %v369, %v364
    %v372 = vlaneseq
    %v373 = vshrl.u32 %v372, 7
    %v374 = vsub.s32 %v346, %v373
    %v375 = vrot.slane %v263, %v374
    %v376 = vlaneseq
    %v377 = vshrl.u32 %v376, 7
    %v378 = vsub.s32 %v351, %v377
    %v379 = vrot.slane %v266, %v378
    %v380 = vsel %vm356, %v379, %v375
    %v381 = vlaneseq
    %v382 = vshrl.u32 %v381, 7
    %v383 = vsub.s32 %v358, %v382
    %v384 = vrot.slane %v269, %v383
    %v385 = vsel %vm363, %v384, %v380
    %v386 = vlaneseq
    %v387 = vshrl.u32 %v386, 7
    %v388 = vsub.s32 %v365, %v387
    %v389 = vrot.slane %v272, %v388
    %v390 = vsel %vm370, %v389, %v385
    %v391 = vlaneseq
    %v392 = vshrl.u32 %v391, 7
    %v393 = vsub.s32 %v346, %v392
    %v394 = vrot.slane %v275, %v393
    %v395 = vlaneseq
    %v396 = vshrl.u32 %v395, 7
    %v397 = vsub.s32 %v351, %v396
    %v398 = vrot.slane %v278, %v397
    %v399 = vsel %vm356, %v398, %v394
    %v400 = vlaneseq
    %v401 = vshrl.u32 %v400, 7
    %v402 = vsub.s32 %v358, %v401
    %v403 = vrot.slane %v281, %v402
    %v404 = vsel %vm363, %v403, %v399
    %v405 = vlaneseq
    %v406 = vshrl.u32 %v405, 7
    %v407 = vsub.s32 %v365, %v406
    %v408 = vrot.slane %v284, %v407
    %v409 = vsel %vm370, %v408, %v404
    %v410 = vlaneseq
    %v411 = vshrl.u32 %v410, 7
    %v412 = vsub.s32 %v346, %v411
    %v413 = vrot.slane %v287, %v412
    %v414 = vlaneseq
    %v415 = vshrl.u32 %v414, 7
    %v416 = vsub.s32 %v351, %v415
    %v417 = vrot.slane %v290, %v416
    %v418 = vsel %vm356, %v417, %v413
    %v419 = vlaneseq
    %v420 = vshrl.u32 %v419, 7
    %v421 = vsub.s32 %v358, %v420
    %v422 = vrot.slane %v293, %v421
    %v423 = vsel %vm363, %v422, %v418
    %v424 = vlaneseq
    %v425 = vshrl.u32 %v424, 7
    %v426 = vsub.s32 %v365, %v425
    %v427 = vrot.slane %v296, %v426
    %v428 = vsel %vm370, %v427, %v423
    %v429 = vlaneseq
    %v430 = vshrl.u32 %v429, 7
    %v431 = vsub.s32 %v346, %v430
    %v432 = vrot.slane %v299, %v431
    %v433 = vlaneseq
    %v434 = vshrl.u32 %v433, 7
    %v435 = vsub.s32 %v351, %v434
    %v436 = vrot.slane %v302, %v435
    %v437 = vsel %vm356, %v436, %v432
    %v438 = vlaneseq
    %v439 = vshrl.u32 %v438, 7
    %v440 = vsub.s32 %v358, %v439
    %v441 = vrot.slane %v305, %v440
    %v442 = vsel %vm363, %v441, %v437
    %v443 = vlaneseq
    %v444 = vshrl.u32 %v443, 7
    %v445 = vsub.s32 %v365, %v444
    %v446 = vrot.slane %v308, %v445
    %v447 = vsel %vm370, %v446, %v442
    %v448 = vlaneseq
    %v449 = vshrl.u32 %v448, 7
    %v450 = vsub.s32 %v346, %v449
    %v451 = vrot.slane %v311, %v450
    %v452 = vlaneseq
    %v453 = vshrl.u32 %v452, 7
    %v454 = vsub.s32 %v351, %v453
    %v455 = vrot.slane %v314, %v454
    %v456 = vsel %vm356, %v455, %v451
    %v457 = vlaneseq
    %v458 = vshrl.u32 %v457, 7
    %v459 = vsub.s32 %v358, %v458
    %v460 = vrot.slane %v317, %v459
    %v461 = vsel %vm363, %v460, %v456
    %v462 = vlaneseq
    %v463 = vshrl.u32 %v462, 7
    %v464 = vsub.s32 %v365, %v463
    %v465 = vrot.slane %v320, %v464
    %v466 = vsel %vm370, %v465, %v461
    %v467 = vlaneseq
    %v468 = vshrl.u32 %v467, 7
    %v469 = vsub.s32 %v346, %v468
    %v470 = vrot.slane %v323, %v469
    %v471 = vlaneseq
    %v472 = vshrl.u32 %v471, 7
    %v473 = vsub.s32 %v351, %v472
    %v474 = vrot.slane %v326, %v473
    %v475 = vsel %vm356, %v474, %v470
    %v476 = vlaneseq
    %v477 = vshrl.u32 %v476, 7
    %v478 = vsub.s32 %v358, %v477
    %v479 = vrot.slane %v329, %v478
    %v480 = vsel %vm363, %v479, %v475
    %v481 = vlaneseq
    %v482 = vshrl.u32 %v481, 7
    %v483 = vsub.s32 %v365, %v482
    %v484 = vrot.slane %v332, %v483
    %v485 = vsel %vm370, %v484, %v480
    %v486 = vlaneseq
    %v487 = vshrl.u32 %v486, 7
    %v488 = vsub.s32 %v346, %v487
    %v489 = vrot.slane %v335, %v488
    %v490 = vlaneseq
    %v491 = vshrl.u32 %v490, 7
    %v492 = vsub.s32 %v351, %v491
    %v493 = vrot.slane %v338, %v492
    %v494 = vsel %vm356, %v493, %v489
    %v495 = vlaneseq
    %v496 = vshrl.u32 %v495, 7
    %v497 = vsub.s32 %v358, %v496
    %v498 = vrot.slane %v341, %v497
    %v499 = vsel %vm363, %v498, %v494
    %v500 = vlaneseq
    %v501 = vshrl.u32 %v500, 7
    %v502 = vsub.s32 %v365, %v501
    %v503 = vrot.slane %v344, %v502
    %v504 = vsel %vm370, %v503, %v499
    %vm505 = vcmask 1041409
    %v506 = vsel %vm505, %v390, %v371
    %v507 = vsel %vm505, %v428, %v409
    %v508 = vsel %vm505, %v466, %v447
    %v509 = vsel %vm505, %v504, %v485
    %vm514 = vcmask 254976
    %v515 = vsel %vm514, %v506, 0.0
    %516 = vadd.xlane.f32.xlu0 %v515
    %v517 = vpop.xlane.xlu0 %516
    %v518 = vsel %vm514, %v507, 0.0
    %519 = vadd.xlane.f32.xlu0 %v518
    %v520 = vpop.xlane.xlu0 %519
    %v521 = vsel %vm514, %v508, 0.0
    %522 = vadd.xlane.f32.xlu0 %v521
    %v523 = vpop.xlane.xlu0 %522
    %v524 = vsel %vm514, %v509, 0.0
    %525 = vadd.xlane.f32.xlu0 %v524
    %v526 = vpop.xlane.xlu0 %525
    %v527 = vld [vmem:[%s2] sm:$0x1]
    %v529 = vlaneseq
    %v530 = vshrl.u32 %v529, 7
    %v531 = vsub.s32 0, %v530
    %v532 = vrot.slane %v527, %v531
    %534 = vbcast.lane.b32.xlu0 %v532, 256
    %v535 = vpop.permute.xlu0 %534
    %v537 = vadd.f32 %v517, %v535
    %v538 = vadd.f32 %v520, %v535
    %v539 = vadd.f32 %v523, %v535
    %v540 = vadd.f32 %v526, %v535
    %v541 = vmax.f32 %v537, 0.0
    %v542 = vmax.f32 %v538, 0.0
    %v543 = vmax.f32 %v539, 0.0
    %v544 = vmax.f32 %v540, 0.0
    %v545 = vld [vmem:[%s3] sm:$0x3]
    %547 = vset.pattern.permute.xlu0 0
    %548 = vperm.xlu0 %547, %v541
    %v549 = vpop.permute.xlu0 %548
    %552 = vset.pattern.permute.xlu0 0
    %553 = vperm.xlu0 %552, %v542
    %v554 = vpop.permute.xlu0 %553
    %557 = vset.pattern.permute.xlu0 0
    %558 = vperm.xlu0 %557, %v543
    %v559 = vpop.permute.xlu0 %558
    %562 = vset.pattern.permute.xlu0 0
    %563 = vperm.xlu0 %562, %v544
    %v564 = vpop.permute.xlu0 %563
    %v566 = vmul.f32 %v549, %v545
    %v567 = vmul.f32 %v554, %v545
    %v568 = vmul.f32 %v559, %v545
    %v569 = vmul.f32 %v564, %v545
    %v570 = vsel %vm514, %v566, 0.0
    %v571 = vrot.slane %v570, 4
    %v572 = vadd.f32 %v570, %v571
    %v573 = vrot.slane %v572, 2
    %v574 = vadd.f32 %v572, %v573
    %v575 = vrot.slane %v574, 1
    %v576 = vadd.f32 %v574, %v575
    %v577 = vsel %vm514, %v567, 0.0
    %v578 = vrot.slane %v577, 4
    %v579 = vadd.f32 %v577, %v578
    %v580 = vrot.slane %v579, 2
    %v581 = vadd.f32 %v579, %v580
    %v582 = vrot.slane %v581, 1
    %v583 = vadd.f32 %v581, %v582
    %v584 = vsel %vm514, %v568, 0.0
    %v585 = vrot.slane %v584, 4
    %v586 = vadd.f32 %v584, %v585
    %v587 = vrot.slane %v586, 2
    %v588 = vadd.f32 %v586, %v587
    %v589 = vrot.slane %v588, 1
    %v590 = vadd.f32 %v588, %v589
    %v591 = vsel %vm514, %v569, 0.0
    %v592 = vrot.slane %v591, 4
    %v593 = vadd.f32 %v591, %v592
    %v594 = vrot.slane %v593, 2
    %v595 = vadd.f32 %v593, %v594
    %v596 = vrot.slane %v595, 1
    %v597 = vadd.f32 %v595, %v596
    %v598 = vld [vmem:[%s4] sm:$0x1]
    %v600 = vlaneseq
    %v601 = vshrl.u32 %v600, 7
    %v602 = vsub.s32 0, %v601
    %v603 = vrot.slane %v598, %v602
    %v605 = vadd.f32 %v576, %v603
    %v606 = vadd.f32 %v583, %v603
    %v607 = vadd.f32 %v590, %v603
    %v608 = vadd.f32 %v597, %v603
    %v609 = vmax.f32 %v605, 0.0
    %v610 = vmax.f32 %v606, 0.0
    %v611 = vmax.f32 %v607, 0.0
    %v612 = vmax.f32 %v608, 0.0
    %v613 = vadd.f32 %v609, %v609
    %v614 = vadd.f32 %v610, %v610
    %v615 = vadd.f32 %v611, %v611
    %v616 = vadd.f32 %v612, %v612
    %v617 = vxor.u32 %v613, 2147483648
    %v618 = vxor.u32 %v614, 2147483648
    %v619 = vxor.u32 %v615, 2147483648
    %v620 = vxor.u32 %v616, 2147483648
    %v621 = vmul.f32 %v617, 1.442695
    %v622 = vpow.pop %v621
    %v623 = vmul.f32 %v618, 1.442695
    %v624 = vpow.pop %v623
    %v625 = vmul.f32 %v619, 1.442695
    %v626 = vpow.pop %v625
    %v627 = vmul.f32 %v620, 1.442695
    %v628 = vpow.pop %v627
    %v629 = vadd.f32 %v622, 1.0
    %v630 = vadd.f32 %v624, 1.0
    %v631 = vadd.f32 %v626, 1.0
    %v632 = vadd.f32 %v628, 1.0
    %v633 = vrcp.pop %v629
    %v634 = vmul.f32 1.0, %v633
    %v635 = vrcp.pop %v630
    %v636 = vmul.f32 1.0, %v635
    %v637 = vrcp.pop %v631
    %v638 = vmul.f32 1.0, %v637
    %v639 = vrcp.pop %v632
    %v640 = vmul.f32 1.0, %v639
    %v641 = vlaneseq
    %v642 = vshrl.u32 %v641, 7
    %v643 = vsub.s32 0, %v642
    %v644 = vrot.slane %v634, %v643
    %646 = vbcast.lane.b32.xlu0 %v644, 256
    %v647 = vpop.permute.xlu0 %646
    %s649 = sor.u32 256, 8
    %650 = vbcast.lane.b32.xlu0 %v644, %s649
    %v651 = vpop.permute.xlu0 %650
    %s653 = sor.u32 256, 16
    %654 = vbcast.lane.b32.xlu0 %v644, %s653
    %v655 = vpop.permute.xlu0 %654
    %s657 = sor.u32 256, 24
    %658 = vbcast.lane.b32.xlu0 %v644, %s657
    %v659 = vpop.permute.xlu0 %658
    %v660 = vlaneseq
    %v661 = vshrl.u32 %v660, 7
    %v662 = vsub.s32 0, %v661
    %v663 = vrot.slane %v636, %v662
    %665 = vbcast.lane.b32.xlu0 %v663, 256
    %v666 = vpop.permute.xlu0 %665
    %s668 = sor.u32 256, 8
    %669 = vbcast.lane.b32.xlu0 %v663, %s668
    %v670 = vpop.permute.xlu0 %669
    %s672 = sor.u32 256, 16
    %673 = vbcast.lane.b32.xlu0 %v663, %s672
    %v674 = vpop.permute.xlu0 %673
    %s676 = sor.u32 256, 24
    %677 = vbcast.lane.b32.xlu0 %v663, %s676
    %v678 = vpop.permute.xlu0 %677
    %v679 = vlaneseq
    %v680 = vshrl.u32 %v679, 7
    %v681 = vsub.s32 0, %v680
    %v682 = vrot.slane %v638, %v681
    %684 = vbcast.lane.b32.xlu0 %v682, 256
    %v685 = vpop.permute.xlu0 %684
    %s687 = sor.u32 256, 8
    %688 = vbcast.lane.b32.xlu0 %v682, %s687
    %v689 = vpop.permute.xlu0 %688
    %s691 = sor.u32 256, 16
    %692 = vbcast.lane.b32.xlu0 %v682, %s691
    %v693 = vpop.permute.xlu0 %692
    %s695 = sor.u32 256, 24
    %696 = vbcast.lane.b32.xlu0 %v682, %s695
    %v697 = vpop.permute.xlu0 %696
    %v698 = vlaneseq
    %v699 = vshrl.u32 %v698, 7
    %v700 = vsub.s32 0, %v699
    %v701 = vrot.slane %v640, %v700
    %703 = vbcast.lane.b32.xlu0 %v701, 256
    %v704 = vpop.permute.xlu0 %703
    %s706 = sor.u32 256, 8
    %707 = vbcast.lane.b32.xlu0 %v701, %s706
    %v708 = vpop.permute.xlu0 %707
    %s710 = sor.u32 256, 16
    %711 = vbcast.lane.b32.xlu0 %v701, %s710
    %v712 = vpop.permute.xlu0 %711
    %s714 = sor.u32 256, 24
    %715 = vbcast.lane.b32.xlu0 %v701, %s714
    %v716 = vpop.permute.xlu0 %715
    %v717 = vmul.f32 %v40, %v647
    %v718 = vmul.f32 %v41, %v647
    %v719 = vmul.f32 %v42, %v651
    %v720 = vmul.f32 %v43, %v651
    %v721 = vmul.f32 %v44, %v655
    %v722 = vmul.f32 %v45, %v655
    %v723 = vmul.f32 %v46, %v659
    %v724 = vmul.f32 %v47, %v659
    %v725 = vmul.f32 %v48, %v666
    %v726 = vmul.f32 %v49, %v666
    %v727 = vmul.f32 %v50, %v670
    %v728 = vmul.f32 %v51, %v670
    %v729 = vmul.f32 %v52, %v674
    %v730 = vmul.f32 %v53, %v674
    %v731 = vmul.f32 %v54, %v678
    %v732 = vmul.f32 %v55, %v678
    %v733 = vmul.f32 %v56, %v685
    %v734 = vmul.f32 %v57, %v685
    %v735 = vmul.f32 %v58, %v689
    %v736 = vmul.f32 %v59, %v689
    %v737 = vmul.f32 %v60, %v693
    %v738 = vmul.f32 %v61, %v693
    %v739 = vmul.f32 %v62, %v697
    %v740 = vmul.f32 %v63, %v697
    %v741 = vmul.f32 %v64, %v704
    %v742 = vmul.f32 %v65, %v704
    %v743 = vmul.f32 %v66, %v708
    %v744 = vmul.f32 %v67, %v708
    %v745 = vmul.f32 %v68, %v712
    %v746 = vmul.f32 %v69, %v712
    %v747 = vmul.f32 %v70, %v716
    %v748 = vmul.f32 %v71, %v716
    %v749 = vadd.f32 %v717, %v719
    %v750 = vadd.f32 %v749, %v721
    %v751 = vadd.f32 %v750, %v723
    %v752 = vrot.slane %v751, 4
    %v753 = vadd.f32 %v751, %v752
    %v754 = vrot.slane %v753, 2
    %v755 = vadd.f32 %v753, %v754
    %v756 = vrot.slane %v755, 1
    %v757 = vadd.f32 %v755, %v756
    %v758 = vadd.f32 %v718, %v720
    %v759 = vadd.f32 %v758, %v722
    %v760 = vadd.f32 %v759, %v724
    %v761 = vrot.slane %v760, 4
    %v762 = vadd.f32 %v760, %v761
    %v763 = vrot.slane %v762, 2
    %v764 = vadd.f32 %v762, %v763
    %v765 = vrot.slane %v764, 1
    %v766 = vadd.f32 %v764, %v765
    %v767 = vadd.f32 %v725, %v727
    %v768 = vadd.f32 %v767, %v729
    %v769 = vadd.f32 %v768, %v731
    %v770 = vrot.slane %v769, 4
    %v771 = vadd.f32 %v769, %v770
    %v772 = vrot.slane %v771, 2
    %v773 = vadd.f32 %v771, %v772
    %v774 = vrot.slane %v773, 1
    %v775 = vadd.f32 %v773, %v774
    %v776 = vadd.f32 %v726, %v728
    %v777 = vadd.f32 %v776, %v730
    %v778 = vadd.f32 %v777, %v732
    %v779 = vrot.slane %v778, 4
    %v780 = vadd.f32 %v778, %v779
    %v781 = vrot.slane %v780, 2
    %v782 = vadd.f32 %v780, %v781
    %v783 = vrot.slane %v782, 1
    %v784 = vadd.f32 %v782, %v783
    %v785 = vadd.f32 %v733, %v735
    %v786 = vadd.f32 %v785, %v737
    %v787 = vadd.f32 %v786, %v739
    %v788 = vrot.slane %v787, 4
    %v789 = vadd.f32 %v787, %v788
    %v790 = vrot.slane %v789, 2
    %v791 = vadd.f32 %v789, %v790
    %v792 = vrot.slane %v791, 1
    %v793 = vadd.f32 %v791, %v792
    %v794 = vadd.f32 %v734, %v736
    %v795 = vadd.f32 %v794, %v738
    %v796 = vadd.f32 %v795, %v740
    %v797 = vrot.slane %v796, 4
    %v798 = vadd.f32 %v796, %v797
    %v799 = vrot.slane %v798, 2
    %v800 = vadd.f32 %v798, %v799
    %v801 = vrot.slane %v800, 1
    %v802 = vadd.f32 %v800, %v801
    %v803 = vadd.f32 %v741, %v743
    %v804 = vadd.f32 %v803, %v745
    %v805 = vadd.f32 %v804, %v747
    %v806 = vrot.slane %v805, 4
    %v807 = vadd.f32 %v805, %v806
    %v808 = vrot.slane %v807, 2
    %v809 = vadd.f32 %v807, %v808
    %v810 = vrot.slane %v809, 1
    %v811 = vadd.f32 %v809, %v810
    %v812 = vadd.f32 %v742, %v744
    %v813 = vadd.f32 %v812, %v746
    %v814 = vadd.f32 %v813, %v748
    %v815 = vrot.slane %v814, 4
    %v816 = vadd.f32 %v814, %v815
    %v817 = vrot.slane %v816, 2
    %v818 = vadd.f32 %v816, %v817
    %v819 = vrot.slane %v818, 1
    %v820 = vadd.f32 %v818, %v819
    %v821 = vrcp.pop 32.0
    %v822 = vmul.f32 %v757, %v821
    %v823 = vmul.f32 %v766, %v821
    %v824 = vmul.f32 %v775, %v821
    %v825 = vmul.f32 %v784, %v821
    %v826 = vmul.f32 %v793, %v821
    %v827 = vmul.f32 %v802, %v821
    %v828 = vmul.f32 %v811, %v821
    %v829 = vmul.f32 %v820, %v821
    %v830 = vmax.f32 %v717, %v719
    %v831 = vmax.f32 %v830, %v721
    %v832 = vmax.f32 %v831, %v723
    %v833 = vrot.slane %v832, 4
    %v834 = vmax.f32 %v832, %v833
    %v835 = vrot.slane %v834, 2
    %v836 = vmax.f32 %v834, %v835
    %v837 = vrot.slane %v836, 1
    %v838 = vmax.f32 %v836, %v837
    %v839 = vmax.f32 %v718, %v720
    %v840 = vmax.f32 %v839, %v722
    %v841 = vmax.f32 %v840, %v724
    %v842 = vrot.slane %v841, 4
    %v843 = vmax.f32 %v841, %v842
    %v844 = vrot.slane %v843, 2
    %v845 = vmax.f32 %v843, %v844
    %v846 = vrot.slane %v845, 1
    %v847 = vmax.f32 %v845, %v846
    %v848 = vmax.f32 %v725, %v727
    %v849 = vmax.f32 %v848, %v729
    %v850 = vmax.f32 %v849, %v731
    %v851 = vrot.slane %v850, 4
    %v852 = vmax.f32 %v850, %v851
    %v853 = vrot.slane %v852, 2
    %v854 = vmax.f32 %v852, %v853
    %v855 = vrot.slane %v854, 1
    %v856 = vmax.f32 %v854, %v855
    %v857 = vmax.f32 %v726, %v728
    %v858 = vmax.f32 %v857, %v730
    %v859 = vmax.f32 %v858, %v732
    %v860 = vrot.slane %v859, 4
    %v861 = vmax.f32 %v859, %v860
    %v862 = vrot.slane %v861, 2
    %v863 = vmax.f32 %v861, %v862
    %v864 = vrot.slane %v863, 1
    %v865 = vmax.f32 %v863, %v864
    %v866 = vmax.f32 %v733, %v735
    %v867 = vmax.f32 %v866, %v737
    %v868 = vmax.f32 %v867, %v739
    %v869 = vrot.slane %v868, 4
    %v870 = vmax.f32 %v868, %v869
    %v871 = vrot.slane %v870, 2
    %v872 = vmax.f32 %v870, %v871
    %v873 = vrot.slane %v872, 1
    %v874 = vmax.f32 %v872, %v873
    %v875 = vmax.f32 %v734, %v736
    %v876 = vmax.f32 %v875, %v738
    %v877 = vmax.f32 %v876, %v740
    %v878 = vrot.slane %v877, 4
    %v879 = vmax.f32 %v877, %v878
    %v880 = vrot.slane %v879, 2
    %v881 = vmax.f32 %v879, %v880
    %v882 = vrot.slane %v881, 1
    %v883 = vmax.f32 %v881, %v882
    %v884 = vmax.f32 %v741, %v743
    %v885 = vmax.f32 %v884, %v745
    %v886 = vmax.f32 %v885, %v747
    %v887 = vrot.slane %v886, 4
    %v888 = vmax.f32 %v886, %v887
    %v889 = vrot.slane %v888, 2
    %v890 = vmax.f32 %v888, %v889
    %v891 = vrot.slane %v890, 1
    %v892 = vmax.f32 %v890, %v891
    %v893 = vmax.f32 %v742, %v744
    %v894 = vmax.f32 %v893, %v746
    %v895 = vmax.f32 %v894, %v748
    %v896 = vrot.slane %v895, 4
    %v897 = vmax.f32 %v895, %v896
    %v898 = vrot.slane %v897, 2
    %v899 = vmax.f32 %v897, %v898
    %v900 = vrot.slane %v899, 1
    %v901 = vmax.f32 %v899, %v900
    %902 = vst [vmem:[#allocation2] sm:$0xff] 0.0
    %903 = vst [vmem:[#allocation2 + $0x18] sm:$0xff] 0.0
    %v912 = vsel %vm505, %v824, %v822
    %vm913 = vcmask 1042434
    %v914 = vsel %vm913, %v826, %v912
    %vm915 = vcmask 1043459
    %v916 = vsel %vm915, %v828, %v914
    %v917 = vsel %vm505, %v825, %v823
    %v918 = vsel %vm913, %v827, %v917
    %v919 = vsel %vm915, %v829, %v918
    %922 = vst [vmem:[#allocation2 + $0x8] sm:$0xf] %v916
    %923 = vst [vmem:[#allocation2 + $0x10] sm:$0xf] %v919
    %vm932 = vcmask 1045509
    %v933 = vsel %vm932, %v856, %v838
    %vm934 = vcmask 1046534
    %v935 = vsel %vm934, %v874, %v933
    %vm936 = vcmask 1047559
    %v937 = vsel %vm936, %v892, %v935
    %v938 = vsel %vm932, %v865, %v847
    %v939 = vsel %vm934, %v883, %v938
    %v940 = vsel %vm936, %v901, %v939
    %943 = vst [vmem:[#allocation2 + $0x8] sm:$0xf0] %v937
    %944 = vst [vmem:[#allocation2 + $0x10] sm:$0xf0] %v940
    %v945 = vlaneseq
    %v946 = vshrl.u32 %v945, 7
    %vm947 = vcmp.lt.s32.totalorder %v946, 4
    %v948 = vsel %vm947, 1, 0
    %v949 = vcvt.s32.f32 %v948
    %v950 = vsub.f32 1.0, %v949
    %v951 = vadd.s32 %v346, 128
    %vm952 = vcmp.lt.s32.totalorder %v346, 0
    %v953 = vsub.s32 0, %v346
    %v954 = vsel %vm952, %v953, %v346
    %v955 = vshrl.u32 %v954, 4
    %v956 = vand.u32 %v954, 15
    %v957 = vsub.s32 0, %v956
    %v958 = vsel %vm952, %v957, %v956
    %vm959 = vcmp.lt.s32.totalorder %v951, 0
    %v960 = vsub.s32 0, %v951
    %v961 = vsel %vm959, %v960, %v951
    %v962 = vshrl.u32 %v961, 4
    %v963 = vand.u32 %v961, 15
    %v964 = vsub.s32 0, %v963
    %v965 = vsel %vm959, %v964, %v963
    %vm966 = vcmp.ne.s32.totalorder %v958, 0
    %vm967 = vcmp.ne.s32.totalorder %v965, 0
    %vm968 = vcmp.lt.s32.totalorder %v958, 0
    %vm969 = vcmp.lt.s32.totalorder %v965, 0
    %vm970 = vmand %vm968, %vm966
    %vm971 = vmand %vm969, %vm967
    %v972 = vadd.s32 %v958, 16
    %v973 = vadd.s32 %v965, 16
    %v974 = vsel %vm970, %v972, %v958
    %v975 = vsel %vm971, %v973, %v965
    %vm976 = vcmp.ge.s32.totalorder %v974, 3
    %vm977 = vcmp.ge.s32.totalorder %v975, 3
    %vm978 = vcmp.lt.s32.totalorder %v974, 19
    %vm979 = vcmp.lt.s32.totalorder %v975, 19
    %vm980 = vmand %vm976, %vm978
    %vm981 = vmand %vm977, %vm979
    %v982 = vsel %vm980, 1, 0
    %v983 = vsel %vm981, 1, 0
    %v984 = vcvt.s32.f32 %v982
    %v985 = vcvt.s32.f32 %v983
    %vm986 = vcmp.ge.s32.totalorder %v974, 2
    %vm987 = vcmp.ge.s32.totalorder %v975, 2
    %vm988 = vcmp.lt.s32.totalorder %v974, 18
    %vm989 = vcmp.lt.s32.totalorder %v975, 18
    %vm990 = vmand %vm986, %vm988
    %vm991 = vmand %vm987, %vm989
    %v992 = vsel %vm990, 1, 0
    %v993 = vsel %vm991, 1, 0
    %v994 = vcvt.s32.f32 %v992
    %v995 = vcvt.s32.f32 %v993
    %vm996 = vcmp.ge.s32.totalorder %v974, 1
    %vm997 = vcmp.ge.s32.totalorder %v975, 1
    %vm998 = vcmp.lt.s32.totalorder %v974, 17
    %vm999 = vcmp.lt.s32.totalorder %v975, 17
    %vm1000 = vmand %vm996, %vm998
    %vm1001 = vmand %vm997, %vm999
    %v1002 = vsel %vm1000, 1, 0
    %v1003 = vsel %vm1001, 1, 0
    %v1004 = vcvt.s32.f32 %v1002
    %v1005 = vcvt.s32.f32 %v1003
    %vm1006 = vcmp.ge.s32.totalorder %v974, 0
    %vm1007 = vcmp.ge.s32.totalorder %v975, 0
    %vm1008 = vcmp.lt.s32.totalorder %v974, 16
    %vm1009 = vcmp.lt.s32.totalorder %v975, 16
    %vm1010 = vmand %vm1006, %vm1008
    %vm1011 = vmand %vm1007, %vm1009
    %v1012 = vsel %vm1010, 1, 0
    %v1013 = vsel %vm1011, 1, 0
    %v1014 = vcvt.s32.f32 %v1012
    %v1015 = vcvt.s32.f32 %v1013
    %vm1016 = vcmp.ge.s32.totalorder %v974, 4294967295
    %vm1017 = vcmp.ge.s32.totalorder %v975, 4294967295
    %vm1018 = vcmp.lt.s32.totalorder %v974, 15
    %vm1019 = vcmp.lt.s32.totalorder %v975, 15
    %vm1020 = vmand %vm1016, %vm1018
    %vm1021 = vmand %vm1017, %vm1019
    %v1022 = vsel %vm1020, 1, 0
    %v1023 = vsel %vm1021, 1, 0
    %v1024 = vcvt.s32.f32 %v1022
    %v1025 = vcvt.s32.f32 %v1023
    %vm1026 = vcmp.ge.s32.totalorder %v974, 4294967294
    %vm1027 = vcmp.ge.s32.totalorder %v975, 4294967294
    %vm1028 = vcmp.lt.s32.totalorder %v974, 14
    %vm1029 = vcmp.lt.s32.totalorder %v975, 14
    %vm1030 = vmand %vm1026, %vm1028
    %vm1031 = vmand %vm1027, %vm1029
    %v1032 = vsel %vm1030, 1, 0
    %v1033 = vsel %vm1031, 1, 0
    %v1034 = vcvt.s32.f32 %v1032
    %v1035 = vcvt.s32.f32 %v1033
    %vm1036 = vcmp.ge.s32.totalorder %v974, 4294967293
    %vm1037 = vcmp.ge.s32.totalorder %v975, 4294967293
    %vm1038 = vcmp.lt.s32.totalorder %v974, 13
    %vm1039 = vcmp.lt.s32.totalorder %v975, 13
    %vm1040 = vmand %vm1036, %vm1038
    %vm1041 = vmand %vm1037, %vm1039
    %v1042 = vsel %vm1040, 1, 0
    %v1043 = vsel %vm1041, 1, 0
    %v1044 = vcvt.s32.f32 %v1042
    %v1045 = vcvt.s32.f32 %v1043
    %s1046 = sld [smem:[#allocation4]]
    %s1047 = sld [smem:[#allocation4 + $0x31]]
    %v1048 = vstv %s1046
    %v1049 = vmul.f32 %v949, %v1048
    %v1050 = vstv %s1047
    %v1051 = vmul.f32 %v950, %v1050
    %v1052 = vadd.f32 %v1049, %v1051
    %v1053 = vld [vmem:[#allocation2] sm:$0xff]
    %v1054 = vld [vmem:[#allocation2 + $0x8] sm:$0xff]
    %v1055 = vld [vmem:[#allocation2 + $0x10] sm:$0xff]
    %v1056 = vmul.f32 %v1052, %v1053
    %v1057 = vmul.f32 %v1052, %v1054
    %v1058 = vmul.f32 %v1052, %v1055
    %v1059 = vadd.f32 %v1056, 0.0
    %v1060 = vadd.f32 %v1057, 0.0
    %v1061 = vadd.f32 %v1058, 0.0
    %s1062 = sld [smem:[#allocation4 + $0x7]]
    %s1063 = sld [smem:[#allocation4 + $0x38]]
    %v1064 = vstv %s1062
    %v1065 = vmul.f32 %v949, %v1064
    %v1066 = vstv %s1063
    %v1067 = vmul.f32 %v950, %v1066
    %v1068 = vadd.f32 %v1065, %v1067
    %v1069 = vmul.f32 %v1068, %v1053
    %v1070 = vmul.f32 %v1068, %v1054
    %v1071 = vmul.f32 %v1068, %v1055
    %1075 = vrot.lane.b32.xlu0 %v1069, 112
    %v1076 = vpop.permute.xlu0 %1075
    %1077 = vrot.lane.b32.xlu0 %v1070, 112
    %v1078 = vpop.permute.xlu0 %1077
    %1079 = vrot.lane.b32.xlu0 %v1071, 112
    %v1080 = vpop.permute.xlu0 %1079
    %vm1081 = vcmask 916480
    %v1082 = vsel %vm1081, %v1076, %v1078
    %v1083 = vsel %vm1081, %v1078, %v1080
    %v1087 = vadd.f32 %v1059, %v1082
    %v1088 = vadd.f32 %v1060, %v1083
    %v1089 = vadd.f32 %v1061, %v1080
    %s1090 = sld [smem:[#allocation4 + $0xe]]
    %s1091 = sld [smem:[#allocation4 + $0x3f]]
    %v1092 = vstv %s1090
    %v1093 = vmul.f32 %v949, %v1092
    %v1094 = vstv %s1091
    %v1095 = vmul.f32 %v950, %v1094
    %v1096 = vadd.f32 %v1093, %v1095
    %v1097 = vmul.f32 %v1096, %v1053
    %v1098 = vmul.f32 %v1096, %v1054
    %v1099 = vmul.f32 %v1096, %v1055
    %1103 = vrot.lane.b32.xlu0 %v1097, 96
    %v1104 = vpop.permute.xlu0 %1103
    %1105 = vrot.lane.b32.xlu0 %v1098, 96
    %v1106 = vpop.permute.xlu0 %1105
    %1107 = vrot.lane.b32.xlu0 %v1099, 96
    %v1108 = vpop.permute.xlu0 %1107
    %vm1109 = vcmask 785408
    %v1110 = vsel %vm1109, %v1104, %v1106
    %v1111 = vsel %vm1109, %v1106, %v1108
    %v1115 = vadd.f32 %v1087, %v1110
    %v1116 = vadd.f32 %v1088, %v1111
    %v1117 = vadd.f32 %v1089, %v1108
    %s1118 = sld [smem:[#allocation4 + $0x15]]
    %s1119 = sld [smem:[#allocation4 + $0x46]]
    %v1120 = vstv %s1118
    %v1121 = vmul.f32 %v949, %v1120
    %v1122 = vstv %s1119
    %v1123 = vmul.f32 %v950, %v1122
    %v1124 = vadd.f32 %v1121, %v1123
    %v1125 = vmul.f32 %v1124, %v1053
    %v1126 = vmul.f32 %v1124, %v1054
    %v1127 = vmul.f32 %v1124, %v1055
    %1131 = vrot.lane.b32.xlu0 %v1125, 80
    %v1132 = vpop.permute.xlu0 %1131
    %1133 = vrot.lane.b32.xlu0 %v1126, 80
    %v1134 = vpop.permute.xlu0 %1133
    %1135 = vrot.lane.b32.xlu0 %v1127, 80
    %v1136 = vpop.permute.xlu0 %1135
    %vm1137 = vcmask 654336
    %v1138 = vsel %vm1137, %v1132, %v1134
    %v1139 = vsel %vm1137, %v1134, %v1136
    %v1143 = vadd.f32 %v1115, %v1138
    %v1144 = vadd.f32 %v1116, %v1139
    %v1145 = vadd.f32 %v1117, %v1136
    %s1146 = sld [smem:[#allocation4 + $0x1c]]
    %s1147 = sld [smem:[#allocation4 + $0x4d]]
    %v1148 = vstv %s1146
    %v1149 = vmul.f32 %v949, %v1148
    %v1150 = vstv %s1147
    %v1151 = vmul.f32 %v950, %v1150
    %v1152 = vadd.f32 %v1149, %v1151
    %v1153 = vld [vmem:[#allocation2 + $0x8] sm:$0xff]
    %v1154 = vld [vmem:[#allocation2 + $0x10] sm:$0xff]
    %v1155 = vld [vmem:[#allocation2 + $0x18] sm:$0xff]
    %v1156 = vmul.f32 %v1152, %v1153
    %v1157 = vmul.f32 %v1152, %v1154
    %v1158 = vmul.f32 %v1152, %v1155
    %1162 = vrot.lane.b32.xlu0 %v1156, 64
    %v1163 = vpop.permute.xlu0 %1162
    %1164 = vrot.lane.b32.xlu0 %v1157, 64
    %v1165 = vpop.permute.xlu0 %1164
    %1166 = vrot.lane.b32.xlu0 %v1158, 64
    %v1167 = vpop.permute.xlu0 %1166
    %vm1168 = vcmask 523264
    %v1169 = vsel %vm1168, %v1163, %v1165
    %v1170 = vsel %vm1168, %v1165, %v1167
    %v1174 = vadd.f32 %v1143, %v1163
    %v1175 = vadd.f32 %v1144, %v1169
    %v1176 = vadd.f32 %v1145, %v1170
    %s1177 = sld [smem:[#allocation4 + $0x23]]
    %s1178 = sld [smem:[#allocation4 + $0x54]]
    %v1179 = vstv %s1177
    %v1180 = vmul.f32 %v949, %v1179
    %v1181 = vstv %s1178
    %v1182 = vmul.f32 %v950, %v1181
    %v1183 = vadd.f32 %v1180, %v1182
    %v1184 = vmul.f32 %v1183, %v1153
    %v1185 = vmul.f32 %v1183, %v1154
    %v1186 = vmul.f32 %v1183, %v1155
    %1190 = vrot.lane.b32.xlu0 %v1184, 48
    %v1191 = vpop.permute.xlu0 %1190
    %1192 = vrot.lane.b32.xlu0 %v1185, 48
    %v1193 = vpop.permute.xlu0 %1192
    %1194 = vrot.lane.b32.xlu0 %v1186, 48
    %v1195 = vpop.permute.xlu0 %1194
    %vm1196 = vcmask 392192
    %v1197 = vsel %vm1196, %v1191, %v1193
    %v1198 = vsel %vm1196, %v1193, %v1195
    %v1202 = vadd.f32 %v1174, %v1191
    %v1203 = vadd.f32 %v1175, %v1197
    %v1204 = vadd.f32 %v1176, %v1198
    %s1205 = sld [smem:[#allocation4 + $0x2a]]
    %s1206 = sld [smem:[#allocation4 + $0x5b]]
    %v1207 = vstv %s1205
    %v1208 = vmul.f32 %v949, %v1207
    %v1209 = vstv %s1206
    %v1210 = vmul.f32 %v950, %v1209
    %v1211 = vadd.f32 %v1208, %v1210
    %v1212 = vmul.f32 %v1211, %v1153
    %v1213 = vmul.f32 %v1211, %v1154
    %v1214 = vmul.f32 %v1211, %v1155
    %1218 = vrot.lane.b32.xlu0 %v1212, 32
    %v1219 = vpop.permute.xlu0 %1218
    %1220 = vrot.lane.b32.xlu0 %v1213, 32
    %v1221 = vpop.permute.xlu0 %1220
    %1222 = vrot.lane.b32.xlu0 %v1214, 32
    %v1223 = vpop.permute.xlu0 %1222
    %vm1224 = vcmask 261120
    %v1225 = vsel %vm1224, %v1219, %v1221
    %v1226 = vsel %vm1224, %v1221, %v1223
    %v1230 = vadd.f32 %v1202, %v1219
    %v1231 = vadd.f32 %v1203, %v1225
    %v1232 = vadd.f32 %v1204, %v1226
    %1236 = vrot.lane.b32.xlu0 %v1230, 51
    %v1237 = vpop.permute.xlu0 %1236
    %1238 = vrot.lane.b32.xlu0 %v1231, 51
    %v1239 = vpop.permute.xlu0 %1238
    %1240 = vrot.lane.b32.xlu0 %v1232, 51
    %v1241 = vpop.permute.xlu0 %1240
    %vm1242 = vcmask 416768
    %v1243 = vsel %vm1242, %v1237, %v1239
    %v1244 = vsel %vm1242, %v1239, %v1241
    %v1247 = vmul.f32 %v984, %v1243
    %v1248 = vmul.f32 %v985, %v1244
    %v1249 = vadd.f32 %v1247, 0.0
    %v1250 = vadd.f32 %v1248, 0.0
    %s1251 = sld [smem:[#allocation4 + $0x1]]
    %s1252 = sld [smem:[#allocation4 + $0x32]]
    %v1253 = vstv %s1251
    %v1254 = vmul.f32 %v949, %v1253
    %v1255 = vstv %s1252
    %v1256 = vmul.f32 %v950, %v1255
    %v1257 = vadd.f32 %v1254, %v1256
    %v1258 = vmul.f32 %v1257, %v1053
    %v1259 = vmul.f32 %v1257, %v1054
    %v1260 = vmul.f32 %v1257, %v1055
    %v1261 = vadd.f32 %v1258, 0.0
    %v1262 = vadd.f32 %v1259, 0.0
    %v1263 = vadd.f32 %v1260, 0.0
    %s1264 = sld [smem:[#allocation4 + $0x8]]
    %s1265 = sld [smem:[#allocation4 + $0x39]]
    %v1266 = vstv %s1264
    %v1267 = vmul.f32 %v949, %v1266
    %v1268 = vstv %s1265
    %v1269 = vmul.f32 %v950, %v1268
    %v1270 = vadd.f32 %v1267, %v1269
    %v1271 = vmul.f32 %v1270, %v1053
    %v1272 = vmul.f32 %v1270, %v1054
    %v1273 = vmul.f32 %v1270, %v1055
    %1277 = vrot.lane.b32.xlu0 %v1271, 112
    %v1278 = vpop.permute.xlu0 %1277
    %1279 = vrot.lane.b32.xlu0 %v1272, 112
    %v1280 = vpop.permute.xlu0 %1279
    %1281 = vrot.lane.b32.xlu0 %v1273, 112
    %v1282 = vpop.permute.xlu0 %1281
    %v1283 = vsel %vm1081, %v1278, %v1280
    %v1284 = vsel %vm1081, %v1280, %v1282
    %v1288 = vadd.f32 %v1261, %v1283
    %v1289 = vadd.f32 %v1262, %v1284
    %v1290 = vadd.f32 %v1263, %v1282
    %s1291 = sld [smem:[#allocation4 + $0xf]]
    %s1292 = sld [smem:[#allocation4 + $0x40]]
    %v1293 = vstv %s1291
    %v1294 = vmul.f32 %v949, %v1293
    %v1295 = vstv %s1292
    %v1296 = vmul.f32 %v950, %v1295
    %v1297 = vadd.f32 %v1294, %v1296
    %v1298 = vmul.f32 %v1297, %v1053
    %v1299 = vmul.f32 %v1297, %v1054
    %v1300 = vmul.f32 %v1297, %v1055
    %1304 = vrot.lane.b32.xlu0 %v1298, 96
    %v1305 = vpop.permute.xlu0 %1304
    %1306 = vrot.lane.b32.xlu0 %v1299, 96
    %v1307 = vpop.permute.xlu0 %1306
    %1308 = vrot.lane.b32.xlu0 %v1300, 96
    %v1309 = vpop.permute.xlu0 %1308
    %v1310 = vsel %vm1109, %v1305, %v1307
    %v1311 = vsel %vm1109, %v1307, %v1309
    %v1315 = vadd.f32 %v1288, %v1310
    %v1316 = vadd.f32 %v1289, %v1311
    %v1317 = vadd.f32 %v1290, %v1309
    %s1318 = sld [smem:[#allocation4 + $0x16]]
    %s1319 = sld [smem:[#allocation4 + $0x47]]
    %v1320 = vstv %s1318
    %v1321 = vmul.f32 %v949, %v1320
    %v1322 = vstv %s1319
    %v1323 = vmul.f32 %v950, %v1322
    %v1324 = vadd.f32 %v1321, %v1323
    %v1325 = vmul.f32 %v1324, %v1053
    %v1326 = vmul.f32 %v1324, %v1054
    %v1327 = vmul.f32 %v1324, %v1055
    %1331 = vrot.lane.b32.xlu0 %v1325, 80
    %v1332 = vpop.permute.xlu0 %1331
    %1333 = vrot.lane.b32.xlu0 %v1326, 80
    %v1334 = vpop.permute.xlu0 %1333
    %1335 = vrot.lane.b32.xlu0 %v1327, 80
    %v1336 = vpop.permute.xlu0 %1335
    %v1337 = vsel %vm1137, %v1332, %v1334
    %v1338 = vsel %vm1137, %v1334, %v1336
    %v1342 = vadd.f32 %v1315, %v1337
    %v1343 = vadd.f32 %v1316, %v1338
    %v1344 = vadd.f32 %v1317, %v1336
    %s1345 = sld [smem:[#allocation4 + $0x1d]]
    %s1346 = sld [smem:[#allocation4 + $0x4e]]
    %v1347 = vstv %s1345
    %v1348 = vmul.f32 %v949, %v1347
    %v1349 = vstv %s1346
    %v1350 = vmul.f32 %v950, %v1349
    %v1351 = vadd.f32 %v1348, %v1350
    %v1352 = vmul.f32 %v1351, %v1153
    %v1353 = vmul.f32 %v1351, %v1154
    %v1354 = vmul.f32 %v1351, %v1155
    %1358 = vrot.lane.b32.xlu0 %v1352, 64
    %v1359 = vpop.permute.xlu0 %1358
    %1360 = vrot.lane.b32.xlu0 %v1353, 64
    %v1361 = vpop.permute.xlu0 %1360
    %1362 = vrot.lane.b32.xlu0 %v1354, 64
    %v1363 = vpop.permute.xlu0 %1362
    %v1364 = vsel %vm1168, %v1359, %v1361
    %v1365 = vsel %vm1168, %v1361, %v1363
    %v1369 = vadd.f32 %v1342, %v1359
    %v1370 = vadd.f32 %v1343, %v1364
    %v1371 = vadd.f32 %v1344, %v1365
    %s1372 = sld [smem:[#allocation4 + $0x24]]
    %s1373 = sld [smem:[#allocation4 + $0x55]]
    %v1374 = vstv %s1372
    %v1375 = vmul.f32 %v949, %v1374
    %v1376 = vstv %s1373
    %v1377 = vmul.f32 %v950, %v1376
    %v1378 = vadd.f32 %v1375, %v1377
    %v1379 = vmul.f32 %v1378, %v1153
    %v1380 = vmul.f32 %v1378, %v1154
    %v1381 = vmul.f32 %v1378, %v1155
    %1385 = vrot.lane.b32.xlu0 %v1379, 48
    %v1386 = vpop.permute.xlu0 %1385
    %1387 = vrot.lane.b32.xlu0 %v1380, 48
    %v1388 = vpop.permute.xlu0 %1387
    %1389 = vrot.lane.b32.xlu0 %v1381, 48
    %v1390 = vpop.permute.xlu0 %1389
    %v1391 = vsel %vm1196, %v1386, %v1388
    %v1392 = vsel %vm1196, %v1388, %v1390
    %v1396 = vadd.f32 %v1369, %v1386
    %v1397 = vadd.f32 %v1370, %v1391
    %v1398 = vadd.f32 %v1371, %v1392
    %s1399 = sld [smem:[#allocation4 + $0x2b]]
    %s1400 = sld [smem:[#allocation4 + $0x5c]]
    %v1401 = vstv %s1399
    %v1402 = vmul.f32 %v949, %v1401
    %v1403 = vstv %s1400
    %v1404 = vmul.f32 %v950, %v1403
    %v1405 = vadd.f32 %v1402, %v1404
    %v1406 = vmul.f32 %v1405, %v1153
    %v1407 = vmul.f32 %v1405, %v1154
    %v1408 = vmul.f32 %v1405, %v1155
    %1412 = vrot.lane.b32.xlu0 %v1406, 32
    %v1413 = vpop.permute.xlu0 %1412
    %1414 = vrot.lane.b32.xlu0 %v1407, 32
    %v1415 = vpop.permute.xlu0 %1414
    %1416 = vrot.lane.b32.xlu0 %v1408, 32
    %v1417 = vpop.permute.xlu0 %1416
    %v1418 = vsel %vm1224, %v1413, %v1415
    %v1419 = vsel %vm1224, %v1415, %v1417
    %v1423 = vadd.f32 %v1396, %v1413
    %v1424 = vadd.f32 %v1397, %v1418
    %v1425 = vadd.f32 %v1398, %v1419
    %1429 = vrot.lane.b32.xlu0 %v1423, 50
    %v1430 = vpop.permute.xlu0 %1429
    %1431 = vrot.lane.b32.xlu0 %v1424, 50
    %v1432 = vpop.permute.xlu0 %1431
    %1433 = vrot.lane.b32.xlu0 %v1425, 50
    %v1434 = vpop.permute.xlu0 %1433
    %vm1435 = vcmask 408576
    %v1436 = vsel %vm1435, %v1430, %v1432
    %v1437 = vsel %vm1435, %v1432, %v1434
    %v1440 = vmul.f32 %v994, %v1436
    %v1441 = vmul.f32 %v995, %v1437
    %v1442 = vadd.f32 %v1249, %v1440
    %v1443 = vadd.f32 %v1250, %v1441
    %s1444 = sld [smem:[#allocation4 + $0x2]]
    %s1445 = sld [smem:[#allocation4 + $0x33]]
    %v1446 = vstv %s1444
    %v1447 = vmul.f32 %v949, %v1446
    %v1448 = vstv %s1445
    %v1449 = vmul.f32 %v950, %v1448
    %v1450 = vadd.f32 %v1447, %v1449
    %v1451 = vmul.f32 %v1450, %v1053
    %v1452 = vmul.f32 %v1450, %v1054
    %v1453 = vmul.f32 %v1450, %v1055
    %v1454 = vadd.f32 %v1451, 0.0
    %v1455 = vadd.f32 %v1452, 0.0
    %v1456 = vadd.f32 %v1453, 0.0
    %s1457 = sld [smem:[#allocation4 + $0x9]]
    %s1458 = sld [smem:[#allocation4 + $0x3a]]
    %v1459 = vstv %s1457
    %v1460 = vmul.f32 %v949, %v1459
    %v1461 = vstv %s1458
    %v1462 = vmul.f32 %v950, %v1461
    %v1463 = vadd.f32 %v1460, %v1462
    %v1464 = vmul.f32 %v1463, %v1053
    %v1465 = vmul.f32 %v1463, %v1054
    %v1466 = vmul.f32 %v1463, %v1055
    %1470 = vrot.lane.b32.xlu0 %v1464, 112
    %v1471 = vpop.permute.xlu0 %1470
    %1472 = vrot.lane.b32.xlu0 %v1465, 112
    %v1473 = vpop.permute.xlu0 %1472
    %1474 = vrot.lane.b32.xlu0 %v1466, 112
    %v1475 = vpop.permute.xlu0 %1474
    %v1476 = vsel %vm1081, %v1471, %v1473
    %v1477 = vsel %vm1081, %v1473, %v1475
    %v1481 = vadd.f32 %v1454, %v1476
    %v1482 = vadd.f32 %v1455, %v1477
    %v1483 = vadd.f32 %v1456, %v1475
    %s1484 = sld [smem:[#allocation4 + $0x10]]
    %s1485 = sld [smem:[#allocation4 + $0x41]]
    %v1486 = vstv %s1484
    %v1487 = vmul.f32 %v949, %v1486
    %v1488 = vstv %s1485
    %v1489 = vmul.f32 %v950, %v1488
    %v1490 = vadd.f32 %v1487, %v1489
    %v1491 = vmul.f32 %v1490, %v1053
    %v1492 = vmul.f32 %v1490, %v1054
    %v1493 = vmul.f32 %v1490, %v1055
    %1497 = vrot.lane.b32.xlu0 %v1491, 96
    %v1498 = vpop.permute.xlu0 %1497
    %1499 = vrot.lane.b32.xlu0 %v1492, 96
    %v1500 = vpop.permute.xlu0 %1499
    %1501 = vrot.lane.b32.xlu0 %v1493, 96
    %v1502 = vpop.permute.xlu0 %1501
    %v1503 = vsel %vm1109, %v1498, %v1500
    %v1504 = vsel %vm1109, %v1500, %v1502
    %v1508 = vadd.f32 %v1481, %v1503
    %v1509 = vadd.f32 %v1482, %v1504
    %v1510 = vadd.f32 %v1483, %v1502
    %s1511 = sld [smem:[#allocation4 + $0x17]]
    %s1512 = sld [smem:[#allocation4 + $0x48]]
    %v1513 = vstv %s1511
    %v1514 = vmul.f32 %v949, %v1513
    %v1515 = vstv %s1512
    %v1516 = vmul.f32 %v950, %v1515
    %v1517 = vadd.f32 %v1514, %v1516
    %v1518 = vmul.f32 %v1517, %v1053
    %v1519 = vmul.f32 %v1517, %v1054
    %v1520 = vmul.f32 %v1517, %v1055
    %1524 = vrot.lane.b32.xlu0 %v1518, 80
    %v1525 = vpop.permute.xlu0 %1524
    %1526 = vrot.lane.b32.xlu0 %v1519, 80
    %v1527 = vpop.permute.xlu0 %1526
    %1528 = vrot.lane.b32.xlu0 %v1520, 80
    %v1529 = vpop.permute.xlu0 %1528
    %v1530 = vsel %vm1137, %v1525, %v1527
    %v1531 = vsel %vm1137, %v1527, %v1529
    %v1535 = vadd.f32 %v1508, %v1530
    %v1536 = vadd.f32 %v1509, %v1531
    %v1537 = vadd.f32 %v1510, %v1529
    %s1538 = sld [smem:[#allocation4 + $0x1e]]
    %s1539 = sld [smem:[#allocation4 + $0x4f]]
    %v1540 = vstv %s1538
    %v1541 = vmul.f32 %v949, %v1540
    %v1542 = vstv %s1539
    %v1543 = vmul.f32 %v950, %v1542
    %v1544 = vadd.f32 %v1541, %v1543
    %v1545 = vmul.f32 %v1544, %v1153
    %v1546 = vmul.f32 %v1544, %v1154
    %v1547 = vmul.f32 %v1544, %v1155
    %1551 = vrot.lane.b32.xlu0 %v1545, 64
    %v1552 = vpop.permute.xlu0 %1551
    %1553 = vrot.lane.b32.xlu0 %v1546, 64
    %v1554 = vpop.permute.xlu0 %1553
    %1555 = vrot.lane.b32.xlu0 %v1547, 64
    %v1556 = vpop.permute.xlu0 %1555
    %v1557 = vsel %vm1168, %v1552, %v1554
    %v1558 = vsel %vm1168, %v1554, %v1556
    %v1562 = vadd.f32 %v1535, %v1552
    %v1563 = vadd.f32 %v1536, %v1557
    %v1564 = vadd.f32 %v1537, %v1558
    %s1565 = sld [smem:[#allocation4 + $0x25]]
    %s1566 = sld [smem:[#allocation4 + $0x56]]
    %v1567 = vstv %s1565
    %v1568 = vmul.f32 %v949, %v1567
    %v1569 = vstv %s1566
    %v1570 = vmul.f32 %v950, %v1569
    %v1571 = vadd.f32 %v1568, %v1570
    %v1572 = vmul.f32 %v1571, %v1153
    %v1573 = vmul.f32 %v1571, %v1154
    %v1574 = vmul.f32 %v1571, %v1155
    %1578 = vrot.lane.b32.xlu0 %v1572, 48
    %v1579 = vpop.permute.xlu0 %1578
    %1580 = vrot.lane.b32.xlu0 %v1573, 48
    %v1581 = vpop.permute.xlu0 %1580
    %1582 = vrot.lane.b32.xlu0 %v1574, 48
    %v1583 = vpop.permute.xlu0 %1582
    %v1584 = vsel %vm1196, %v1579, %v1581
    %v1585 = vsel %vm1196, %v1581, %v1583
    %v1589 = vadd.f32 %v1562, %v1579
    %v1590 = vadd.f32 %v1563, %v1584
    %v1591 = vadd.f32 %v1564, %v1585
    %s1592 = sld [smem:[#allocation4 + $0x2c]]
    %s1593 = sld [smem:[#allocation4 + $0x5d]]
    %v1594 = vstv %s1592
    %v1595 = vmul.f32 %v949, %v1594
    %v1596 = vstv %s1593
    %v1597 = vmul.f32 %v950, %v1596
    %v1598 = vadd.f32 %v1595, %v1597
    %v1599 = vmul.f32 %v1598, %v1153
    %v1600 = vmul.f32 %v1598, %v1154
    %v1601 = vmul.f32 %v1598, %v1155
    %1605 = vrot.lane.b32.xlu0 %v1599, 32
    %v1606 = vpop.permute.xlu0 %1605
    %1607 = vrot.lane.b32.xlu0 %v1600, 32
    %v1608 = vpop.permute.xlu0 %1607
    %1609 = vrot.lane.b32.xlu0 %v1601, 32
    %v1610 = vpop.permute.xlu0 %1609
    %v1611 = vsel %vm1224, %v1606, %v1608
    %v1612 = vsel %vm1224, %v1608, %v1610
    %v1616 = vadd.f32 %v1589, %v1606
    %v1617 = vadd.f32 %v1590, %v1611
    %v1618 = vadd.f32 %v1591, %v1612
    %1622 = vrot.lane.b32.xlu0 %v1616, 49
    %v1623 = vpop.permute.xlu0 %1622
    %1624 = vrot.lane.b32.xlu0 %v1617, 49
    %v1625 = vpop.permute.xlu0 %1624
    %1626 = vrot.lane.b32.xlu0 %v1618, 49
    %v1627 = vpop.permute.xlu0 %1626
    %vm1628 = vcmask 400384
    %v1629 = vsel %vm1628, %v1623, %v1625
    %v1630 = vsel %vm1628, %v1625, %v1627
    %v1633 = vmul.f32 %v1004, %v1629
    %v1634 = vmul.f32 %v1005, %v1630
    %v1635 = vadd.f32 %v1442, %v1633
    %v1636 = vadd.f32 %v1443, %v1634
    %s1637 = sld [smem:[#allocation4 + $0x3]]
    %s1638 = sld [smem:[#allocation4 + $0x34]]
    %v1639 = vstv %s1637
    %v1640 = vmul.f32 %v949, %v1639
    %v1641 = vstv %s1638
    %v1642 = vmul.f32 %v950, %v1641
    %v1643 = vadd.f32 %v1640, %v1642
    %v1644 = vmul.f32 %v1643, %v1053
    %v1645 = vmul.f32 %v1643, %v1054
    %v1646 = vmul.f32 %v1643, %v1055
    %v1647 = vadd.f32 %v1644, 0.0
    %v1648 = vadd.f32 %v1645, 0.0
    %v1649 = vadd.f32 %v1646, 0.0
    %s1650 = sld [smem:[#allocation4 + $0xa]]
    %s1651 = sld [smem:[#allocation4 + $0x3b]]
    %v1652 = vstv %s1650
    %v1653 = vmul.f32 %v949, %v1652
    %v1654 = vstv %s1651
    %v1655 = vmul.f32 %v950, %v1654
    %v1656 = vadd.f32 %v1653, %v1655
    %v1657 = vmul.f32 %v1656, %v1053
    %v1658 = vmul.f32 %v1656, %v1054
    %v1659 = vmul.f32 %v1656, %v1055
    %1663 = vrot.lane.b32.xlu0 %v1657, 112
    %v1664 = vpop.permute.xlu0 %1663
    %1665 = vrot.lane.b32.xlu0 %v1658, 112
    %v1666 = vpop.permute.xlu0 %1665
    %1667 = vrot.lane.b32.xlu0 %v1659, 112
    %v1668 = vpop.permute.xlu0 %1667
    %v1669 = vsel %vm1081, %v1664, %v1666
    %v1670 = vsel %vm1081, %v1666, %v1668
    %v1674 = vadd.f32 %v1647, %v1669
    %v1675 = vadd.f32 %v1648, %v1670
    %v1676 = vadd.f32 %v1649, %v1668
    %s1677 = sld [smem:[#allocation4 + $0x11]]
    %s1678 = sld [smem:[#allocation4 + $0x42]]
    %v1679 = vstv %s1677
    %v1680 = vmul.f32 %v949, %v1679
    %v1681 = vstv %s1678
    %v1682 = vmul.f32 %v950, %v1681
    %v1683 = vadd.f32 %v1680, %v1682
    %v1684 = vmul.f32 %v1683, %v1053
    %v1685 = vmul.f32 %v1683, %v1054
    %v1686 = vmul.f32 %v1683, %v1055
    %1690 = vrot.lane.b32.xlu0 %v1684, 96
    %v1691 = vpop.permute.xlu0 %1690
    %1692 = vrot.lane.b32.xlu0 %v1685, 96
    %v1693 = vpop.permute.xlu0 %1692
    %1694 = vrot.lane.b32.xlu0 %v1686, 96
    %v1695 = vpop.permute.xlu0 %1694
    %v1696 = vsel %vm1109, %v1691, %v1693
    %v1697 = vsel %vm1109, %v1693, %v1695
    %v1701 = vadd.f32 %v1674, %v1696
    %v1702 = vadd.f32 %v1675, %v1697
    %v1703 = vadd.f32 %v1676, %v1695
    %s1704 = sld [smem:[#allocation4 + $0x18]]
    %s1705 = sld [smem:[#allocation4 + $0x49]]
    %v1706 = vstv %s1704
    %v1707 = vmul.f32 %v949, %v1706
    %v1708 = vstv %s1705
    %v1709 = vmul.f32 %v950, %v1708
    %v1710 = vadd.f32 %v1707, %v1709
    %v1711 = vmul.f32 %v1710, %v1054
    %v1712 = vmul.f32 %v1710, %v1055
    %1715 = vrot.lane.b32.xlu0 %v1711, 80
    %v1716 = vpop.permute.xlu0 %1715
    %1717 = vrot.lane.b32.xlu0 %v1712, 80
    %v1718 = vpop.permute.xlu0 %1717
    %v1719 = vsel %vm1137, %v1716, %v1718
    %v1723 = vadd.f32 %v1701, %v1716
    %v1724 = vadd.f32 %v1702, %v1719
    %v1725 = vadd.f32 %v1703, %v1718
    %s1726 = sld [smem:[#allocation4 + $0x1f]]
    %s1727 = sld [smem:[#allocation4 + $0x50]]
    %v1728 = vstv %s1726
    %v1729 = vmul.f32 %v949, %v1728
    %v1730 = vstv %s1727
    %v1731 = vmul.f32 %v950, %v1730
    %v1732 = vadd.f32 %v1729, %v1731
    %v1733 = vmul.f32 %v1732, %v1153
    %v1734 = vmul.f32 %v1732, %v1154
    %v1735 = vmul.f32 %v1732, %v1155
    %1739 = vrot.lane.b32.xlu0 %v1733, 64
    %v1740 = vpop.permute.xlu0 %1739
    %1741 = vrot.lane.b32.xlu0 %v1734, 64
    %v1742 = vpop.permute.xlu0 %1741
    %1743 = vrot.lane.b32.xlu0 %v1735, 64
    %v1744 = vpop.permute.xlu0 %1743
    %v1745 = vsel %vm1168, %v1740, %v1742
    %v1746 = vsel %vm1168, %v1742, %v1744
    %v1750 = vadd.f32 %v1723, %v1740
    %v1751 = vadd.f32 %v1724, %v1745
    %v1752 = vadd.f32 %v1725, %v1746
    %s1753 = sld [smem:[#allocation4 + $0x26]]
    %s1754 = sld [smem:[#allocation4 + $0x57]]
    %v1755 = vstv %s1753
    %v1756 = vmul.f32 %v949, %v1755
    %v1757 = vstv %s1754
    %v1758 = vmul.f32 %v950, %v1757
    %v1759 = vadd.f32 %v1756, %v1758
    %v1760 = vmul.f32 %v1759, %v1153
    %v1761 = vmul.f32 %v1759, %v1154
    %v1762 = vmul.f32 %v1759, %v1155
    %1766 = vrot.lane.b32.xlu0 %v1760, 48
    %v1767 = vpop.permute.xlu0 %1766
    %1768 = vrot.lane.b32.xlu0 %v1761, 48
    %v1769 = vpop.permute.xlu0 %1768
    %1770 = vrot.lane.b32.xlu0 %v1762, 48
    %v1771 = vpop.permute.xlu0 %1770
    %v1772 = vsel %vm1196, %v1767, %v1769
    %v1773 = vsel %vm1196, %v1769, %v1771
    %v1777 = vadd.f32 %v1750, %v1767
    %v1778 = vadd.f32 %v1751, %v1772
    %v1779 = vadd.f32 %v1752, %v1773
    %s1780 = sld [smem:[#allocation4 + $0x2d]]
    %s1781 = sld [smem:[#allocation4 + $0x5e]]
    %v1782 = vstv %s1780
    %v1783 = vmul.f32 %v949, %v1782
    %v1784 = vstv %s1781
    %v1785 = vmul.f32 %v950, %v1784
    %v1786 = vadd.f32 %v1783, %v1785
    %v1787 = vmul.f32 %v1786, %v1153
    %v1788 = vmul.f32 %v1786, %v1154
    %v1789 = vmul.f32 %v1786, %v1155
    %1793 = vrot.lane.b32.xlu0 %v1787, 32
    %v1794 = vpop.permute.xlu0 %1793
    %1795 = vrot.lane.b32.xlu0 %v1788, 32
    %v1796 = vpop.permute.xlu0 %1795
    %1797 = vrot.lane.b32.xlu0 %v1789, 32
    %v1798 = vpop.permute.xlu0 %1797
    %v1799 = vsel %vm1224, %v1794, %v1796
    %v1800 = vsel %vm1224, %v1796, %v1798
    %v1804 = vadd.f32 %v1777, %v1794
    %v1805 = vadd.f32 %v1778, %v1799
    %v1806 = vadd.f32 %v1779, %v1800
    %1810 = vrot.lane.b32.xlu0 %v1804, 48
    %v1811 = vpop.permute.xlu0 %1810
    %1812 = vrot.lane.b32.xlu0 %v1805, 48
    %v1813 = vpop.permute.xlu0 %1812
    %1814 = vrot.lane.b32.xlu0 %v1806, 48
    %v1815 = vpop.permute.xlu0 %1814
    %v1816 = vsel %vm1196, %v1811, %v1813
    %v1817 = vsel %vm1196, %v1813, %v1815
    %v1820 = vmul.f32 %v1014, %v1816
    %v1821 = vmul.f32 %v1015, %v1817
    %v1822 = vadd.f32 %v1635, %v1820
    %v1823 = vadd.f32 %v1636, %v1821
    %s1824 = sld [smem:[#allocation4 + $0x4]]
    %s1825 = sld [smem:[#allocation4 + $0x35]]
    %v1826 = vstv %s1824
    %v1827 = vmul.f32 %v949, %v1826
    %v1828 = vstv %s1825
    %v1829 = vmul.f32 %v950, %v1828
    %v1830 = vadd.f32 %v1827, %v1829
    %v1831 = vmul.f32 %v1830, %v1053
    %v1832 = vmul.f32 %v1830, %v1054
    %v1833 = vmul.f32 %v1830, %v1055
    %v1834 = vadd.f32 %v1831, 0.0
    %v1835 = vadd.f32 %v1832, 0.0
    %v1836 = vadd.f32 %v1833, 0.0
    %s1837 = sld [smem:[#allocation4 + $0xb]]
    %s1838 = sld [smem:[#allocation4 + $0x3c]]
    %v1839 = vstv %s1837
    %v1840 = vmul.f32 %v949, %v1839
    %v1841 = vstv %s1838
    %v1842 = vmul.f32 %v950, %v1841
    %v1843 = vadd.f32 %v1840, %v1842
    %v1844 = vmul.f32 %v1843, %v1053
    %v1845 = vmul.f32 %v1843, %v1054
    %v1846 = vmul.f32 %v1843, %v1055
    %1850 = vrot.lane.b32.xlu0 %v1844, 112
    %v1851 = vpop.permute.xlu0 %1850
    %1852 = vrot.lane.b32.xlu0 %v1845, 112
    %v1853 = vpop.permute.xlu0 %1852
    %1854 = vrot.lane.b32.xlu0 %v1846, 112
    %v1855 = vpop.permute.xlu0 %1854
    %v1856 = vsel %vm1081, %v1851, %v1853
    %v1857 = vsel %vm1081, %v1853, %v1855
    %v1861 = vadd.f32 %v1834, %v1856
    %v1862 = vadd.f32 %v1835, %v1857
    %v1863 = vadd.f32 %v1836, %v1855
    %s1864 = sld [smem:[#allocation4 + $0x12]]
    %s1865 = sld [smem:[#allocation4 + $0x43]]
    %v1866 = vstv %s1864
    %v1867 = vmul.f32 %v949, %v1866
    %v1868 = vstv %s1865
    %v1869 = vmul.f32 %v950, %v1868
    %v1870 = vadd.f32 %v1867, %v1869
    %v1871 = vmul.f32 %v1870, %v1053
    %v1872 = vmul.f32 %v1870, %v1054
    %v1873 = vmul.f32 %v1870, %v1055
    %1877 = vrot.lane.b32.xlu0 %v1871, 96
    %v1878 = vpop.permute.xlu0 %1877
    %1879 = vrot.lane.b32.xlu0 %v1872, 96
    %v1880 = vpop.permute.xlu0 %1879
    %1881 = vrot.lane.b32.xlu0 %v1873, 96
    %v1882 = vpop.permute.xlu0 %1881
    %v1883 = vsel %vm1109, %v1878, %v1880
    %v1884 = vsel %vm1109, %v1880, %v1882
    %v1888 = vadd.f32 %v1861, %v1883
    %v1889 = vadd.f32 %v1862, %v1884
    %v1890 = vadd.f32 %v1863, %v1882
    %s1891 = sld [smem:[#allocation4 + $0x19]]
    %s1892 = sld [smem:[#allocation4 + $0x4a]]
    %v1893 = vstv %s1891
    %v1894 = vmul.f32 %v949, %v1893
    %v1895 = vstv %s1892
    %v1896 = vmul.f32 %v950, %v1895
    %v1897 = vadd.f32 %v1894, %v1896
    %v1898 = vmul.f32 %v1897, %v1153
    %v1899 = vmul.f32 %v1897, %v1154
    %v1900 = vmul.f32 %v1897, %v1155
    %1904 = vrot.lane.b32.xlu0 %v1898, 80
    %v1905 = vpop.permute.xlu0 %1904
    %1906 = vrot.lane.b32.xlu0 %v1899, 80
    %v1907 = vpop.permute.xlu0 %1906
    %1908 = vrot.lane.b32.xlu0 %v1900, 80
    %v1909 = vpop.permute.xlu0 %1908
    %v1910 = vsel %vm1137, %v1905, %v1907
    %v1911 = vsel %vm1137, %v1907, %v1909
    %v1915 = vadd.f32 %v1888, %v1905
    %v1916 = vadd.f32 %v1889, %v1910
    %v1917 = vadd.f32 %v1890, %v1911
    %s1918 = sld [smem:[#allocation4 + $0x20]]
    %s1919 = sld [smem:[#allocation4 + $0x51]]
    %v1920 = vstv %s1918
    %v1921 = vmul.f32 %v949, %v1920
    %v1922 = vstv %s1919
    %v1923 = vmul.f32 %v950, %v1922
    %v1924 = vadd.f32 %v1921, %v1923
    %v1925 = vmul.f32 %v1924, %v1153
    %v1926 = vmul.f32 %v1924, %v1154
    %v1927 = vmul.f32 %v1924, %v1155
    %1931 = vrot.lane.b32.xlu0 %v1925, 64
    %v1932 = vpop.permute.xlu0 %1931
    %1933 = vrot.lane.b32.xlu0 %v1926, 64
    %v1934 = vpop.permute.xlu0 %1933
    %1935 = vrot.lane.b32.xlu0 %v1927, 64
    %v1936 = vpop.permute.xlu0 %1935
    %v1937 = vsel %vm1168, %v1932, %v1934
    %v1938 = vsel %vm1168, %v1934, %v1936
    %v1942 = vadd.f32 %v1915, %v1932
    %v1943 = vadd.f32 %v1916, %v1937
    %v1944 = vadd.f32 %v1917, %v1938
    %s1945 = sld [smem:[#allocation4 + $0x27]]
    %s1946 = sld [smem:[#allocation4 + $0x58]]
    %v1947 = vstv %s1945
    %v1948 = vmul.f32 %v949, %v1947
    %v1949 = vstv %s1946
    %v1950 = vmul.f32 %v950, %v1949
    %v1951 = vadd.f32 %v1948, %v1950
    %v1952 = vmul.f32 %v1951, %v1153
    %v1953 = vmul.f32 %v1951, %v1154
    %v1954 = vmul.f32 %v1951, %v1155
    %1958 = vrot.lane.b32.xlu0 %v1952, 48
    %v1959 = vpop.permute.xlu0 %1958
    %1960 = vrot.lane.b32.xlu0 %v1953, 48
    %v1961 = vpop.permute.xlu0 %1960
    %1962 = vrot.lane.b32.xlu0 %v1954, 48
    %v1963 = vpop.permute.xlu0 %1962
    %v1964 = vsel %vm1196, %v1959, %v1961
    %v1965 = vsel %vm1196, %v1961, %v1963
    %v1969 = vadd.f32 %v1942, %v1959
    %v1970 = vadd.f32 %v1943, %v1964
    %v1971 = vadd.f32 %v1944, %v1965
    %s1972 = sld [smem:[#allocation4 + $0x2e]]
    %s1973 = sld [smem:[#allocation4 + $0x5f]]
    %v1974 = vstv %s1972
    %v1975 = vmul.f32 %v949, %v1974
    %v1976 = vstv %s1973
    %v1977 = vmul.f32 %v950, %v1976
    %v1978 = vadd.f32 %v1975, %v1977
    %v1979 = vmul.f32 %v1978, %v1153
    %v1980 = vmul.f32 %v1978, %v1154
    %v1981 = vmul.f32 %v1978, %v1155
    %1985 = vrot.lane.b32.xlu0 %v1979, 32
    %v1986 = vpop.permute.xlu0 %1985
    %1987 = vrot.lane.b32.xlu0 %v1980, 32
    %v1988 = vpop.permute.xlu0 %1987
    %1989 = vrot.lane.b32.xlu0 %v1981, 32
    %v1990 = vpop.permute.xlu0 %1989
    %v1991 = vsel %vm1224, %v1986, %v1988
    %v1992 = vsel %vm1224, %v1988, %v1990
    %v1996 = vadd.f32 %v1969, %v1986
    %v1997 = vadd.f32 %v1970, %v1991
    %v1998 = vadd.f32 %v1971, %v1992
    %2002 = vrot.lane.b32.xlu0 %v1996, 47
    %v2003 = vpop.permute.xlu0 %2002
    %2004 = vrot.lane.b32.xlu0 %v1997, 47
    %v2005 = vpop.permute.xlu0 %2004
    %2006 = vrot.lane.b32.xlu0 %v1998, 47
    %v2007 = vpop.permute.xlu0 %2006
    %vm2008 = vcmask 384000
    %v2009 = vsel %vm2008, %v2003, %v2005
    %v2010 = vsel %vm2008, %v2005, %v2007
    %v2013 = vmul.f32 %v1024, %v2009
    %v2014 = vmul.f32 %v1025, %v2010
    %v2015 = vadd.f32 %v1822, %v2013
    %v2016 = vadd.f32 %v1823, %v2014
    %s2017 = sld [smem:[#allocation4 + $0x5]]
    %s2018 = sld [smem:[#allocation4 + $0x36]]
    %v2019 = vstv %s2017
    %v2020 = vmul.f32 %v949, %v2019
    %v2021 = vstv %s2018
    %v2022 = vmul.f32 %v950, %v2021
    %v2023 = vadd.f32 %v2020, %v2022
    %v2024 = vmul.f32 %v2023, %v1053
    %v2025 = vmul.f32 %v2023, %v1054
    %v2026 = vmul.f32 %v2023, %v1055
    %v2027 = vadd.f32 %v2024, 0.0
    %v2028 = vadd.f32 %v2025, 0.0
    %v2029 = vadd.f32 %v2026, 0.0
    %s2030 = sld [smem:[#allocation4 + $0xc]]
    %s2031 = sld [smem:[#allocation4 + $0x3d]]
    %v2032 = vstv %s2030
    %v2033 = vmul.f32 %v949, %v2032
    %v2034 = vstv %s2031
    %v2035 = vmul.f32 %v950, %v2034
    %v2036 = vadd.f32 %v2033, %v2035
    %v2037 = vmul.f32 %v2036, %v1053
    %v2038 = vmul.f32 %v2036, %v1054
    %v2039 = vmul.f32 %v2036, %v1055
    %2043 = vrot.lane.b32.xlu0 %v2037, 112
    %v2044 = vpop.permute.xlu0 %2043
    %2045 = vrot.lane.b32.xlu0 %v2038, 112
    %v2046 = vpop.permute.xlu0 %2045
    %2047 = vrot.lane.b32.xlu0 %v2039, 112
    %v2048 = vpop.permute.xlu0 %2047
    %v2049 = vsel %vm1081, %v2044, %v2046
    %v2050 = vsel %vm1081, %v2046, %v2048
    %v2054 = vadd.f32 %v2027, %v2049
    %v2055 = vadd.f32 %v2028, %v2050
    %v2056 = vadd.f32 %v2029, %v2048
    %s2057 = sld [smem:[#allocation4 + $0x13]]
    %s2058 = sld [smem:[#allocation4 + $0x44]]
    %v2059 = vstv %s2057
    %v2060 = vmul.f32 %v949, %v2059
    %v2061 = vstv %s2058
    %v2062 = vmul.f32 %v950, %v2061
    %v2063 = vadd.f32 %v2060, %v2062
    %v2064 = vmul.f32 %v2063, %v1053
    %v2065 = vmul.f32 %v2063, %v1054
    %v2066 = vmul.f32 %v2063, %v1055
    %2070 = vrot.lane.b32.xlu0 %v2064, 96
    %v2071 = vpop.permute.xlu0 %2070
    %2072 = vrot.lane.b32.xlu0 %v2065, 96
    %v2073 = vpop.permute.xlu0 %2072
    %2074 = vrot.lane.b32.xlu0 %v2066, 96
    %v2075 = vpop.permute.xlu0 %2074
    %v2076 = vsel %vm1109, %v2071, %v2073
    %v2077 = vsel %vm1109, %v2073, %v2075
    %v2081 = vadd.f32 %v2054, %v2076
    %v2082 = vadd.f32 %v2055, %v2077
    %v2083 = vadd.f32 %v2056, %v2075
    %s2084 = sld [smem:[#allocation4 + $0x1a]]
    %s2085 = sld [smem:[#allocation4 + $0x4b]]
    %v2086 = vstv %s2084
    %v2087 = vmul.f32 %v949, %v2086
    %v2088 = vstv %s2085
    %v2089 = vmul.f32 %v950, %v2088
    %v2090 = vadd.f32 %v2087, %v2089
    %v2091 = vmul.f32 %v2090, %v1153
    %v2092 = vmul.f32 %v2090, %v1154
    %v2093 = vmul.f32 %v2090, %v1155
    %2097 = vrot.lane.b32.xlu0 %v2091, 80
    %v2098 = vpop.permute.xlu0 %2097
    %2099 = vrot.lane.b32.xlu0 %v2092, 80
    %v2100 = vpop.permute.xlu0 %2099
    %2101 = vrot.lane.b32.xlu0 %v2093, 80
    %v2102 = vpop.permute.xlu0 %2101
    %v2103 = vsel %vm1137, %v2098, %v2100
    %v2104 = vsel %vm1137, %v2100, %v2102
    %v2108 = vadd.f32 %v2081, %v2098
    %v2109 = vadd.f32 %v2082, %v2103
    %v2110 = vadd.f32 %v2083, %v2104
    %s2111 = sld [smem:[#allocation4 + $0x21]]
    %s2112 = sld [smem:[#allocation4 + $0x52]]
    %v2113 = vstv %s2111
    %v2114 = vmul.f32 %v949, %v2113
    %v2115 = vstv %s2112
    %v2116 = vmul.f32 %v950, %v2115
    %v2117 = vadd.f32 %v2114, %v2116
    %v2118 = vmul.f32 %v2117, %v1153
    %v2119 = vmul.f32 %v2117, %v1154
    %v2120 = vmul.f32 %v2117, %v1155
    %2124 = vrot.lane.b32.xlu0 %v2118, 64
    %v2125 = vpop.permute.xlu0 %2124
    %2126 = vrot.lane.b32.xlu0 %v2119, 64
    %v2127 = vpop.permute.xlu0 %2126
    %2128 = vrot.lane.b32.xlu0 %v2120, 64
    %v2129 = vpop.permute.xlu0 %2128
    %v2130 = vsel %vm1168, %v2125, %v2127
    %v2131 = vsel %vm1168, %v2127, %v2129
    %v2135 = vadd.f32 %v2108, %v2125
    %v2136 = vadd.f32 %v2109, %v2130
    %v2137 = vadd.f32 %v2110, %v2131
    %s2138 = sld [smem:[#allocation4 + $0x28]]
    %s2139 = sld [smem:[#allocation4 + $0x59]]
    %v2140 = vstv %s2138
    %v2141 = vmul.f32 %v949, %v2140
    %v2142 = vstv %s2139
    %v2143 = vmul.f32 %v950, %v2142
    %v2144 = vadd.f32 %v2141, %v2143
    %v2145 = vmul.f32 %v2144, %v1153
    %v2146 = vmul.f32 %v2144, %v1154
    %v2147 = vmul.f32 %v2144, %v1155
    %2151 = vrot.lane.b32.xlu0 %v2145, 48
    %v2152 = vpop.permute.xlu0 %2151
    %2153 = vrot.lane.b32.xlu0 %v2146, 48
    %v2154 = vpop.permute.xlu0 %2153
    %2155 = vrot.lane.b32.xlu0 %v2147, 48
    %v2156 = vpop.permute.xlu0 %2155
    %v2157 = vsel %vm1196, %v2152, %v2154
    %v2158 = vsel %vm1196, %v2154, %v2156
    %v2162 = vadd.f32 %v2135, %v2152
    %v2163 = vadd.f32 %v2136, %v2157
    %v2164 = vadd.f32 %v2137, %v2158
    %s2165 = sld [smem:[#allocation4 + $0x2f]]
    %s2166 = sld [smem:[#allocation4 + $0x60]]
    %v2167 = vstv %s2165
    %v2168 = vmul.f32 %v949, %v2167
    %v2169 = vstv %s2166
    %v2170 = vmul.f32 %v950, %v2169
    %v2171 = vadd.f32 %v2168, %v2170
    %v2172 = vmul.f32 %v2171, %v1153
    %v2173 = vmul.f32 %v2171, %v1154
    %v2174 = vmul.f32 %v2171, %v1155
    %2178 = vrot.lane.b32.xlu0 %v2172, 32
    %v2179 = vpop.permute.xlu0 %2178
    %2180 = vrot.lane.b32.xlu0 %v2173, 32
    %v2181 = vpop.permute.xlu0 %2180
    %2182 = vrot.lane.b32.xlu0 %v2174, 32
    %v2183 = vpop.permute.xlu0 %2182
    %v2184 = vsel %vm1224, %v2179, %v2181
    %v2185 = vsel %vm1224, %v2181, %v2183
    %v2189 = vadd.f32 %v2162, %v2179
    %v2190 = vadd.f32 %v2163, %v2184
    %v2191 = vadd.f32 %v2164, %v2185
    %2195 = vrot.lane.b32.xlu0 %v2189, 46
    %v2196 = vpop.permute.xlu0 %2195
    %2197 = vrot.lane.b32.xlu0 %v2190, 46
    %v2198 = vpop.permute.xlu0 %2197
    %2199 = vrot.lane.b32.xlu0 %v2191, 46
    %v2200 = vpop.permute.xlu0 %2199
    %vm2201 = vcmask 375808
    %v2202 = vsel %vm2201, %v2196, %v2198
    %v2203 = vsel %vm2201, %v2198, %v2200
    %v2206 = vmul.f32 %v1034, %v2202
    %v2207 = vmul.f32 %v1035, %v2203
    %v2208 = vadd.f32 %v2015, %v2206
    %v2209 = vadd.f32 %v2016, %v2207
    %s2210 = sld [smem:[#allocation4 + $0x6]]
    %s2211 = sld [smem:[#allocation4 + $0x37]]
    %v2212 = vstv %s2210
    %v2213 = vmul.f32 %v949, %v2212
    %v2214 = vstv %s2211
    %v2215 = vmul.f32 %v950, %v2214
    %v2216 = vadd.f32 %v2213, %v2215
    %v2217 = vmul.f32 %v2216, %v1053
    %v2218 = vmul.f32 %v2216, %v1054
    %v2219 = vmul.f32 %v2216, %v1055
    %v2220 = vadd.f32 %v2217, 0.0
    %v2221 = vadd.f32 %v2218, 0.0
    %v2222 = vadd.f32 %v2219, 0.0
    %s2223 = sld [smem:[#allocation4 + $0xd]]
    %s2224 = sld [smem:[#allocation4 + $0x3e]]
    %v2225 = vstv %s2223
    %v2226 = vmul.f32 %v949, %v2225
    %v2227 = vstv %s2224
    %v2228 = vmul.f32 %v950, %v2227
    %v2229 = vadd.f32 %v2226, %v2228
    %v2230 = vmul.f32 %v2229, %v1053
    %v2231 = vmul.f32 %v2229, %v1054
    %v2232 = vmul.f32 %v2229, %v1055
    %2236 = vrot.lane.b32.xlu0 %v2230, 112
    %v2237 = vpop.permute.xlu0 %2236
    %2238 = vrot.lane.b32.xlu0 %v2231, 112
    %v2239 = vpop.permute.xlu0 %2238
    %2240 = vrot.lane.b32.xlu0 %v2232, 112
    %v2241 = vpop.permute.xlu0 %2240
    %v2242 = vsel %vm1081, %v2237, %v2239
    %v2243 = vsel %vm1081, %v2239, %v2241
    %v2247 = vadd.f32 %v2220, %v2242
    %v2248 = vadd.f32 %v2221, %v2243
    %v2249 = vadd.f32 %v2222, %v2241
    %s2250 = sld [smem:[#allocation4 + $0x14]]
    %s2251 = sld [smem:[#allocation4 + $0x45]]
    %v2252 = vstv %s2250
    %v2253 = vmul.f32 %v949, %v2252
    %v2254 = vstv %s2251
    %v2255 = vmul.f32 %v950, %v2254
    %v2256 = vadd.f32 %v2253, %v2255
    %v2257 = vmul.f32 %v2256, %v1053
    %v2258 = vmul.f32 %v2256, %v1054
    %v2259 = vmul.f32 %v2256, %v1055
    %2263 = vrot.lane.b32.xlu0 %v2257, 96
    %v2264 = vpop.permute.xlu0 %2263
    %2265 = vrot.lane.b32.xlu0 %v2258, 96
    %v2266 = vpop.permute.xlu0 %2265
    %2267 = vrot.lane.b32.xlu0 %v2259, 96
    %v2268 = vpop.permute.xlu0 %2267
    %v2269 = vsel %vm1109, %v2264, %v2266
    %v2270 = vsel %vm1109, %v2266, %v2268
    %v2274 = vadd.f32 %v2247, %v2269
    %v2275 = vadd.f32 %v2248, %v2270
    %v2276 = vadd.f32 %v2249, %v2268
    %s2277 = sld [smem:[#allocation4 + $0x1b]]
    %s2278 = sld [smem:[#allocation4 + $0x4c]]
    %v2279 = vstv %s2277
    %v2280 = vmul.f32 %v949, %v2279
    %v2281 = vstv %s2278
    %v2282 = vmul.f32 %v950, %v2281
    %v2283 = vadd.f32 %v2280, %v2282
    %v2284 = vmul.f32 %v2283, %v1153
    %v2285 = vmul.f32 %v2283, %v1154
    %v2286 = vmul.f32 %v2283, %v1155
    %2290 = vrot.lane.b32.xlu0 %v2284, 80
    %v2291 = vpop.permute.xlu0 %2290
    %2292 = vrot.lane.b32.xlu0 %v2285, 80
    %v2293 = vpop.permute.xlu0 %2292
    %2294 = vrot.lane.b32.xlu0 %v2286, 80
    %v2295 = vpop.permute.xlu0 %2294
    %v2296 = vsel %vm1137, %v2291, %v2293
    %v2297 = vsel %vm1137, %v2293, %v2295
    %v2301 = vadd.f32 %v2274, %v2291
    %v2302 = vadd.f32 %v2275, %v2296
    %v2303 = vadd.f32 %v2276, %v2297
    %s2304 = sld [smem:[#allocation4 + $0x22]]
    %s2305 = sld [smem:[#allocation4 + $0x53]]
    %v2306 = vstv %s2304
    %v2307 = vmul.f32 %v949, %v2306
    %v2308 = vstv %s2305
    %v2309 = vmul.f32 %v950, %v2308
    %v2310 = vadd.f32 %v2307, %v2309
    %v2311 = vmul.f32 %v2310, %v1153
    %v2312 = vmul.f32 %v2310, %v1154
    %v2313 = vmul.f32 %v2310, %v1155
    %2317 = vrot.lane.b32.xlu0 %v2311, 64
    %v2318 = vpop.permute.xlu0 %2317
    %2319 = vrot.lane.b32.xlu0 %v2312, 64
    %v2320 = vpop.permute.xlu0 %2319
    %2321 = vrot.lane.b32.xlu0 %v2313, 64
    %v2322 = vpop.permute.xlu0 %2321
    %v2323 = vsel %vm1168, %v2318, %v2320
    %v2324 = vsel %vm1168, %v2320, %v2322
    %v2328 = vadd.f32 %v2301, %v2318
    %v2329 = vadd.f32 %v2302, %v2323
    %v2330 = vadd.f32 %v2303, %v2324
    %s2331 = sld [smem:[#allocation4 + $0x29]]
    %s2332 = sld [smem:[#allocation4 + $0x5a]]
    %v2333 = vstv %s2331
    %v2334 = vmul.f32 %v949, %v2333
    %v2335 = vstv %s2332
    %v2336 = vmul.f32 %v950, %v2335
    %v2337 = vadd.f32 %v2334, %v2336
    %v2338 = vmul.f32 %v2337, %v1153
    %v2339 = vmul.f32 %v2337, %v1154
    %v2340 = vmul.f32 %v2337, %v1155
    %2344 = vrot.lane.b32.xlu0 %v2338, 48
    %v2345 = vpop.permute.xlu0 %2344
    %2346 = vrot.lane.b32.xlu0 %v2339, 48
    %v2347 = vpop.permute.xlu0 %2346
    %2348 = vrot.lane.b32.xlu0 %v2340, 48
    %v2349 = vpop.permute.xlu0 %2348
    %v2350 = vsel %vm1196, %v2345, %v2347
    %v2351 = vsel %vm1196, %v2347, %v2349
    %v2355 = vadd.f32 %v2328, %v2345
    %v2356 = vadd.f32 %v2329, %v2350
    %v2357 = vadd.f32 %v2330, %v2351
    %s2358 = sld [smem:[#allocation4 + $0x30]]
    %s2359 = sld [smem:[#allocation4 + $0x61]]
    %v2360 = vstv %s2358
    %v2361 = vmul.f32 %v949, %v2360
    %v2362 = vstv %s2359
    %v2363 = vmul.f32 %v950, %v2362
    %v2364 = vadd.f32 %v2361, %v2363
    %v2365 = vmul.f32 %v2364, %v1153
    %v2366 = vmul.f32 %v2364, %v1154
    %v2367 = vmul.f32 %v2364, %v1155
    %2371 = vrot.lane.b32.xlu0 %v2365, 32
    %v2372 = vpop.permute.xlu0 %2371
    %2373 = vrot.lane.b32.xlu0 %v2366, 32
    %v2374 = vpop.permute.xlu0 %2373
    %2375 = vrot.lane.b32.xlu0 %v2367, 32
    %v2376 = vpop.permute.xlu0 %2375
    %v2377 = vsel %vm1224, %v2372, %v2374
    %v2378 = vsel %vm1224, %v2374, %v2376
    %v2382 = vadd.f32 %v2355, %v2372
    %v2383 = vadd.f32 %v2356, %v2377
    %v2384 = vadd.f32 %v2357, %v2378
    %2388 = vrot.lane.b32.xlu0 %v2382, 45
    %v2389 = vpop.permute.xlu0 %2388
    %2390 = vrot.lane.b32.xlu0 %v2383, 45
    %v2391 = vpop.permute.xlu0 %2390
    %2392 = vrot.lane.b32.xlu0 %v2384, 45
    %v2393 = vpop.permute.xlu0 %2392
    %vm2394 = vcmask 367616
    %v2395 = vsel %vm2394, %v2389, %v2391
    %v2396 = vsel %vm2394, %v2391, %v2393
    %v2399 = vmul.f32 %v1044, %v2395
    %v2400 = vmul.f32 %v1045, %v2396
    %v2401 = vadd.f32 %v2208, %v2399
    %v2402 = vadd.f32 %v2209, %v2400
    %v2405 = vrot.slane %v2401, 4
    %v2406 = vrot.slane %v2402, 4
    %v2409 = vadd.f32 %v2401, %v2405
    %v2410 = vadd.f32 %v2402, %v2406
    %s2411 = sld [smem:[#allocation3]]
    %v2412 = vstv %s2411
    %v2413 = vadd.f32 %v2409, %v2412
    %v2414 = vadd.f32 %v2410, %v2412
    %v2415 = vxor.u32 %v2413, 2147483648
    %v2416 = vxor.u32 %v2414, 2147483648
    %v2417 = vmul.f32 %v2415, 1.442695
    %v2418 = vpow.pop %v2417
    %v2419 = vmul.f32 %v2416, 1.442695
    %v2420 = vpow.pop %v2419
    %v2421 = vadd.f32 %v2418, 1.0
    %v2422 = vadd.f32 %v2420, 1.0
    %v2423 = vrcp.pop %v2421
    %v2424 = vmul.f32 1.0, %v2423
    %v2425 = vrcp.pop %v2422
    %v2426 = vmul.f32 1.0, %v2425
    %v2429 = vcombine.low %v2424, %v2426
    %v2431 = vunpack.c.l.s4 1966171168
    %v2432 = vunpack.c.0.s8 %v2431
    %v2433 = vlaneseq
    %v2434 = vshrl.u32 %v2433, 7
    %v2435 = vsub.s32 %v2432, %v2434
    %v2436 = vrot.slane %v2429, %v2435
    %v2437 = vcombine.high %v2436, %v2436
    %v2439 = vunpack.c.l.s4 1966171168
    %v2440 = vunpack.c.0.s8 %v2439
    %v2441 = vlaneseq
    %v2442 = vshrl.u32 %v2441, 7
    %v2443 = vsub.s32 %v2440, %v2442
    %v2444 = vrot.slane %v2436, %v2443
    %v2446 = vunpack.c.l.s4 1966171168
    %v2447 = vunpack.c.0.s8 %v2446
    %v2448 = vlaneseq
    %v2449 = vshrl.u32 %v2448, 7
    %v2450 = vsub.s32 %v2447, %v2449
    %v2451 = vrot.slane %v2437, %v2450
    %v2452 = vcombine.high %v2444, %v2444
    %v2453 = vcombine.high %v2451, %v2451
    %v2454 = vlaneseq
    %v2455 = vshrl.u32 %v2454, 7
    %v2456 = vsub.s32 0, %v2455
    %v2457 = vrot.slane %v2444, %v2456
    %v2458 = vlaneseq
    %v2459 = vshrl.u32 %v2458, 7
    %v2460 = vsub.s32 1, %v2459
    %v2461 = vrot.slane %v2444, %v2460
    %v2462 = vlaneseq
    %v2463 = vshrl.u32 %v2462, 7
    %v2464 = vsub.s32 0, %v2463
    %v2465 = vrot.slane %v2451, %v2464
    %v2466 = vlaneseq
    %v2467 = vshrl.u32 %v2466, 7
    %v2468 = vsub.s32 1, %v2467
    %v2469 = vrot.slane %v2451, %v2468
    %v2470 = vlaneseq
    %v2471 = vshrl.u32 %v2470, 7
    %v2472 = vsub.s32 0, %v2471
    %v2473 = vrot.slane %v2452, %v2472
    %v2474 = vlaneseq
    %v2475 = vshrl.u32 %v2474, 7
    %v2476 = vsub.s32 1, %v2475
    %v2477 = vrot.slane %v2452, %v2476
    %v2478 = vlaneseq
    %v2479 = vshrl.u32 %v2478, 7
    %v2480 = vsub.s32 0, %v2479
    %v2481 = vrot.slane %v2453, %v2480
    %v2482 = vlaneseq
    %v2483 = vshrl.u32 %v2482, 7
    %v2484 = vsub.s32 1, %v2483
    %v2485 = vrot.slane %v2453, %v2484
    %v2494 = vmul.f32 %v717, %v2457
    %v2495 = vmul.f32 %v718, %v2461
    %v2496 = vmul.f32 %v719, %v2457
    %v2497 = vmul.f32 %v720, %v2461
    %v2498 = vmul.f32 %v721, %v2457
    %v2499 = vmul.f32 %v722, %v2461
    %v2500 = vmul.f32 %v723, %v2457
    %v2501 = vmul.f32 %v724, %v2461
    %v2502 = vmul.f32 %v725, %v2465
    %v2503 = vmul.f32 %v726, %v2469
    %v2504 = vmul.f32 %v727, %v2465
    %v2505 = vmul.f32 %v728, %v2469
    %v2506 = vmul.f32 %v729, %v2465
    %v2507 = vmul.f32 %v730, %v2469
    %v2508 = vmul.f32 %v731, %v2465
    %v2509 = vmul.f32 %v732, %v2469
    %v2510 = vmul.f32 %v733, %v2473
    %v2511 = vmul.f32 %v734, %v2477
    %v2512 = vmul.f32 %v735, %v2473
    %v2513 = vmul.f32 %v736, %v2477
    %v2514 = vmul.f32 %v737, %v2473
    %v2515 = vmul.f32 %v738, %v2477
    %v2516 = vmul.f32 %v739, %v2473
    %v2517 = vmul.f32 %v740, %v2477
    %v2518 = vmul.f32 %v741, %v2481
    %v2519 = vmul.f32 %v742, %v2485
    %v2520 = vmul.f32 %v743, %v2481
    %v2521 = vmul.f32 %v744, %v2485
    %v2522 = vmul.f32 %v745, %v2481
    %v2523 = vmul.f32 %v746, %v2485
    %v2524 = vmul.f32 %v747, %v2481
    %v2525 = vmul.f32 %v748, %v2485
    %2526 = vst [vmem:[%s7] sm:$0xff] %v2494
    %2527 = vst [vmem:[%s7 + $0x8] sm:$0xff] %v2495
    %2528 = vst [vmem:[%s7 + $0x10] sm:$0xff] %v2496
    %2529 = vst [vmem:[%s7 + $0x18] sm:$0xff] %v2497
    %2530 = vst [vmem:[%s7 + $0x20] sm:$0xff] %v2498
    %2531 = vst [vmem:[%s7 + $0x28] sm:$0xff] %v2499
    %2532 = vst [vmem:[%s7 + $0x30] sm:$0xff] %v2500
    %2533 = vst [vmem:[%s7 + $0x38] sm:$0xff] %v2501
    %2534 = vst [vmem:[%s7 + $0x40] sm:$0xff] %v2502
    %2535 = vst [vmem:[%s7 + $0x48] sm:$0xff] %v2503
    %2536 = vst [vmem:[%s7 + $0x50] sm:$0xff] %v2504
    %2537 = vst [vmem:[%s7 + $0x58] sm:$0xff] %v2505
    %2538 = vst [vmem:[%s7 + $0x60] sm:$0xff] %v2506
    %2539 = vst [vmem:[%s7 + $0x68] sm:$0xff] %v2507
    %2540 = vst [vmem:[%s7 + $0x70] sm:$0xff] %v2508
    %2541 = vst [vmem:[%s7 + $0x78] sm:$0xff] %v2509
    %2542 = vst [vmem:[%s7 + $0x80] sm:$0xff] %v2510
    %2543 = vst [vmem:[%s7 + $0x88] sm:$0xff] %v2511
    %2544 = vst [vmem:[%s7 + $0x90] sm:$0xff] %v2512
    %2545 = vst [vmem:[%s7 + $0x98] sm:$0xff] %v2513
    %2546 = vst [vmem:[%s7 + $0xa0] sm:$0xff] %v2514
    %2547 = vst [vmem:[%s7 + $0xa8] sm:$0xff] %v2515
    %2548 = vst [vmem:[%s7 + $0xb0] sm:$0xff] %v2516
    %2549 = vst [vmem:[%s7 + $0xb8] sm:$0xff] %v2517
    %2550 = vst [vmem:[%s7 + $0xc0] sm:$0xff] %v2518
    %2551 = vst [vmem:[%s7 + $0xc8] sm:$0xff] %v2519
    %2552 = vst [vmem:[%s7 + $0xd0] sm:$0xff] %v2520
    %2553 = vst [vmem:[%s7 + $0xd8] sm:$0xff] %v2521
    %2554 = vst [vmem:[%s7 + $0xe0] sm:$0xff] %v2522
    %2555 = vst [vmem:[%s7 + $0xe8] sm:$0xff] %v2523
    %2556 = vst [vmem:[%s7 + $0xf0] sm:$0xff] %v2524
    %2557 = vst [vmem:[%s7 + $0xf8] sm:$0xff] %v2525
    // Predicated region
    $region34: #{cbam_pallas.1} parent=1 // pred_check
      _
    $region35: #{cbam_pallas.1} parent=1 // pred_check_branch
      %2559 = sbr.rel (0) target = $region37
    $region36: #{cbam_pallas.1} parent=1 // pred_region
      _
    $region37: #{cbam_pallas.1} parent=1 // pred_fallthru
      _
    // Predicated region
    $region38: #{cbam_pallas.1} parent=1 // pred_check
      _
    $region39: #{cbam_pallas.1} parent=1 // pred_check_branch
      %2561 = sbr.rel (0) target = $region41
    $region40: #{cbam_pallas.1} parent=1 // pred_region
      _
    $region41: #{cbam_pallas.1} parent=1 // pred_fallthru
      _
    %2562 = vsyncpa [#allocation5], 1

</llo_original>
